<compile_context>
chip_gen: v6e
topology: v6e:2x2x1
jax: 0.10.0
libtpu: 0.0.40
codegen_flags: <defaults>
</compile_context>

<pallas_src>
import functools

import jax
import jax.numpy as jnp
from jax.experimental import pallas as pl
from jax.experimental.pallas import tpu as pltpu


# ---------------------------------------------------------------------------
# Fused conv-as-matmul Pallas kernel
#   acc += patches_tile @ weight_tile          (bf16 x bf16 -> f32 on the MXU)
#   at last K step:  y = acc*scale + shift ; LeakyReLU? ; y *= postmask ; store
# ---------------------------------------------------------------------------
def _fused_conv_kernel(p_ref, w_ref, scale_ref, shift_ref, post_ref,
                       o_ref, acc_ref, *, apply_leaky):
    k = pl.program_id(2)

    @pl.when(k == 0)
    def _init():
        acc_ref[...] = jnp.zeros_like(acc_ref)

    acc_ref[...] += jnp.dot(p_ref[...], w_ref[...],
                            preferred_element_type=jnp.float32)

    @pl.when(k == pl.num_programs(2) - 1)
    def _finalize():
        y = acc_ref[...] * scale_ref[...] + shift_ref[...]
        if apply_leaky:
            y = jnp.where(y >= 0, y, 0.2 * y)
        y = y * post_ref[...]
        o_ref[...] = y.astype(o_ref.dtype)


def _round_up(x, m):
    return ((x + m - 1) // m) * m


def _pick_tiles(M, K, C):
    # Caps chosen so (inputs double-buffered + out + acc) stays ~3 MiB/step:
    # fits v7x's 64 MiB VMEM, fills the 256-wide MXU on v6e/v7x, 128-aligned for v5e.
    tm = min(512, _round_up(M, 16))
    Mp = _round_up(M, tm)
    tk = min(512, _round_up(K, 128))
    Kp = _round_up(K, tk)
    Cp = _round_up(C, 128)            # lane-dense output stores
    tn = 256 if Cp % 256 == 0 else 128
    return tm, tn, tk, Mp, Kp, Cp


def fused_conv_matmul(patches, w_mat, scale, shift, post, *, apply_leaky, out_dtype):
    M, K = patches.shape
    _, C = w_mat.shape
    tm, tn, tk, Mp, Kp, Cp = _pick_tiles(M, K, C)

    # bf16 operands (f32 accumulation inside the kernel); zero-pad to tile multiples.
    p = jnp.pad(patches.astype(jnp.bfloat16), ((0, Mp - M), (0, Kp - K)))
    w = jnp.pad(w_mat.astype(jnp.bfloat16), ((0, Kp - K), (0, Cp - C)))
    sc = jnp.pad(scale.astype(jnp.float32).reshape(1, C), ((0, 0), (0, Cp - C)))
    sh = jnp.pad(shift.astype(jnp.float32).reshape(1, C), ((0, 0), (0, Cp - C)))
    pm = jnp.pad(post.astype(jnp.float32).reshape(1, C), ((0, 0), (0, Cp - C)))

    grid = (Mp // tm, Cp // tn, Kp // tk)
    out_bytes = jnp.dtype(out_dtype).itemsize
    cost = pl.CostEstimate(
        flops=2 * Mp * Kp * Cp,
        transcendentals=0,
        bytes_accessed=Mp * Kp * 2 + Kp * Cp * 2 + Mp * Cp * out_bytes,
    )

    out = pl.pallas_call(
        functools.partial(_fused_conv_kernel, apply_leaky=apply_leaky),
        out_shape=jax.ShapeDtypeStruct((Mp, Cp), out_dtype),
        grid_spec=pltpu.PrefetchScalarGridSpec(
            num_scalar_prefetch=0,
            grid=grid,
            in_specs=[
                pl.BlockSpec((tm, tk), lambda i, j, k: (i, k)),   # patches
                pl.BlockSpec((tk, tn), lambda i, j, k: (k, j)),   # weights
                pl.BlockSpec((1, tn), lambda i, j, k: (0, j)),    # scale
                pl.BlockSpec((1, tn), lambda i, j, k: (0, j)),    # shift
                pl.BlockSpec((1, tn), lambda i, j, k: (0, j)),    # post-act mask
            ],
            out_specs=pl.BlockSpec((tm, tn), lambda i, j, k: (i, j)),
            scratch_shapes=[pltpu.VMEM((tm, tn), jnp.float32)],
        ),
        compiler_params=pltpu.CompilerParams(
            dimension_semantics=("parallel", "parallel", "arbitrary"),
            vmem_limit_bytes=48 * 1024 * 1024,
        ),
        cost_estimate=cost,
    )(p, w, sc, sh, pm)
    return out[:M, :C]


# ---------------------------------------------------------------------------
# im2col patch extraction (pure data movement, bf16, plain JAX)
# ---------------------------------------------------------------------------
def extract_patches(x, k, stride, pad):
    # x: (N, H, W, C) -> (N, Hout, Wout, k*k*C), contraction ordering (kh, kw, cin)
    xp = jnp.pad(x, ((0, 0), (pad, pad), (pad, pad), (0, 0)))
    _, Hp, Wp, _ = xp.shape
    Hout = (Hp - k) // stride + 1
    Wout = (Wp - k) // stride + 1
    cols = []
    for di in range(k):
        for dj in range(k):
            cols.append(
                xp[:, di:di + stride * (Hout - 1) + 1:stride,
                      dj:dj + stride * (Wout - 1) + 1:stride, :])
    return jnp.concatenate(cols, axis=-1), Hout, Wout


# ---------------------------------------------------------------------------
# Epilogue folding: conv bias + BatchNorm2d (eval mode) + channel mask + LeakyReLU
# ---------------------------------------------------------------------------
def _fold_epilogue(layer, threshold):
    cout = layer["cout"]
    scale = jnp.ones((cout,), jnp.float32)
    shift = jnp.zeros((cout,), jnp.float32)
    post = jnp.ones((cout,), jnp.float32)

    if layer["bias"]:
        shift = layer["b"].astype(jnp.float32)

    if layer["bn"]:
        # TODO(synk): BatchNorm2d(affine=True, track_running_stats=True) is applied in
        # inference mode (running statistics); training-mode batch stats are not computed.
        inv = jax.lax.rsqrt(layer["running_var"].astype(jnp.float32) + 1e-5)
        g = layer["gamma"].astype(jnp.float32) * inv
        b = layer["beta"].astype(jnp.float32) - layer["running_mean"].astype(jnp.float32) * g
        scale, shift = g, b

    if layer["mask"]:
        # TODO(synk): DifferentiableOP is not defined in the reference source; its forward
        # is modeled as the standard differentiable channel mask x * (sigmoid(gate) > thr).
        m = (jax.nn.sigmoid(layer["gate"]) > threshold).astype(jnp.float32)
        if layer["mask_after_act"]:   # first layer: Conv -> LeakyReLU -> mask
            post = m
        else:                         # middle layers: Conv -> BN -> mask -> LeakyReLU
            scale = scale * m
            shift = shift * m
    return scale, shift, post


def conv_block(x, layer, threshold, is_last):
    # x: (N, H, W, Cin) bf16;  w: (Cout, Cin, 4, 4) PyTorch layout
    w = layer["w"]
    cout, cin, kh, kw = w.shape
    patches, Hout, Wout = extract_patches(x, kh, layer["stride"], 1)
    N = x.shape[0]
    M = N * Hout * Wout
    p2 = patches.reshape(M, kh * kw * cin)
    # (Cout, Cin, kh, kw) -> (kh, kw, Cin, Cout) -> (kh*kw*Cin, Cout)
    w_mat = jnp.transpose(w, (2, 3, 1, 0)).reshape(kh * kw * cin, cout)
    scale, shift, post = _fold_epilogue(layer, threshold)
    out_dtype = jnp.float32 if is_last else jnp.bfloat16
    y = fused_conv_matmul(p2, w_mat, scale, shift, post,
                          apply_leaky=layer["act"], out_dtype=out_dtype)
    return y.reshape(N, Hout, Wout, cout)


# ---------------------------------------------------------------------------
# MaskNLayerDiscriminator: layer specs, parameters, forward
# ---------------------------------------------------------------------------
def build_layer_specs(input_nc, ndf, n_layers):
    specs = [dict(cin=input_nc, cout=ndf, stride=2, bias=True, bn=False,
                  mask=True, act=True, mask_after_act=True)]
    nf_mult = 1
    for n in range(1, n_layers):
        nf_prev, nf_mult = nf_mult, min(2 ** n, 8)
        specs.append(dict(cin=ndf * nf_prev, cout=ndf * nf_mult, stride=2, bias=False,
                          bn=True, mask=True, act=True, mask_after_act=False))
    nf_prev, nf_mult = nf_mult, min(2 ** n_layers, 8)
    specs.append(dict(cin=ndf * nf_prev, cout=ndf * nf_mult, stride=1, bias=False,
                      bn=True, mask=True, act=True, mask_after_act=False))
    specs.append(dict(cin=ndf * nf_mult, cout=1, stride=1, bias=True, bn=False,
                      mask=False, act=False, mask_after_act=False))
    return specs


def init_params(key, input_nc=3, ndf=8, n_layers=3):
    layers = []
    for spec in build_layer_specs(input_nc, ndf, n_layers):
        cin, cout = spec["cin"], spec["cout"]
        key, kw_, kb_, kg_, kbt_, krm_, krv_, kmk_ = jax.random.split(key, 8)
        p = dict(spec)
        fan_in = cin * 16
        p["w"] = jax.random.normal(kw_, (cout, cin, 4, 4), jnp.float32) / jnp.sqrt(float(fan_in))
        p["b"] = 0.01 * jax.random.normal(kb_, (cout,), jnp.float32) if spec["bias"] else None
        if spec["bn"]:
            p["gamma"] = 1.0 + 0.1 * jax.random.normal(kg_, (cout,), jnp.float32)
            p["beta"] = 0.1 * jax.random.normal(kbt_, (cout,), jnp.float32)
            p["running_mean"] = 0.1 * jax.random.normal(krm_, (cout,), jnp.float32)
            p["running_var"] = 1.0 + 0.1 * jax.random.uniform(krv_, (cout,), jnp.float32)
        if spec["mask"]:
            p["gate"] = jax.random.normal(kmk_, (cout,), jnp.float32)
        layers.append(p)
    return layers


def mask_nlayer_discriminator(x_nchw, layers, threshold=0.5):
    x = jnp.transpose(x_nchw, (0, 2, 3, 1)).astype(jnp.bfloat16)  # NCHW -> NHWC, bf16
    for idx, layer in enumerate(layers):
        x = conv_block(x, layer, threshold, is_last=(idx == len(layers) - 1))
    return jnp.transpose(x, (0, 3, 1, 2))  # NHWC -> NCHW (f32 logits)


# ---------------------------------------------------------------------------
if __name__ == "__main__":
    key = jax.random.PRNGKey(0)
    kx, kp = jax.random.split(key)

    # Smallest architecture-consistent size: spatial 32 keeps all conv outputs >= 1.
    N, C_IN, H, W = 2, 3, 32, 32
    NDF, N_LAYERS, THRESHOLD = 8, 3, 0.5

    x = jax.random.normal(kx, (N, C_IN, H, W), jnp.float32)
    layers = init_params(kp, input_nc=C_IN, ndf=NDF, n_layers=N_LAYERS)

    fwd = jax.jit(lambda inp: mask_nlayer_discriminator(inp, layers, THRESHOLD))
    out = fwd(x)
    jax.block_until_ready(out)

    # 32 -> 16 -> 8 -> 4 -> 3 -> 2 spatially, 1 output channel (PatchGAN logits)
    assert out.shape == (N, 1, 2, 2), out.shape
    assert out.dtype == jnp.float32
    assert bool(jnp.all(jnp.isfinite(out)))
    print("KERNEL_OK")
</pallas_src>

<mosaic_0001>
module attributes {stable_mosaic.version = 11 : i64} {
  func.func @_fused_conv_kernel(%arg0: i32, %arg1: i32, %arg2: i32, %arg3: memref<512x128xbf16, #tpu.memory_space<vmem>>, %arg4: memref<128x128xbf16, #tpu.memory_space<vmem>>, %arg5: memref<1x128xf32, #tpu.memory_space<vmem>>, %arg6: memref<1x128xf32, #tpu.memory_space<vmem>>, %arg7: memref<1x128xf32, #tpu.memory_space<vmem>>, %arg8: memref<512x128xbf16, #tpu.memory_space<vmem>>, %arg9: memref<512x128xf32, #tpu.memory_space<vmem>>) attributes {dimension_semantics = [#tpu.dimension_semantics<parallel>, #tpu.dimension_semantics<parallel>, #tpu.dimension_semantics<arbitrary>], iteration_bounds = array<i64: 1, 1, 1>, scalar_prefetch = 0 : i64, scratch_operands = 1 : i64, tpu.core_type = #tpu.core_type<tc>, window_params = [{transform_indices = @transform_0, window_bounds = array<i64: 512, 128>}, {transform_indices = @transform_1, window_bounds = array<i64: 128, 128>}, {transform_indices = @transform_2, window_bounds = array<i64: 1, 128>}, {transform_indices = @transform_3, window_bounds = array<i64: 1, 128>}, {transform_indices = @transform_4, window_bounds = array<i64: 1, 128>}, {transform_indices = @transform_5, window_bounds = array<i64: 512, 128>}]} {
    %c0_i32 = arith.constant 0 : i32
    %0 = arith.cmpi eq, %arg2, %c0_i32 : i32
    %1 = arith.extui %0 : i1 to i32
    %c0_i32_0 = arith.constant 0 : i32
    %2 = arith.cmpi ne, %1, %c0_i32_0 : i32
    scf.if %2 {
      %cst_10 = arith.constant 0.000000e+00 : f32
      %12 = vector.broadcast %cst_10 : f32 to vector<512x128xf32>
      %c0_11 = arith.constant 0 : index
      %c0_12 = arith.constant 0 : index
      %13 = vector.load %arg9[%c0_11, %c0_12] : memref<512x128xf32, #tpu.memory_space<vmem>>, vector<512x128xf32>
      tpu.vector_store %arg9[%c0_11, %c0_12], %12 {strides = array<i32>} : memref<512x128xf32, #tpu.memory_space<vmem>>, vector<512x128xf32>,
    } else {
    }
    %c0 = arith.constant 0 : index
    %c0_1 = arith.constant 0 : index
    %3 = vector.load %arg9[%c0, %c0_1] : memref<512x128xf32, #tpu.memory_space<vmem>>, vector<512x128xf32>
    %c0_2 = arith.constant 0 : index
    %c0_3 = arith.constant 0 : index
    %4 = vector.load %arg3[%c0_2, %c0_3] : memref<512x128xbf16, #tpu.memory_space<vmem>>, vector<512x128xbf16>
    %c0_4 = arith.constant 0 : index
    %c0_5 = arith.constant 0 : index
    %5 = vector.load %arg4[%c0_4, %c0_5] : memref<128x128xbf16, #tpu.memory_space<vmem>>, vector<128x128xbf16>
    %cst = arith.constant dense<0.000000e+00> : vector<512x128xf32>
    %6 = tpu.matmul %4, %5, %cst {dimension_numbers = #tpu.dot_dimension_numbers<[1], [0], [0], [1], [0, 0, 1, 1], [], []>} : vector<512x128xbf16>, vector<128x128xbf16>, vector<512x128xf32> -> vector<512x128xf32>
    %7 = arith.addf %3, %6 : vector<512x128xf32>
    %c0_6 = arith.constant 0 : index
    %c0_7 = arith.constant 0 : index
    %8 = vector.load %arg9[%c0_6, %c0_7] : memref<512x128xf32, #tpu.memory_space<vmem>>, vector<512x128xf32>
    tpu.vector_store %arg9[%c0_6, %c0_7], %7 {strides = array<i32>} : memref<512x128xf32, #tpu.memory_space<vmem>>, vector<512x128xf32>,
    %c0_i32_8 = arith.constant 0 : i32
    %9 = arith.cmpi eq, %arg2, %c0_i32_8 : i32
    %10 = arith.extui %9 : i1 to i32
    %c0_i32_9 = arith.constant 0 : i32
    %11 = arith.cmpi ne, %10, %c0_i32_9 : i32
    scf.if %11 {
      %c0_10 = arith.constant 0 : index
      %c0_11 = arith.constant 0 : index
      %12 = vector.load %arg9[%c0_10, %c0_11] : memref<512x128xf32, #tpu.memory_space<vmem>>, vector<512x128xf32>
      %c0_12 = arith.constant 0 : index
      %c0_13 = arith.constant 0 : index
      %13 = vector.load %arg5[%c0_12, %c0_13] : memref<1x128xf32, #tpu.memory_space<vmem>>, vector<1x128xf32>
      %14 = vector.broadcast %13 : vector<1x128xf32> to vector<512x128xf32>
      %15 = arith.mulf %12, %14 : vector<512x128xf32>
      %c0_14 = arith.constant 0 : index
      %c0_15 = arith.constant 0 : index
      %16 = vector.load %arg6[%c0_14, %c0_15] : memref<1x128xf32, #tpu.memory_space<vmem>>, vector<1x128xf32>
      %17 = vector.broadcast %16 : vector<1x128xf32> to vector<512x128xf32>
      %18 = arith.addf %15, %17 : vector<512x128xf32>
      %cst_16 = arith.constant 0.000000e+00 : f32
      %19 = vector.broadcast %cst_16 : f32 to vector<512x128xf32>
      %20 = arith.cmpf oge, %18, %19 : vector<512x128xf32>
      %cst_17 = arith.constant 2.000000e-01 : f32
      %21 = vector.broadcast %cst_17 : f32 to vector<512x128xf32>
      %22 = arith.mulf %21, %18 : vector<512x128xf32>
      %23 = arith.select %20, %18, %22 : vector<512x128xi1>, vector<512x128xf32>
      %c0_18 = arith.constant 0 : index
      %c0_19 = arith.constant 0 : index
      %24 = vector.load %arg7[%c0_18, %c0_19] : memref<1x128xf32, #tpu.memory_space<vmem>>, vector<1x128xf32>
      %25 = vector.broadcast %24 : vector<1x128xf32> to vector<512x128xf32>
      %26 = arith.mulf %23, %25 : vector<512x128xf32>
      %27 = arith.truncf %26 : vector<512x128xf32> to vector<512x128xbf16>
      %c0_20 = arith.constant 0 : index
      %c0_21 = arith.constant 0 : index
      %28 = vector.load %arg8[%c0_20, %c0_21] : memref<512x128xbf16, #tpu.memory_space<vmem>>, vector<512x128xbf16>
      tpu.vector_store %arg8[%c0_20, %c0_21], %27 {strides = array<i32>} : memref<512x128xbf16, #tpu.memory_space<vmem>>, vector<512x128xbf16>,
    } else {
    }
    return
  }
  func.func @transform_0(%arg0: i32, %arg1: i32, %arg2: i32) -> (i32, i32) {
    %c0_i32 = arith.constant 0 : i32
    return %arg0, %arg2 : i32, i32
  }
  func.func @transform_1(%arg0: i32, %arg1: i32, %arg2: i32) -> (i32, i32) {
    %c0_i32 = arith.constant 0 : i32
    return %arg2, %arg1 : i32, i32
  }
  func.func @transform_2(%arg0: i32, %arg1: i32, %arg2: i32) -> (i32, i32) {
    %c0_i32 = arith.constant 0 : i32
    %c0_i32_0 = arith.constant 0 : i32
    return %c0_i32, %arg1 : i32, i32
  }
  func.func @transform_3(%arg0: i32, %arg1: i32, %arg2: i32) -> (i32, i32) {
    %c0_i32 = arith.constant 0 : i32
    %c0_i32_0 = arith.constant 0 : i32
    return %c0_i32, %arg1 : i32, i32
  }
  func.func @transform_4(%arg0: i32, %arg1: i32, %arg2: i32) -> (i32, i32) {
    %c0_i32 = arith.constant 0 : i32
    %c0_i32_0 = arith.constant 0 : i32
    return %c0_i32, %arg1 : i32, i32
  }
  func.func @transform_5(%arg0: i32, %arg1: i32, %arg2: i32) -> (i32, i32) {
    %c0_i32 = arith.constant 0 : i32
    return %arg0, %arg1 : i32, i32
  }
}

module attributes {stable_mosaic.version = 11 : i64} {
  func.func @_fused_conv_kernel(%arg0: i32, %arg1: i32, %arg2: i32, %arg3: memref<128x128xbf16, #tpu.memory_space<vmem>>, %arg4: memref<128x128xbf16, #tpu.memory_space<vmem>>, %arg5: memref<1x128xf32, #tpu.memory_space<vmem>>, %arg6: memref<1x128xf32, #tpu.memory_space<vmem>>, %arg7: memref<1x128xf32, #tpu.memory_space<vmem>>, %arg8: memref<128x128xbf16, #tpu.memory_space<vmem>>, %arg9: memref<128x128xf32, #tpu.memory_space<vmem>>) attributes {dimension_semantics = [#tpu.dimension_semantics<parallel>, #tpu.dimension_semantics<parallel>, #tpu.dimension_semantics<arbitrary>], iteration_bounds = array<i64: 1, 1, 1>, scalar_prefetch = 0 : i64, scratch_operands = 1 : i64, tpu.core_type = #tpu.core_type<tc>, window_params = [{transform_indices = @transform_0, window_bounds = array<i64: 128, 128>}, {transform_indices = @transform_1, window_bounds = array<i64: 128, 128>}, {transform_indices = @transform_2, window_bounds = array<i64: 1, 128>}, {transform_indices = @transform_3, window_bounds = array<i64: 1, 128>}, {transform_indices = @transform_4, window_bounds = array<i64: 1, 128>}, {transform_indices = @transform_5, window_bounds = array<i64: 128, 128>}]} {
    %c0_i32 = arith.constant 0 : i32
    %0 = arith.cmpi eq, %arg2, %c0_i32 : i32
    %1 = arith.extui %0 : i1 to i32
    %c0_i32_0 = arith.constant 0 : i32
    %2 = arith.cmpi ne, %1, %c0_i32_0 : i32
    scf.if %2 {
      %cst_10 = arith.constant 0.000000e+00 : f32
      %12 = vector.broadcast %cst_10 : f32 to vector<128x128xf32>
      %c0_11 = arith.constant 0 : index
      %c0_12 = arith.constant 0 : index
      %13 = vector.load %arg9[%c0_11, %c0_12] : memref<128x128xf32, #tpu.memory_space<vmem>>, vector<128x128xf32>
      tpu.vector_store %arg9[%c0_11, %c0_12], %12 {strides = array<i32>} : memref<128x128xf32, #tpu.memory_space<vmem>>, vector<128x128xf32>,
    } else {
    }
    %c0 = arith.constant 0 : index
    %c0_1 = arith.constant 0 : index
    %3 = vector.load %arg9[%c0, %c0_1] : memref<128x128xf32, #tpu.memory_space<vmem>>, vector<128x128xf32>
    %c0_2 = arith.constant 0 : index
    %c0_3 = arith.constant 0 : index
    %4 = vector.load %arg3[%c0_2, %c0_3] : memref<128x128xbf16, #tpu.memory_space<vmem>>, vector<128x128xbf16>
    %c0_4 = arith.constant 0 : index
    %c0_5 = arith.constant 0 : index
    %5 = vector.load %arg4[%c0_4, %c0_5] : memref<128x128xbf16, #tpu.memory_space<vmem>>, vector<128x128xbf16>
    %cst = arith.constant dense<0.000000e+00> : vector<128x128xf32>
    %6 = tpu.matmul %4, %5, %cst {dimension_numbers = #tpu.dot_dimension_numbers<[1], [0], [0], [1], [0, 0, 1, 1], [], []>} : vector<128x128xbf16>, vector<128x128xbf16>, vector<128x128xf32> -> vector<128x128xf32>
    %7 = arith.addf %3, %6 : vector<128x128xf32>
    %c0_6 = arith.constant 0 : index
    %c0_7 = arith.constant 0 : index
    %8 = vector.load %arg9[%c0_6, %c0_7] : memref<128x128xf32, #tpu.memory_space<vmem>>, vector<128x128xf32>
    tpu.vector_store %arg9[%c0_6, %c0_7], %7 {strides = array<i32>} : memref<128x128xf32, #tpu.memory_space<vmem>>, vector<128x128xf32>,
    %c0_i32_8 = arith.constant 0 : i32
    %9 = arith.cmpi eq, %arg2, %c0_i32_8 : i32
    %10 = arith.extui %9 : i1 to i32
    %c0_i32_9 = arith.constant 0 : i32
    %11 = arith.cmpi ne, %10, %c0_i32_9 : i32
    scf.if %11 {
      %c0_10 = arith.constant 0 : index
      %c0_11 = arith.constant 0 : index
      %12 = vector.load %arg9[%c0_10, %c0_11] : memref<128x128xf32, #tpu.memory_space<vmem>>, vector<128x128xf32>
      %c0_12 = arith.constant 0 : index
      %c0_13 = arith.constant 0 : index
      %13 = vector.load %arg5[%c0_12, %c0_13] : memref<1x128xf32, #tpu.memory_space<vmem>>, vector<1x128xf32>
      %14 = vector.broadcast %13 : vector<1x128xf32> to vector<128x128xf32>
      %15 = arith.mulf %12, %14 : vector<128x128xf32>
      %c0_14 = arith.constant 0 : index
      %c0_15 = arith.constant 0 : index
      %16 = vector.load %arg6[%c0_14, %c0_15] : memref<1x128xf32, #tpu.memory_space<vmem>>, vector<1x128xf32>
      %17 = vector.broadcast %16 : vector<1x128xf32> to vector<128x128xf32>
      %18 = arith.addf %15, %17 : vector<128x128xf32>
      %cst_16 = arith.constant 0.000000e+00 : f32
      %19 = vector.broadcast %cst_16 : f32 to vector<128x128xf32>
      %20 = arith.cmpf oge, %18, %19 : vector<128x128xf32>
      %cst_17 = arith.constant 2.000000e-01 : f32
      %21 = vector.broadcast %cst_17 : f32 to vector<128x128xf32>
      %22 = arith.mulf %21, %18 : vector<128x128xf32>
      %23 = arith.select %20, %18, %22 : vector<128x128xi1>, vector<128x128xf32>
      %c0_18 = arith.constant 0 : index
      %c0_19 = arith.constant 0 : index
      %24 = vector.load %arg7[%c0_18, %c0_19] : memref<1x128xf32, #tpu.memory_space<vmem>>, vector<1x128xf32>
      %25 = vector.broadcast %24 : vector<1x128xf32> to vector<128x128xf32>
      %26 = arith.mulf %23, %25 : vector<128x128xf32>
      %27 = arith.truncf %26 : vector<128x128xf32> to vector<128x128xbf16>
      %c0_20 = arith.constant 0 : index
      %c0_21 = arith.constant 0 : index
      %28 = vector.load %arg8[%c0_20, %c0_21] : memref<128x128xbf16, #tpu.memory_space<vmem>>, vector<128x128xbf16>
      tpu.vector_store %arg8[%c0_20, %c0_21], %27 {strides = array<i32>} : memref<128x128xbf16, #tpu.memory_space<vmem>>, vector<128x128xbf16>,
    } else {
    }
    return
  }
  func.func @transform_0(%arg0: i32, %arg1: i32, %arg2: i32) -> (i32, i32) {
    %c0_i32 = arith.constant 0 : i32
    return %arg0, %arg2 : i32, i32
  }
  func.func @transform_1(%arg0: i32, %arg1: i32, %arg2: i32) -> (i32, i32) {
    %c0_i32 = arith.constant 0 : i32
    return %arg2, %arg1 : i32, i32
  }
  func.func @transform_2(%arg0: i32, %arg1: i32, %arg2: i32) -> (i32, i32) {
    %c0_i32 = arith.constant 0 : i32
    %c0_i32_0 = arith.constant 0 : i32
    return %c0_i32, %arg1 : i32, i32
  }
  func.func @transform_3(%arg0: i32, %arg1: i32, %arg2: i32) -> (i32, i32) {
    %c0_i32 = arith.constant 0 : i32
    %c0_i32_0 = arith.constant 0 : i32
    return %c0_i32, %arg1 : i32, i32
  }
  func.func @transform_4(%arg0: i32, %arg1: i32, %arg2: i32) -> (i32, i32) {
    %c0_i32 = arith.constant 0 : i32
    %c0_i32_0 = arith.constant 0 : i32
    return %c0_i32, %arg1 : i32, i32
  }
  func.func @transform_5(%arg0: i32, %arg1: i32, %arg2: i32) -> (i32, i32) {
    %c0_i32 = arith.constant 0 : i32
    return %arg0, %arg1 : i32, i32
  }
}

module attributes {stable_mosaic.version = 11 : i64} {
  func.func @_fused_conv_kernel(%arg0: i32, %arg1: i32, %arg2: i32, %arg3: memref<32x512xbf16, #tpu.memory_space<vmem>>, %arg4: memref<512x128xbf16, #tpu.memory_space<vmem>>, %arg5: memref<1x128xf32, #tpu.memory_space<vmem>>, %arg6: memref<1x128xf32, #tpu.memory_space<vmem>>, %arg7: memref<1x128xf32, #tpu.memory_space<vmem>>, %arg8: memref<32x128xbf16, #tpu.memory_space<vmem>>, %arg9: memref<32x128xf32, #tpu.memory_space<vmem>>) attributes {dimension_semantics = [#tpu.dimension_semantics<parallel>, #tpu.dimension_semantics<parallel>, #tpu.dimension_semantics<arbitrary>], iteration_bounds = array<i64: 1, 1, 1>, scalar_prefetch = 0 : i64, scratch_operands = 1 : i64, tpu.core_type = #tpu.core_type<tc>, window_params = [{transform_indices = @transform_0, window_bounds = array<i64: 32, 512>}, {transform_indices = @transform_1, window_bounds = array<i64: 512, 128>}, {transform_indices = @transform_2, window_bounds = array<i64: 1, 128>}, {transform_indices = @transform_3, window_bounds = array<i64: 1, 128>}, {transform_indices = @transform_4, window_bounds = array<i64: 1, 128>}, {transform_indices = @transform_5, window_bounds = array<i64: 32, 128>}]} {
    %c0_i32 = arith.constant 0 : i32
    %0 = arith.cmpi eq, %arg2, %c0_i32 : i32
    %1 = arith.extui %0 : i1 to i32
    %c0_i32_0 = arith.constant 0 : i32
    %2 = arith.cmpi ne, %1, %c0_i32_0 : i32
    scf.if %2 {
      %cst_10 = arith.constant 0.000000e+00 : f32
      %12 = vector.broadcast %cst_10 : f32 to vector<32x128xf32>
      %c0_11 = arith.constant 0 : index
      %c0_12 = arith.constant 0 : index
      %13 = vector.load %arg9[%c0_11, %c0_12] : memref<32x128xf32, #tpu.memory_space<vmem>>, vector<32x128xf32>
      tpu.vector_store %arg9[%c0_11, %c0_12], %12 {strides = array<i32>} : memref<32x128xf32, #tpu.memory_space<vmem>>, vector<32x128xf32>,
    } else {
    }
    %c0 = arith.constant 0 : index
    %c0_1 = arith.constant 0 : index
    %3 = vector.load %arg9[%c0, %c0_1] : memref<32x128xf32, #tpu.memory_space<vmem>>, vector<32x128xf32>
    %c0_2 = arith.constant 0 : index
    %c0_3 = arith.constant 0 : index
    %4 = vector.load %arg3[%c0_2, %c0_3] : memref<32x512xbf16, #tpu.memory_space<vmem>>, vector<32x512xbf16>
    %c0_4 = arith.constant 0 : index
    %c0_5 = arith.constant 0 : index
    %5 = vector.load %arg4[%c0_4, %c0_5] : memref<512x128xbf16, #tpu.memory_space<vmem>>, vector<512x128xbf16>
    %cst = arith.constant dense<0.000000e+00> : vector<32x128xf32>
    %6 = tpu.matmul %4, %5, %cst {dimension_numbers = #tpu.dot_dimension_numbers<[1], [0], [0], [1], [0, 0, 1, 1], [], []>} : vector<32x512xbf16>, vector<512x128xbf16>, vector<32x128xf32> -> vector<32x128xf32>
    %7 = arith.addf %3, %6 : vector<32x128xf32>
    %c0_6 = arith.constant 0 : index
    %c0_7 = arith.constant 0 : index
    %8 = vector.load %arg9[%c0_6, %c0_7] : memref<32x128xf32, #tpu.memory_space<vmem>>, vector<32x128xf32>
    tpu.vector_store %arg9[%c0_6, %c0_7], %7 {strides = array<i32>} : memref<32x128xf32, #tpu.memory_space<vmem>>, vector<32x128xf32>,
    %c0_i32_8 = arith.constant 0 : i32
    %9 = arith.cmpi eq, %arg2, %c0_i32_8 : i32
    %10 = arith.extui %9 : i1 to i32
    %c0_i32_9 = arith.constant 0 : i32
    %11 = arith.cmpi ne, %10, %c0_i32_9 : i32
    scf.if %11 {
      %c0_10 = arith.constant 0 : index
      %c0_11 = arith.constant 0 : index
      %12 = vector.load %arg9[%c0_10, %c0_11] : memref<32x128xf32, #tpu.memory_space<vmem>>, vector<32x128xf32>
      %c0_12 = arith.constant 0 : index
      %c0_13 = arith.constant 0 : index
      %13 = vector.load %arg5[%c0_12, %c0_13] : memref<1x128xf32, #tpu.memory_space<vmem>>, vector<1x128xf32>
      %14 = vector.broadcast %13 : vector<1x128xf32> to vector<32x128xf32>
      %15 = arith.mulf %12, %14 : vector<32x128xf32>
      %c0_14 = arith.constant 0 : index
      %c0_15 = arith.constant 0 : index
      %16 = vector.load %arg6[%c0_14, %c0_15] : memref<1x128xf32, #tpu.memory_space<vmem>>, vector<1x128xf32>
      %17 = vector.broadcast %16 : vector<1x128xf32> to vector<32x128xf32>
      %18 = arith.addf %15, %17 : vector<32x128xf32>
      %cst_16 = arith.constant 0.000000e+00 : f32
      %19 = vector.broadcast %cst_16 : f32 to vector<32x128xf32>
      %20 = arith.cmpf oge, %18, %19 : vector<32x128xf32>
      %cst_17 = arith.constant 2.000000e-01 : f32
      %21 = vector.broadcast %cst_17 : f32 to vector<32x128xf32>
      %22 = arith.mulf %21, %18 : vector<32x128xf32>
      %23 = arith.select %20, %18, %22 : vector<32x128xi1>, vector<32x128xf32>
      %c0_18 = arith.constant 0 : index
      %c0_19 = arith.constant 0 : index
      %24 = vector.load %arg7[%c0_18, %c0_19] : memref<1x128xf32, #tpu.memory_space<vmem>>, vector<1x128xf32>
      %25 = vector.broadcast %24 : vector<1x128xf32> to vector<32x128xf32>
      %26 = arith.mulf %23, %25 : vector<32x128xf32>
      %27 = arith.truncf %26 : vector<32x128xf32> to vector<32x128xbf16>
      %c0_20 = arith.constant 0 : index
      %c0_21 = arith.constant 0 : index
      %28 = vector.load %arg8[%c0_20, %c0_21] : memref<32x128xbf16, #tpu.memory_space<vmem>>, vector<32x128xbf16>
      tpu.vector_store %arg8[%c0_20, %c0_21], %27 {strides = array<i32>} : memref<32x128xbf16, #tpu.memory_space<vmem>>, vector<32x128xbf16>,
    } else {
    }
    return
  }
  func.func @transform_0(%arg0: i32, %arg1: i32, %arg2: i32) -> (i32, i32) {
    %c0_i32 = arith.constant 0 : i32
    return %arg0, %arg2 : i32, i32
  }
  func.func @transform_1(%arg0: i32, %arg1: i32, %arg2: i32) -> (i32, i32) {
    %c0_i32 = arith.constant 0 : i32
    return %arg2, %arg1 : i32, i32
  }
  func.func @transform_2(%arg0: i32, %arg1: i32, %arg2: i32) -> (i32, i32) {
    %c0_i32 = arith.constant 0 : i32
    %c0_i32_0 = arith.constant 0 : i32
    return %c0_i32, %arg1 : i32, i32
  }
  func.func @transform_3(%arg0: i32, %arg1: i32, %arg2: i32) -> (i32, i32) {
    %c0_i32 = arith.constant 0 : i32
    %c0_i32_0 = arith.constant 0 : i32
    return %c0_i32, %arg1 : i32, i32
  }
  func.func @transform_4(%arg0: i32, %arg1: i32, %arg2: i32) -> (i32, i32) {
    %c0_i32 = arith.constant 0 : i32
    %c0_i32_0 = arith.constant 0 : i32
    return %c0_i32, %arg1 : i32, i32
  }
  func.func @transform_5(%arg0: i32, %arg1: i32, %arg2: i32) -> (i32, i32) {
    %c0_i32 = arith.constant 0 : i32
    return %arg0, %arg1 : i32, i32
  }
}

module attributes {stable_mosaic.version = 11 : i64} {
  func.func @_fused_conv_kernel(%arg0: i32, %arg1: i32, %arg2: i32, %arg3: memref<32x256xbf16, #tpu.memory_space<vmem>>, %arg4: memref<256x128xbf16, #tpu.memory_space<vmem>>, %arg5: memref<1x128xf32, #tpu.memory_space<vmem>>, %arg6: memref<1x128xf32, #tpu.memory_space<vmem>>, %arg7: memref<1x128xf32, #tpu.memory_space<vmem>>, %arg8: memref<32x128xbf16, #tpu.memory_space<vmem>>, %arg9: memref<32x128xf32, #tpu.memory_space<vmem>>) attributes {dimension_semantics = [#tpu.dimension_semantics<parallel>, #tpu.dimension_semantics<parallel>, #tpu.dimension_semantics<arbitrary>], iteration_bounds = array<i64: 1, 1, 1>, scalar_prefetch = 0 : i64, scratch_operands = 1 : i64, tpu.core_type = #tpu.core_type<tc>, window_params = [{transform_indices = @transform_0, window_bounds = array<i64: 32, 256>}, {transform_indices = @transform_1, window_bounds = array<i64: 256, 128>}, {transform_indices = @transform_2, window_bounds = array<i64: 1, 128>}, {transform_indices = @transform_3, window_bounds = array<i64: 1, 128>}, {transform_indices = @transform_4, window_bounds = array<i64: 1, 128>}, {transform_indices = @transform_5, window_bounds = array<i64: 32, 128>}]} {
    %c0_i32 = arith.constant 0 : i32
    %0 = arith.cmpi eq, %arg2, %c0_i32 : i32
    %1 = arith.extui %0 : i1 to i32
    %c0_i32_0 = arith.constant 0 : i32
    %2 = arith.cmpi ne, %1, %c0_i32_0 : i32
    scf.if %2 {
      %cst_10 = arith.constant 0.000000e+00 : f32
      %12 = vector.broadcast %cst_10 : f32 to vector<32x128xf32>
      %c0_11 = arith.constant 0 : index
      %c0_12 = arith.constant 0 : index
      %13 = vector.load %arg9[%c0_11, %c0_12] : memref<32x128xf32, #tpu.memory_space<vmem>>, vector<32x128xf32>
      tpu.vector_store %arg9[%c0_11, %c0_12], %12 {strides = array<i32>} : memref<32x128xf32, #tpu.memory_space<vmem>>, vector<32x128xf32>,
    } else {
    }
    %c0 = arith.constant 0 : index
    %c0_1 = arith.constant 0 : index
    %3 = vector.load %arg9[%c0, %c0_1] : memref<32x128xf32, #tpu.memory_space<vmem>>, vector<32x128xf32>
    %c0_2 = arith.constant 0 : index
    %c0_3 = arith.constant 0 : index
    %4 = vector.load %arg3[%c0_2, %c0_3] : memref<32x256xbf16, #tpu.memory_space<vmem>>, vector<32x256xbf16>
    %c0_4 = arith.constant 0 : index
    %c0_5 = arith.constant 0 : index
    %5 = vector.load %arg4[%c0_4, %c0_5] : memref<256x128xbf16, #tpu.memory_space<vmem>>, vector<256x128xbf16>
    %cst = arith.constant dense<0.000000e+00> : vector<32x128xf32>
    %6 = tpu.matmul %4, %5, %cst {dimension_numbers = #tpu.dot_dimension_numbers<[1], [0], [0], [1], [0, 0, 1, 1], [], []>} : vector<32x256xbf16>, vector<256x128xbf16>, vector<32x128xf32> -> vector<32x128xf32>
    %7 = arith.addf %3, %6 : vector<32x128xf32>
    %c0_6 = arith.constant 0 : index
    %c0_7 = arith.constant 0 : index
    %8 = vector.load %arg9[%c0_6, %c0_7] : memref<32x128xf32, #tpu.memory_space<vmem>>, vector<32x128xf32>
    tpu.vector_store %arg9[%c0_6, %c0_7], %7 {strides = array<i32>} : memref<32x128xf32, #tpu.memory_space<vmem>>, vector<32x128xf32>,
    %c0_i32_8 = arith.constant 0 : i32
    %9 = arith.cmpi eq, %arg2, %c0_i32_8 : i32
    %10 = arith.extui %9 : i1 to i32
    %c0_i32_9 = arith.constant 0 : i32
    %11 = arith.cmpi ne, %10, %c0_i32_9 : i32
    scf.if %11 {
      %c0_10 = arith.constant 0 : index
      %c0_11 = arith.constant 0 : index
      %12 = vector.load %arg9[%c0_10, %c0_11] : memref<32x128xf32, #tpu.memory_space<vmem>>, vector<32x128xf32>
      %c0_12 = arith.constant 0 : index
      %c0_13 = arith.constant 0 : index
      %13 = vector.load %arg5[%c0_12, %c0_13] : memref<1x128xf32, #tpu.memory_space<vmem>>, vector<1x128xf32>
      %14 = vector.broadcast %13 : vector<1x128xf32> to vector<32x128xf32>
      %15 = arith.mulf %12, %14 : vector<32x128xf32>
      %c0_14 = arith.constant 0 : index
      %c0_15 = arith.constant 0 : index
      %16 = vector.load %arg6[%c0_14, %c0_15] : memref<1x128xf32, #tpu.memory_space<vmem>>, vector<1x128xf32>
      %17 = vector.broadcast %16 : vector<1x128xf32> to vector<32x128xf32>
      %18 = arith.addf %15, %17 : vector<32x128xf32>
      %cst_16 = arith.constant 0.000000e+00 : f32
      %19 = vector.broadcast %cst_16 : f32 to vector<32x128xf32>
      %20 = arith.cmpf oge, %18, %19 : vector<32x128xf32>
      %cst_17 = arith.constant 2.000000e-01 : f32
      %21 = vector.broadcast %cst_17 : f32 to vector<32x128xf32>
      %22 = arith.mulf %21, %18 : vector<32x128xf32>
      %23 = arith.select %20, %18, %22 : vector<32x128xi1>, vector<32x128xf32>
      %c0_18 = arith.constant 0 : index
      %c0_19 = arith.constant 0 : index
      %24 = vector.load %arg7[%c0_18, %c0_19] : memref<1x128xf32, #tpu.memory_space<vmem>>, vector<1x128xf32>
      %25 = vector.broadcast %24 : vector<1x128xf32> to vector<32x128xf32>
      %26 = arith.mulf %23, %25 : vector<32x128xf32>
      %27 = arith.truncf %26 : vector<32x128xf32> to vector<32x128xbf16>
      %c0_20 = arith.constant 0 : index
      %c0_21 = arith.constant 0 : index
      %28 = vector.load %arg8[%c0_20, %c0_21] : memref<32x128xbf16, #tpu.memory_space<vmem>>, vector<32x128xbf16>
      tpu.vector_store %arg8[%c0_20, %c0_21], %27 {strides = array<i32>} : memref<32x128xbf16, #tpu.memory_space<vmem>>, vector<32x128xbf16>,
    } else {
    }
    return
  }
  func.func @transform_0(%arg0: i32, %arg1: i32, %arg2: i32) -> (i32, i32) {
    %c0_i32 = arith.constant 0 : i32
    return %arg0, %arg2 : i32, i32
  }
  func.func @transform_1(%arg0: i32, %arg1: i32, %arg2: i32) -> (i32, i32) {
    %c0_i32 = arith.constant 0 : i32
    return %arg2, %arg1 : i32, i32
  }
  func.func @transform_2(%arg0: i32, %arg1: i32, %arg2: i32) -> (i32, i32) {
    %c0_i32 = arith.constant 0 : i32
    %c0_i32_0 = arith.constant 0 : i32
    return %c0_i32, %arg1 : i32, i32
  }
  func.func @transform_3(%arg0: i32, %arg1: i32, %arg2: i32) -> (i32, i32) {
    %c0_i32 = arith.constant 0 : i32
    %c0_i32_0 = arith.constant 0 : i32
    return %c0_i32, %arg1 : i32, i32
  }
  func.func @transform_4(%arg0: i32, %arg1: i32, %arg2: i32) -> (i32, i32) {
    %c0_i32 = arith.constant 0 : i32
    %c0_i32_0 = arith.constant 0 : i32
    return %c0_i32, %arg1 : i32, i32
  }
  func.func @transform_5(%arg0: i32, %arg1: i32, %arg2: i32) -> (i32, i32) {
    %c0_i32 = arith.constant 0 : i32
    return %arg0, %arg1 : i32, i32
  }
}

module attributes {stable_mosaic.version = 11 : i64} {
  func.func @_fused_conv_kernel(%arg0: i32, %arg1: i32, %arg2: i32, %arg3: memref<16x512xbf16, #tpu.memory_space<vmem>>, %arg4: memref<512x128xbf16, #tpu.memory_space<vmem>>, %arg5: memref<1x128xf32, #tpu.memory_space<vmem>>, %arg6: memref<1x128xf32, #tpu.memory_space<vmem>>, %arg7: memref<1x128xf32, #tpu.memory_space<vmem>>, %arg8: memref<16x128xf32, #tpu.memory_space<vmem>>, %arg9: memref<16x128xf32, #tpu.memory_space<vmem>>) attributes {dimension_semantics = [#tpu.dimension_semantics<parallel>, #tpu.dimension_semantics<parallel>, #tpu.dimension_semantics<arbitrary>], iteration_bounds = array<i64: 1, 1, 2>, scalar_prefetch = 0 : i64, scratch_operands = 1 : i64, tpu.core_type = #tpu.core_type<tc>, window_params = [{transform_indices = @transform_0, window_bounds = array<i64: 16, 512>}, {transform_indices = @transform_1, window_bounds = array<i64: 512, 128>}, {transform_indices = @transform_2, window_bounds = array<i64: 1, 128>}, {transform_indices = @transform_3, window_bounds = array<i64: 1, 128>}, {transform_indices = @transform_4, window_bounds = array<i64: 1, 128>}, {transform_indices = @transform_5, window_bounds = array<i64: 16, 128>}]} {
    %c0_i32 = arith.constant 0 : i32
    %0 = arith.cmpi eq, %arg2, %c0_i32 : i32
    %1 = arith.extui %0 : i1 to i32
    %c0_i32_0 = arith.constant 0 : i32
    %2 = arith.cmpi ne, %1, %c0_i32_0 : i32
    scf.if %2 {
      %cst_9 = arith.constant 0.000000e+00 : f32
      %12 = vector.broadcast %cst_9 : f32 to vector<16x128xf32>
      %c0_10 = arith.constant 0 : index
      %c0_11 = arith.constant 0 : index
      %13 = vector.load %arg9[%c0_10, %c0_11] : memref<16x128xf32, #tpu.memory_space<vmem>>, vector<16x128xf32>
      tpu.vector_store %arg9[%c0_10, %c0_11], %12 {strides = array<i32>} : memref<16x128xf32, #tpu.memory_space<vmem>>, vector<16x128xf32>,
    } else {
    }
    %c0 = arith.constant 0 : index
    %c0_1 = arith.constant 0 : index
    %3 = vector.load %arg9[%c0, %c0_1] : memref<16x128xf32, #tpu.memory_space<vmem>>, vector<16x128xf32>
    %c0_2 = arith.constant 0 : index
    %c0_3 = arith.constant 0 : index
    %4 = vector.load %arg3[%c0_2, %c0_3] : memref<16x512xbf16, #tpu.memory_space<vmem>>, vector<16x512xbf16>
    %c0_4 = arith.constant 0 : index
    %c0_5 = arith.constant 0 : index
    %5 = vector.load %arg4[%c0_4, %c0_5] : memref<512x128xbf16, #tpu.memory_space<vmem>>, vector<512x128xbf16>
    %cst = arith.constant dense<0.000000e+00> : vector<16x128xf32>
    %6 = tpu.matmul %4, %5, %cst {dimension_numbers = #tpu.dot_dimension_numbers<[1], [0], [0], [1], [0, 0, 1, 1], [], []>} : vector<16x512xbf16>, vector<512x128xbf16>, vector<16x128xf32> -> vector<16x128xf32>
    %7 = arith.addf %3, %6 : vector<16x128xf32>
    %c0_6 = arith.constant 0 : index
    %c0_7 = arith.constant 0 : index
    %8 = vector.load %arg9[%c0_6, %c0_7] : memref<16x128xf32, #tpu.memory_space<vmem>>, vector<16x128xf32>
    tpu.vector_store %arg9[%c0_6, %c0_7], %7 {strides = array<i32>} : memref<16x128xf32, #tpu.memory_space<vmem>>, vector<16x128xf32>,
    %c1_i32 = arith.constant 1 : i32
    %9 = arith.cmpi eq, %arg2, %c1_i32 : i32
    %10 = arith.extui %9 : i1 to i32
    %c0_i32_8 = arith.constant 0 : i32
    %11 = arith.cmpi ne, %10, %c0_i32_8 : i32
    scf.if %11 {
      %c0_9 = arith.constant 0 : index
      %c0_10 = arith.constant 0 : index
      %12 = vector.load %arg9[%c0_9, %c0_10] : memref<16x128xf32, #tpu.memory_space<vmem>>, vector<16x128xf32>
      %c0_11 = arith.constant 0 : index
      %c0_12 = arith.constant 0 : index
      %13 = vector.load %arg5[%c0_11, %c0_12] : memref<1x128xf32, #tpu.memory_space<vmem>>, vector<1x128xf32>
      %14 = vector.broadcast %13 : vector<1x128xf32> to vector<16x128xf32>
      %15 = arith.mulf %12, %14 : vector<16x128xf32>
      %c0_13 = arith.constant 0 : index
      %c0_14 = arith.constant 0 : index
      %16 = vector.load %arg6[%c0_13, %c0_14] : memref<1x128xf32, #tpu.memory_space<vmem>>, vector<1x128xf32>
      %17 = vector.broadcast %16 : vector<1x128xf32> to vector<16x128xf32>
      %18 = arith.addf %15, %17 : vector<16x128xf32>
      %c0_15 = arith.constant 0 : index
      %c0_16 = arith.constant 0 : index
      %19 = vector.load %arg7[%c0_15, %c0_16] : memref<1x128xf32, #tpu.memory_space<vmem>>, vector<1x128xf32>
      %20 = vector.broadcast %19 : vector<1x128xf32> to vector<16x128xf32>
      %21 = arith.mulf %18, %20 : vector<16x128xf32>
      %c0_17 = arith.constant 0 : index
      %c0_18 = arith.constant 0 : index
      %22 = vector.load %arg8[%c0_17, %c0_18] : memref<16x128xf32, #tpu.memory_space<vmem>>, vector<16x128xf32>
      tpu.vector_store %arg8[%c0_17, %c0_18], %21 {strides = array<i32>} : memref<16x128xf32, #tpu.memory_space<vmem>>, vector<16x128xf32>,
    } else {
    }
    return
  }
  func.func @transform_0(%arg0: i32, %arg1: i32, %arg2: i32) -> (i32, i32) {
    %c0_i32 = arith.constant 0 : i32
    return %arg0, %arg2 : i32, i32
  }
  func.func @transform_1(%arg0: i32, %arg1: i32, %arg2: i32) -> (i32, i32) {
    %c0_i32 = arith.constant 0 : i32
    return %arg2, %arg1 : i32, i32
  }
  func.func @transform_2(%arg0: i32, %arg1: i32, %arg2: i32) -> (i32, i32) {
    %c0_i32 = arith.constant 0 : i32
    %c0_i32_0 = arith.constant 0 : i32
    return %c0_i32, %arg1 : i32, i32
  }
  func.func @transform_3(%arg0: i32, %arg1: i32, %arg2: i32) -> (i32, i32) {
    %c0_i32 = arith.constant 0 : i32
    %c0_i32_0 = arith.constant 0 : i32
    return %c0_i32, %arg1 : i32, i32
  }
  func.func @transform_4(%arg0: i32, %arg1: i32, %arg2: i32) -> (i32, i32) {
    %c0_i32 = arith.constant 0 : i32
    %c0_i32_0 = arith.constant 0 : i32
    return %c0_i32, %arg1 : i32, i32
  }
  func.func @transform_5(%arg0: i32, %arg1: i32, %arg2: i32) -> (i32, i32) {
    %c0_i32 = arith.constant 0 : i32
    return %arg0, %arg1 : i32, i32
  }
}

</mosaic_0001>

<llo_original>
// kernel: _lambda_.6
$region0: #{_lambda_.6}
  #allocation0 [shape = 'u32[]', space=smem, size = 0x4, offset = 0x4, fixed_abs, tag = 'smem constant byte address 0x4 - core index']
  #allocation1 [shape = 'u32[144,128]{1,0:T(1,128)}', space=vmem, size = 0x12000, scoped, tag = 'internal scratch']
  #allocation2 [shape = 'f32[128,128]{1,0:T(8,128)}', space=vmem, size = 0x10000, scoped, tag = 'scratch operand']
  %s0 = inlined_call_operand.vmem [shape: bf16[128,128], index: 0, kind: input, shape index: {}]
  %s1 = inlined_call_operand.vmem [shape: bf16[128,128], index: 1, kind: input, shape index: {}]
  %s2 = inlined_call_operand.vmem [shape: f32[1,128], index: 2, kind: input, shape index: {}]
  %s3 = inlined_call_operand.vmem [shape: f32[1,128], index: 3, kind: input, shape index: {}]
  %s4 = inlined_call_operand.vmem [shape: f32[1,128], index: 4, kind: input, shape index: {}]
  %s5 = inlined_call_operand.vmem [shape: bf16[128,128], index: 5, kind: output, shape index: {}]
  %s6 = sld [smem:[#allocation0]]
  $region38: #{_lambda_.6} parent=0
    _
  %s8 = ssub.s32 1, %s6
  %s9 = scalar_select 0, %s8, %s6
  // Predicated region
  $region2: #{_lambda_.6} parent=0 // pred_check
    _
  $region3: #{_lambda_.6} parent=0 // pred_check_branch
    %11 = sbr.rel (0) target = $region5
  $region4: #{_lambda_.6} parent=0 // pred_region
    _
  $region5: #{_lambda_.6} parent=0 // pred_fallthru
    _
  // Predicated region
  $region6: #{_lambda_.6} parent=0 // pred_check
    _
  $region7: #{_lambda_.6} parent=0 // pred_check_branch
    %13 = sbr.rel (0) target = $region9
  $region8: #{_lambda_.6} parent=0 // pred_region
    _
  $region9: #{_lambda_.6} parent=0 // pred_fallthru
    _
  // Predicated region
  $region10: #{_lambda_.6} parent=0 // pred_check
    _
  $region11: #{_lambda_.6} parent=0 // pred_check_branch
    %15 = sbr.rel (0) target = $region13
  $region12: #{_lambda_.6} parent=0 // pred_region
    _
  $region13: #{_lambda_.6} parent=0 // pred_fallthru
    _
  // Predicated region
  $region14: #{_lambda_.6} parent=0 // pred_check
    _
  $region15: #{_lambda_.6} parent=0 // pred_check_branch
    %17 = sbr.rel (0) target = $region17
  $region16: #{_lambda_.6} parent=0 // pred_region
    _
  $region17: #{_lambda_.6} parent=0 // pred_fallthru
    _
  // Predicated region
  $region18: #{_lambda_.6} parent=0 // pred_check
    _
  $region19: #{_lambda_.6} parent=0 // pred_check_branch
    %19 = sbr.rel (0) target = $region21
  $region20: #{_lambda_.6} parent=0 // pred_region
    _
  $region21: #{_lambda_.6} parent=0 // pred_fallthru
    _
  %p21 = scmp.eq.s32.totalorder 0, 0
  // Predicated region
  $region22: #{_lambda_.6} parent=0 // pred_check
    %p22 = pneg %p21
  $region23: #{_lambda_.6} parent=0 // pred_check_branch
    %24 = sbr.rel (%p22) target = $region25
  $region24: #{_lambda_.6} parent=0 // pred_region
    %25 = vst [vmem:[#allocation2] sm:$0xff] 0.0
    %26 = vst [vmem:[#allocation2 + $0x8] sm:$0xff] 0.0
    %27 = vst [vmem:[#allocation2 + $0x10] sm:$0xff] 0.0
    %28 = vst [vmem:[#allocation2 + $0x18] sm:$0xff] 0.0
    %29 = vst [vmem:[#allocation2 + $0x20] sm:$0xff] 0.0
    %30 = vst [vmem:[#allocation2 + $0x28] sm:$0xff] 0.0
    %31 = vst [vmem:[#allocation2 + $0x30] sm:$0xff] 0.0
    %32 = vst [vmem:[#allocation2 + $0x38] sm:$0xff] 0.0
    %33 = vst [vmem:[#allocation2 + $0x40] sm:$0xff] 0.0
    %34 = vst [vmem:[#allocation2 + $0x48] sm:$0xff] 0.0
    %35 = vst [vmem:[#allocation2 + $0x50] sm:$0xff] 0.0
    %36 = vst [vmem:[#allocation2 + $0x58] sm:$0xff] 0.0
    %37 = vst [vmem:[#allocation2 + $0x60] sm:$0xff] 0.0
    %38 = vst [vmem:[#allocation2 + $0x68] sm:$0xff] 0.0
    %39 = vst [vmem:[#allocation2 + $0x70] sm:$0xff] 0.0
    %40 = vst [vmem:[#allocation2 + $0x78] sm:$0xff] 0.0
  $region25: #{_lambda_.6} parent=0 // pred_fallthru
    _
  %v41 = vld [vmem:[#allocation2] sm:$0xff]
  %v42 = vld [vmem:[#allocation2 + $0x8] sm:$0xff]
  %v43 = vld [vmem:[#allocation2 + $0x10] sm:$0xff]
  %v44 = vld [vmem:[#allocation2 + $0x18] sm:$0xff]
  %v45 = vld [vmem:[#allocation2 + $0x20] sm:$0xff]
  %v46 = vld [vmem:[#allocation2 + $0x28] sm:$0xff]
  %v47 = vld [vmem:[#allocation2 + $0x30] sm:$0xff]
  %v48 = vld [vmem:[#allocation2 + $0x38] sm:$0xff]
  %v49 = vld [vmem:[#allocation2 + $0x40] sm:$0xff]
  %v50 = vld [vmem:[#allocation2 + $0x48] sm:$0xff]
  %v51 = vld [vmem:[#allocation2 + $0x50] sm:$0xff]
  %v52 = vld [vmem:[#allocation2 + $0x58] sm:$0xff]
  %v53 = vld [vmem:[#allocation2 + $0x60] sm:$0xff]
  %v54 = vld [vmem:[#allocation2 + $0x68] sm:$0xff]
  %v55 = vld [vmem:[#allocation2 + $0x70] sm:$0xff]
  %v56 = vld [vmem:[#allocation2 + $0x78] sm:$0xff]
  %v57 = vld [vmem:[%s0] sm:$0xf]
  %v58 = vld [vmem:[%s0 + $0x4] sm:$0xf]
  %v59 = vld [vmem:[%s0 + $0x8] sm:$0xf]
  %v60 = vld [vmem:[%s0 + $0xc] sm:$0xf]
  %v61 = vld [vmem:[%s0 + $0x10] sm:$0xf]
  %v62 = vld [vmem:[%s0 + $0x14] sm:$0xf]
  %v63 = vld [vmem:[%s0 + $0x18] sm:$0xf]
  %v64 = vld [vmem:[%s0 + $0x1c] sm:$0xf]
  %v65 = vld [vmem:[%s0 + $0x20] sm:$0xf]
  %v66 = vld [vmem:[%s0 + $0x24] sm:$0xf]
  %v67 = vld [vmem:[%s0 + $0x28] sm:$0xf]
  %v68 = vld [vmem:[%s0 + $0x2c] sm:$0xf]
  %v69 = vld [vmem:[%s0 + $0x30] sm:$0xf]
  %v70 = vld [vmem:[%s0 + $0x34] sm:$0xf]
  %v71 = vld [vmem:[%s0 + $0x38] sm:$0xf]
  %v72 = vld [vmem:[%s0 + $0x3c] sm:$0xf]
  %v73 = vld [vmem:[%s1] sm:$0xf]
  %v74 = vld [vmem:[%s1 + $0x4] sm:$0xf]
  %v75 = vld [vmem:[%s1 + $0x8] sm:$0xf]
  %v76 = vld [vmem:[%s1 + $0xc] sm:$0xf]
  %v77 = vld [vmem:[%s1 + $0x10] sm:$0xf]
  %v78 = vld [vmem:[%s1 + $0x14] sm:$0xf]
  %v79 = vld [vmem:[%s1 + $0x18] sm:$0xf]
  %v80 = vld [vmem:[%s1 + $0x1c] sm:$0xf]
  %v81 = vld [vmem:[%s1 + $0x20] sm:$0xf]
  %v82 = vld [vmem:[%s1 + $0x24] sm:$0xf]
  %v83 = vld [vmem:[%s1 + $0x28] sm:$0xf]
  %v84 = vld [vmem:[%s1 + $0x2c] sm:$0xf]
  %v85 = vld [vmem:[%s1 + $0x30] sm:$0xf]
  %v86 = vld [vmem:[%s1 + $0x34] sm:$0xf]
  %v87 = vld [vmem:[%s1 + $0x38] sm:$0xf]
  %v88 = vld [vmem:[%s1 + $0x3c] sm:$0xf]
  %v105 = vunpack.c.l.b16 %v57
  %v106 = vunpack.c.l.b16 %v58
  %v107 = vunpack.c.l.b16 %v59
  %v108 = vunpack.c.l.b16 %v60
  %v109 = vunpack.c.l.b16 %v61
  %v110 = vunpack.c.l.b16 %v62
  %v111 = vunpack.c.l.b16 %v63
  %v112 = vunpack.c.l.b16 %v64
  %v113 = vunpack.c.l.b16 %v65
  %v114 = vunpack.c.l.b16 %v66
  %v115 = vunpack.c.l.b16 %v67
  %v116 = vunpack.c.l.b16 %v68
  %v117 = vunpack.c.l.b16 %v69
  %v118 = vunpack.c.l.b16 %v70
  %v119 = vunpack.c.l.b16 %v71
  %v120 = vunpack.c.l.b16 %v72
  %v121 = vpack.c.b16 %v106, %v105
  %v122 = vpack.c.b16 %v108, %v107
  %v123 = vpack.c.b16 %v110, %v109
  %v124 = vpack.c.b16 %v112, %v111
  %v125 = vpack.c.b16 %v114, %v113
  %v126 = vpack.c.b16 %v116, %v115
  %v127 = vpack.c.b16 %v118, %v117
  %v128 = vpack.c.b16 %v120, %v119
  %v153 = vunpack.c.l.b16 %v73
  %v154 = vunpack.c.l.b16 %v74
  %v155 = vunpack.c.l.b16 %v75
  %v156 = vunpack.c.l.b16 %v76
  %v157 = vunpack.c.l.b16 %v77
  %v158 = vunpack.c.l.b16 %v78
  %v159 = vunpack.c.l.b16 %v79
  %v160 = vunpack.c.l.b16 %v80
  %v161 = vunpack.c.l.b16 %v81
  %v162 = vunpack.c.l.b16 %v82
  %v163 = vunpack.c.l.b16 %v83
  %v164 = vunpack.c.l.b16 %v84
  %v165 = vunpack.c.l.b16 %v85
  %v166 = vunpack.c.l.b16 %v86
  %v167 = vunpack.c.l.b16 %v87
  %v168 = vunpack.c.l.b16 %v88
  %v169 = vpack.c.b16 %v154, %v153
  %v170 = vpack.c.b16 %v156, %v155
  %v171 = vpack.c.b16 %v158, %v157
  %v172 = vpack.c.b16 %v160, %v159
  %v173 = vpack.c.b16 %v162, %v161
  %v174 = vpack.c.b16 %v164, %v163
  %v175 = vpack.c.b16 %v166, %v165
  %v176 = vpack.c.b16 %v168, %v167
  %185 = vmatprep.subr.bf16.mxu0 0
  %186 = vmatpush1.bf16.msra.mxu0 %v176
  %187 = vmatprep.subr.bf16.mxu0 0
  %188 = vmatpush1.bf16.msra.mxu0 %v175
  %189 = vmatprep.subr.bf16.mxu0 0
  %190 = vmatpush1.bf16.msra.mxu0 %v174
  %191 = vmatprep.subr.bf16.mxu0 0
  %192 = vmatpush1.bf16.msra.mxu0 %v173
  %193 = vmatprep.subr.bf16.mxu0 0
  %194 = vmatpush1.bf16.msra.mxu0 %v172
  %195 = vmatprep.subr.bf16.mxu0 0
  %196 = vmatpush1.bf16.msra.mxu0 %v171
  %197 = vmatprep.subr.bf16.mxu0 0
  %198 = vmatpush1.bf16.msra.mxu0 %v170
  %199 = vmatprep.subr.bf16.mxu0 0
  %200 = vmatpush1.bf16.msra.mxu0 %v169
  %201 = vmatprep.subr.bf16.mxu0 0
  %202 = vmatpush2.bf16.msra.mxu0 0
  %203 = vmatprep.subr.bf16.mxu0 0
  %204 = vmatpush2.bf16.msra.mxu0 0
  %205 = vmatprep.subr.bf16.mxu0 0
  %206 = vmatpush2.bf16.msra.mxu0 0
  %207 = vmatprep.subr.bf16.mxu0 0
  %208 = vmatpush2.bf16.msra.mxu0 0
  %209 = vmatprep.subr.bf16.mxu0 0
  %210 = vmatpush2.bf16.msra.mxu0 0
  %211 = vmatprep.subr.bf16.mxu0 0
  %212 = vmatpush2.bf16.msra.mxu0 0
  %213 = vmatprep.subr.bf16.mxu0 0
  %214 = vmatpush2.bf16.msra.mxu0 0
  %215 = vmatprep.subr.bf16.mxu0 0
  %216 = vmatpush2.bf16.msra.mxu0 0
  %217 = vmatprep.mubr.bf16.mxu0 0
  %218 = vmatmul.mubr.bf16.gmra.mxu0 %v121
  %v219 = vpop.f32.mrf.mxu0
  %v220 = vadd.f32 0.0, %v219
  %v221 = vpop.f32.mrf.mxu0
  %v222 = vpop.f32.mrf.mxu0
  %v223 = vadd.f32 0.0, %v222
  %v224 = vpop.f32.mrf.mxu0
  %225 = vmatprep.mubr.bf16.mxu0 0
  %226 = vmatmul.mubr.bf16.gmra.mxu0 %v122
  %v227 = vpop.f32.mrf.mxu0
  %v228 = vadd.f32 0.0, %v227
  %v229 = vpop.f32.mrf.mxu0
  %v230 = vpop.f32.mrf.mxu0
  %v231 = vadd.f32 0.0, %v230
  %v232 = vpop.f32.mrf.mxu0
  %233 = vmatprep.mubr.bf16.mxu0 0
  %234 = vmatmul.mubr.bf16.gmra.mxu0 %v123
  %v235 = vpop.f32.mrf.mxu0
  %v236 = vadd.f32 0.0, %v235
  %v237 = vpop.f32.mrf.mxu0
  %v238 = vpop.f32.mrf.mxu0
  %v239 = vadd.f32 0.0, %v238
  %v240 = vpop.f32.mrf.mxu0
  %241 = vmatprep.mubr.bf16.mxu0 0
  %242 = vmatmul.mubr.bf16.gmra.mxu0 %v124
  %v243 = vpop.f32.mrf.mxu0
  %v244 = vadd.f32 0.0, %v243
  %v245 = vpop.f32.mrf.mxu0
  %v246 = vpop.f32.mrf.mxu0
  %v247 = vadd.f32 0.0, %v246
  %v248 = vpop.f32.mrf.mxu0
  %249 = vmatprep.mubr.bf16.mxu0 0
  %250 = vmatmul.mubr.bf16.gmra.mxu0 %v125
  %v251 = vpop.f32.mrf.mxu0
  %v252 = vadd.f32 0.0, %v251
  %v253 = vpop.f32.mrf.mxu0
  %v254 = vpop.f32.mrf.mxu0
  %v255 = vadd.f32 0.0, %v254
  %v256 = vpop.f32.mrf.mxu0
  %257 = vmatprep.mubr.bf16.mxu0 0
  %258 = vmatmul.mubr.bf16.gmra.mxu0 %v126
  %v259 = vpop.f32.mrf.mxu0
  %v260 = vadd.f32 0.0, %v259
  %v261 = vpop.f32.mrf.mxu0
  %v262 = vpop.f32.mrf.mxu0
  %v263 = vadd.f32 0.0, %v262
  %v264 = vpop.f32.mrf.mxu0
  %265 = vmatprep.mubr.bf16.mxu0 0
  %266 = vmatmul.mubr.bf16.gmra.mxu0 %v127
  %v267 = vpop.f32.mrf.mxu0
  %v268 = vadd.f32 0.0, %v267
  %v269 = vpop.f32.mrf.mxu0
  %v270 = vpop.f32.mrf.mxu0
  %v271 = vadd.f32 0.0, %v270
  %v272 = vpop.f32.mrf.mxu0
  %273 = vmatprep.mubr.bf16.mxu0 0
  %274 = vmatmul.mubr.bf16.gmra.mxu0 %v128
  %v275 = vpop.f32.mrf.mxu0
  %v276 = vadd.f32 0.0, %v275
  %v277 = vpop.f32.mrf.mxu0
  %v278 = vpop.f32.mrf.mxu0
  %v279 = vadd.f32 0.0, %v278
  %v280 = vpop.f32.mrf.mxu0
  %281 = vdwg.mxu0
  %v282 = vadd.f32 %v41, %v220
  %v283 = vadd.f32 %v42, %v223
  %v284 = vadd.f32 %v43, %v228
  %v285 = vadd.f32 %v44, %v231
  %v286 = vadd.f32 %v45, %v236
  %v287 = vadd.f32 %v46, %v239
  %v288 = vadd.f32 %v47, %v244
  %v289 = vadd.f32 %v48, %v247
  %v290 = vadd.f32 %v49, %v252
  %v291 = vadd.f32 %v50, %v255
  %v292 = vadd.f32 %v51, %v260
  %v293 = vadd.f32 %v52, %v263
  %v294 = vadd.f32 %v53, %v268
  %v295 = vadd.f32 %v54, %v271
  %v296 = vadd.f32 %v55, %v276
  %v297 = vadd.f32 %v56, %v279
  %298 = vst [vmem:[#allocation2] sm:$0xff] %v282
  %299 = vst [vmem:[#allocation2 + $0x8] sm:$0xff] %v283
  %300 = vst [vmem:[#allocation2 + $0x10] sm:$0xff] %v284
  %301 = vst [vmem:[#allocation2 + $0x18] sm:$0xff] %v285
  %302 = vst [vmem:[#allocation2 + $0x20] sm:$0xff] %v286
  %303 = vst [vmem:[#allocation2 + $0x28] sm:$0xff] %v287
  %304 = vst [vmem:[#allocation2 + $0x30] sm:$0xff] %v288
  %305 = vst [vmem:[#allocation2 + $0x38] sm:$0xff] %v289
  %306 = vst [vmem:[#allocation2 + $0x40] sm:$0xff] %v290
  %307 = vst [vmem:[#allocation2 + $0x48] sm:$0xff] %v291
  %308 = vst [vmem:[#allocation2 + $0x50] sm:$0xff] %v292
  %309 = vst [vmem:[#allocation2 + $0x58] sm:$0xff] %v293
  %310 = vst [vmem:[#allocation2 + $0x60] sm:$0xff] %v294
  %311 = vst [vmem:[#allocation2 + $0x68] sm:$0xff] %v295
  %312 = vst [vmem:[#allocation2 + $0x70] sm:$0xff] %v296
  %313 = vst [vmem:[#allocation2 + $0x78] sm:$0xff] %v297
  // Predicated region
  $region26: #{_lambda_.6} parent=0 // pred_check
    %p314 = pneg %p21
  $region27: #{_lambda_.6} parent=0 // pred_check_branch
    %316 = sbr.rel (%p314) target = $region29
  $region28: #{_lambda_.6} parent=0 // pred_region
    %v317 = vld [vmem:[#allocation2] sm:$0xff]
    %v318 = vld [vmem:[#allocation2 + $0x8] sm:$0xff]
    %v319 = vld [vmem:[#allocation2 + $0x10] sm:$0xff]
    %v320 = vld [vmem:[#allocation2 + $0x18] sm:$0xff]
    %v321 = vld [vmem:[#allocation2 + $0x20] sm:$0xff]
    %v322 = vld [vmem:[#allocation2 + $0x28] sm:$0xff]
    %v323 = vld [vmem:[#allocation2 + $0x30] sm:$0xff]
    %v324 = vld [vmem:[#allocation2 + $0x38] sm:$0xff]
    %v325 = vld [vmem:[#allocation2 + $0x40] sm:$0xff]
    %v326 = vld [vmem:[#allocation2 + $0x48] sm:$0xff]
    %v327 = vld [vmem:[#allocation2 + $0x50] sm:$0xff]
    %v328 = vld [vmem:[#allocation2 + $0x58] sm:$0xff]
    %v329 = vld [vmem:[#allocation2 + $0x60] sm:$0xff]
    %v330 = vld [vmem:[#allocation2 + $0x68] sm:$0xff]
    %v331 = vld [vmem:[#allocation2 + $0x70] sm:$0xff]
    %v332 = vld [vmem:[#allocation2 + $0x78] sm:$0xff]
    %v333 = vld [vmem:[%s2] sm:$0x1]
    %v335 = vlaneseq
    %v336 = vshrl.u32 %v335, 7
    %v337 = vsub.s32 0, %v336
    %v338 = vrot.slane %v333, %v337
    %v340 = vmul.f32 %v317, %v338
    %v341 = vmul.f32 %v318, %v338
    %v342 = vmul.f32 %v319, %v338
    %v343 = vmul.f32 %v320, %v338
    %v344 = vmul.f32 %v321, %v338
    %v345 = vmul.f32 %v322, %v338
    %v346 = vmul.f32 %v323, %v338
    %v347 = vmul.f32 %v324, %v338
    %v348 = vmul.f32 %v325, %v338
    %v349 = vmul.f32 %v326, %v338
    %v350 = vmul.f32 %v327, %v338
    %v351 = vmul.f32 %v328, %v338
    %v352 = vmul.f32 %v329, %v338
    %v353 = vmul.f32 %v330, %v338
    %v354 = vmul.f32 %v331, %v338
    %v355 = vmul.f32 %v332, %v338
    %v356 = vld [vmem:[%s3] sm:$0x1]
    %v358 = vlaneseq
    %v359 = vshrl.u32 %v358, 7
    %v360 = vsub.s32 0, %v359
    %v361 = vrot.slane %v356, %v360
    %v363 = vadd.f32 %v340, %v361
    %v364 = vadd.f32 %v341, %v361
    %v365 = vadd.f32 %v342, %v361
    %v366 = vadd.f32 %v343, %v361
    %v367 = vadd.f32 %v344, %v361
    %v368 = vadd.f32 %v345, %v361
    %v369 = vadd.f32 %v346, %v361
    %v370 = vadd.f32 %v347, %v361
    %v371 = vadd.f32 %v348, %v361
    %v372 = vadd.f32 %v349, %v361
    %v373 = vadd.f32 %v350, %v361
    %v374 = vadd.f32 %v351, %v361
    %v375 = vadd.f32 %v352, %v361
    %v376 = vadd.f32 %v353, %v361
    %v377 = vadd.f32 %v354, %v361
    %v378 = vadd.f32 %v355, %v361
    %vm379 = vcmp.ge.f32.partialorder %v363, 0.0
    %vm380 = vcmp.ge.f32.partialorder %v364, 0.0
    %vm381 = vcmp.ge.f32.partialorder %v365, 0.0
    %vm382 = vcmp.ge.f32.partialorder %v366, 0.0
    %vm383 = vcmp.ge.f32.partialorder %v367, 0.0
    %vm384 = vcmp.ge.f32.partialorder %v368, 0.0
    %vm385 = vcmp.ge.f32.partialorder %v369, 0.0
    %vm386 = vcmp.ge.f32.partialorder %v370, 0.0
    %vm387 = vcmp.ge.f32.partialorder %v371, 0.0
    %vm388 = vcmp.ge.f32.partialorder %v372, 0.0
    %vm389 = vcmp.ge.f32.partialorder %v373, 0.0
    %vm390 = vcmp.ge.f32.partialorder %v374, 0.0
    %vm391 = vcmp.ge.f32.partialorder %v375, 0.0
    %vm392 = vcmp.ge.f32.partialorder %v376, 0.0
    %vm393 = vcmp.ge.f32.partialorder %v377, 0.0
    %vm394 = vcmp.ge.f32.partialorder %v378, 0.0
    %v395 = vmul.f32 %v363, 0.2
    %v396 = vmul.f32 %v364, 0.2
    %v397 = vmul.f32 %v365, 0.2
    %v398 = vmul.f32 %v366, 0.2
    %v399 = vmul.f32 %v367, 0.2
    %v400 = vmul.f32 %v368, 0.2
    %v401 = vmul.f32 %v369, 0.2
    %v402 = vmul.f32 %v370, 0.2
    %v403 = vmul.f32 %v371, 0.2
    %v404 = vmul.f32 %v372, 0.2
    %v405 = vmul.f32 %v373, 0.2
    %v406 = vmul.f32 %v374, 0.2
    %v407 = vmul.f32 %v375, 0.2
    %v408 = vmul.f32 %v376, 0.2
    %v409 = vmul.f32 %v377, 0.2
    %v410 = vmul.f32 %v378, 0.2
    %v411 = vsel %vm379, %v363, %v395
    %v412 = vsel %vm380, %v364, %v396
    %v413 = vsel %vm381, %v365, %v397
    %v414 = vsel %vm382, %v366, %v398
    %v415 = vsel %vm383, %v367, %v399
    %v416 = vsel %vm384, %v368, %v400
    %v417 = vsel %vm385, %v369, %v401
    %v418 = vsel %vm386, %v370, %v402
    %v419 = vsel %vm387, %v371, %v403
    %v420 = vsel %vm388, %v372, %v404
    %v421 = vsel %vm389, %v373, %v405
    %v422 = vsel %vm390, %v374, %v406
    %v423 = vsel %vm391, %v375, %v407
    %v424 = vsel %vm392, %v376, %v408
    %v425 = vsel %vm393, %v377, %v409
    %v426 = vsel %vm394, %v378, %v410
    %v427 = vld [vmem:[%s4] sm:$0x1]
    %v429 = vlaneseq
    %v430 = vshrl.u32 %v429, 7
    %v431 = vsub.s32 0, %v430
    %v432 = vrot.slane %v427, %v431
    %v434 = vmul.f32 %v411, %v432
    %v435 = vmul.f32 %v412, %v432
    %v436 = vmul.f32 %v413, %v432
    %v437 = vmul.f32 %v414, %v432
    %v438 = vmul.f32 %v415, %v432
    %v439 = vmul.f32 %v416, %v432
    %v440 = vmul.f32 %v417, %v432
    %v441 = vmul.f32 %v418, %v432
    %v442 = vmul.f32 %v419, %v432
    %v443 = vmul.f32 %v420, %v432
    %v444 = vmul.f32 %v421, %v432
    %v445 = vmul.f32 %v422, %v432
    %v446 = vmul.f32 %v423, %v432
    %v447 = vmul.f32 %v424, %v432
    %v448 = vmul.f32 %v425, %v432
    %v449 = vmul.f32 %v426, %v432
    %v450 = vpack.c.bf16 %v435, %v434
    %v451 = vpack.c.bf16 %v437, %v436
    %v452 = vpack.c.bf16 %v439, %v438
    %v453 = vpack.c.bf16 %v441, %v440
    %v454 = vpack.c.bf16 %v443, %v442
    %v455 = vpack.c.bf16 %v445, %v444
    %v456 = vpack.c.bf16 %v447, %v446
    %v457 = vpack.c.bf16 %v449, %v448
    %v466 = vunpack.c.l.b16 %v450
    %v467 = vunpack.c.h.b16 %v450
    %v468 = vunpack.c.l.b16 %v451
    %v469 = vunpack.c.h.b16 %v451
    %v470 = vunpack.c.l.b16 %v452
    %v471 = vunpack.c.h.b16 %v452
    %v472 = vunpack.c.l.b16 %v453
    %v473 = vunpack.c.h.b16 %v453
    %v474 = vunpack.c.l.b16 %v454
    %v475 = vunpack.c.h.b16 %v454
    %v476 = vunpack.c.l.b16 %v455
    %v477 = vunpack.c.h.b16 %v455
    %v478 = vunpack.c.l.b16 %v456
    %v479 = vunpack.c.h.b16 %v456
    %v480 = vunpack.c.l.b16 %v457
    %v481 = vunpack.c.h.b16 %v457
    %v482 = vpack.c.b16 %v466, %v466
    %v483 = vpack.c.b16 %v467, %v467
    %v484 = vpack.c.b16 %v468, %v468
    %v485 = vpack.c.b16 %v469, %v469
    %v486 = vpack.c.b16 %v470, %v470
    %v487 = vpack.c.b16 %v471, %v471
    %v488 = vpack.c.b16 %v472, %v472
    %v489 = vpack.c.b16 %v473, %v473
    %v490 = vpack.c.b16 %v474, %v474
    %v491 = vpack.c.b16 %v475, %v475
    %v492 = vpack.c.b16 %v476, %v476
    %v493 = vpack.c.b16 %v477, %v477
    %v494 = vpack.c.b16 %v478, %v478
    %v495 = vpack.c.b16 %v479, %v479
    %v496 = vpack.c.b16 %v480, %v480
    %v497 = vpack.c.b16 %v481, %v481
    %514 = vst [vmem:[%s5] sm:$0xf] %v482
    %515 = vst [vmem:[%s5 + $0x4] sm:$0xf] %v483
    %516 = vst [vmem:[%s5 + $0x8] sm:$0xf] %v484
    %517 = vst [vmem:[%s5 + $0xc] sm:$0xf] %v485
    %518 = vst [vmem:[%s5 + $0x10] sm:$0xf] %v486
    %519 = vst [vmem:[%s5 + $0x14] sm:$0xf] %v487
    %520 = vst [vmem:[%s5 + $0x18] sm:$0xf] %v488
    %521 = vst [vmem:[%s5 + $0x1c] sm:$0xf] %v489
    %522 = vst [vmem:[%s5 + $0x20] sm:$0xf] %v490
    %523 = vst [vmem:[%s5 + $0x24] sm:$0xf] %v491
    %524 = vst [vmem:[%s5 + $0x28] sm:$0xf] %v492
    %525 = vst [vmem:[%s5 + $0x2c] sm:$0xf] %v493
    %526 = vst [vmem:[%s5 + $0x30] sm:$0xf] %v494
    %527 = vst [vmem:[%s5 + $0x34] sm:$0xf] %v495
    %528 = vst [vmem:[%s5 + $0x38] sm:$0xf] %v496
    %529 = vst [vmem:[%s5 + $0x3c] sm:$0xf] %v497
  $region29: #{_lambda_.6} parent=0 // pred_fallthru
    _
  // Predicated region
  $region30: #{_lambda_.6} parent=0 // pred_check
    _
  $region31: #{_lambda_.6} parent=0 // pred_check_branch
    %531 = sbr.rel (0) target = $region33
  $region32: #{_lambda_.6} parent=0 // pred_region
    _
  $region33: #{_lambda_.6} parent=0 // pred_fallthru
    _
  // Predicated region
  $region34: #{_lambda_.6} parent=0 // pred_check
    _
  $region35: #{_lambda_.6} parent=0 // pred_check_branch
    %533 = sbr.rel (0) target = $region37
  $region36: #{_lambda_.6} parent=0 // pred_region
    _
  $region37: #{_lambda_.6} parent=0 // pred_fallthru
    _

// kernel: _lambda_.5
$region0: #{_lambda_.5}
  #allocation0 [shape = 'u32[]', space=smem, size = 0x4, offset = 0x4, fixed_abs, tag = 'smem constant byte address 0x4 - core index']
  #allocation1 [shape = 'u32[144,128]{1,0:T(1,128)}', space=vmem, size = 0x12000, scoped, tag = 'internal scratch']
  #allocation2 [shape = 'f32[512,128]{1,0:T(8,128)}', space=vmem, size = 0x40000, scoped, tag = 'scratch operand']
  %s0 = inlined_call_operand.vmem [shape: bf16[512,128], index: 0, kind: input, shape index: {}]
  %s1 = inlined_call_operand.vmem [shape: bf16[128,128], index: 1, kind: input, shape index: {}]
  %s2 = inlined_call_operand.vmem [shape: f32[1,128], index: 2, kind: input, shape index: {}]
  %s3 = inlined_call_operand.vmem [shape: f32[1,128], index: 3, kind: input, shape index: {}]
  %s4 = inlined_call_operand.vmem [shape: f32[1,128], index: 4, kind: input, shape index: {}]
  %s5 = inlined_call_operand.vmem [shape: bf16[512,128], index: 5, kind: output, shape index: {}]
  %s6 = sld [smem:[#allocation0]]
  $region38: #{_lambda_.5} parent=0
    _
  %s8 = ssub.s32 1, %s6
  %s9 = scalar_select 0, %s8, %s6
  // Predicated region
  $region2: #{_lambda_.5} parent=0 // pred_check
    _
  $region3: #{_lambda_.5} parent=0 // pred_check_branch
    %11 = sbr.rel (0) target = $region5
  $region4: #{_lambda_.5} parent=0 // pred_region
    _
  $region5: #{_lambda_.5} parent=0 // pred_fallthru
    _
  // Predicated region
  $region6: #{_lambda_.5} parent=0 // pred_check
    _
  $region7: #{_lambda_.5} parent=0 // pred_check_branch
    %13 = sbr.rel (0) target = $region9
  $region8: #{_lambda_.5} parent=0 // pred_region
    _
  $region9: #{_lambda_.5} parent=0 // pred_fallthru
    _
  // Predicated region
  $region10: #{_lambda_.5} parent=0 // pred_check
    _
  $region11: #{_lambda_.5} parent=0 // pred_check_branch
    %15 = sbr.rel (0) target = $region13
  $region12: #{_lambda_.5} parent=0 // pred_region
    _
  $region13: #{_lambda_.5} parent=0 // pred_fallthru
    _
  // Predicated region
  $region14: #{_lambda_.5} parent=0 // pred_check
    _
  $region15: #{_lambda_.5} parent=0 // pred_check_branch
    %17 = sbr.rel (0) target = $region17
  $region16: #{_lambda_.5} parent=0 // pred_region
    _
  $region17: #{_lambda_.5} parent=0 // pred_fallthru
    _
  // Predicated region
  $region18: #{_lambda_.5} parent=0 // pred_check
    _
  $region19: #{_lambda_.5} parent=0 // pred_check_branch
    %19 = sbr.rel (0) target = $region21
  $region20: #{_lambda_.5} parent=0 // pred_region
    _
  $region21: #{_lambda_.5} parent=0 // pred_fallthru
    _
  %p21 = scmp.eq.s32.totalorder 0, 0
  // Predicated region
  $region22: #{_lambda_.5} parent=0 // pred_check
    %p22 = pneg %p21
  $region23: #{_lambda_.5} parent=0 // pred_check_branch
    %24 = sbr.rel (%p22) target = $region25
  $region24: #{_lambda_.5} parent=0 // pred_region
    %25 = vst [vmem:[#allocation2] sm:$0xff] 0.0
    %26 = vst [vmem:[#allocation2 + $0x8] sm:$0xff] 0.0
    %27 = vst [vmem:[#allocation2 + $0x10] sm:$0xff] 0.0
    %28 = vst [vmem:[#allocation2 + $0x18] sm:$0xff] 0.0
    %29 = vst [vmem:[#allocation2 + $0x20] sm:$0xff] 0.0
    %30 = vst [vmem:[#allocation2 + $0x28] sm:$0xff] 0.0
    %31 = vst [vmem:[#allocation2 + $0x30] sm:$0xff] 0.0
    %32 = vst [vmem:[#allocation2 + $0x38] sm:$0xff] 0.0
    %33 = vst [vmem:[#allocation2 + $0x40] sm:$0xff] 0.0
    %34 = vst [vmem:[#allocation2 + $0x48] sm:$0xff] 0.0
    %35 = vst [vmem:[#allocation2 + $0x50] sm:$0xff] 0.0
    %36 = vst [vmem:[#allocation2 + $0x58] sm:$0xff] 0.0
    %37 = vst [vmem:[#allocation2 + $0x60] sm:$0xff] 0.0
    %38 = vst [vmem:[#allocation2 + $0x68] sm:$0xff] 0.0
    %39 = vst [vmem:[#allocation2 + $0x70] sm:$0xff] 0.0
    %40 = vst [vmem:[#allocation2 + $0x78] sm:$0xff] 0.0
    %41 = vst [vmem:[#allocation2 + $0x80] sm:$0xff] 0.0
    %42 = vst [vmem:[#allocation2 + $0x88] sm:$0xff] 0.0
    %43 = vst [vmem:[#allocation2 + $0x90] sm:$0xff] 0.0
    %44 = vst [vmem:[#allocation2 + $0x98] sm:$0xff] 0.0
    %45 = vst [vmem:[#allocation2 + $0xa0] sm:$0xff] 0.0
    %46 = vst [vmem:[#allocation2 + $0xa8] sm:$0xff] 0.0
    %47 = vst [vmem:[#allocation2 + $0xb0] sm:$0xff] 0.0
    %48 = vst [vmem:[#allocation2 + $0xb8] sm:$0xff] 0.0
    %49 = vst [vmem:[#allocation2 + $0xc0] sm:$0xff] 0.0
    %50 = vst [vmem:[#allocation2 + $0xc8] sm:$0xff] 0.0
    %51 = vst [vmem:[#allocation2 + $0xd0] sm:$0xff] 0.0
    %52 = vst [vmem:[#allocation2 + $0xd8] sm:$0xff] 0.0
    %53 = vst [vmem:[#allocation2 + $0xe0] sm:$0xff] 0.0
    %54 = vst [vmem:[#allocation2 + $0xe8] sm:$0xff] 0.0
    %55 = vst [vmem:[#allocation2 + $0xf0] sm:$0xff] 0.0
    %56 = vst [vmem:[#allocation2 + $0xf8] sm:$0xff] 0.0
    %57 = vst [vmem:[#allocation2 + $0x100] sm:$0xff] 0.0
    %58 = vst [vmem:[#allocation2 + $0x108] sm:$0xff] 0.0
    %59 = vst [vmem:[#allocation2 + $0x110] sm:$0xff] 0.0
    %60 = vst [vmem:[#allocation2 + $0x118] sm:$0xff] 0.0
    %61 = vst [vmem:[#allocation2 + $0x120] sm:$0xff] 0.0
    %62 = vst [vmem:[#allocation2 + $0x128] sm:$0xff] 0.0
    %63 = vst [vmem:[#allocation2 + $0x130] sm:$0xff] 0.0
    %64 = vst [vmem:[#allocation2 + $0x138] sm:$0xff] 0.0
    %65 = vst [vmem:[#allocation2 + $0x140] sm:$0xff] 0.0
    %66 = vst [vmem:[#allocation2 + $0x148] sm:$0xff] 0.0
    %67 = vst [vmem:[#allocation2 + $0x150] sm:$0xff] 0.0
    %68 = vst [vmem:[#allocation2 + $0x158] sm:$0xff] 0.0
    %69 = vst [vmem:[#allocation2 + $0x160] sm:$0xff] 0.0
    %70 = vst [vmem:[#allocation2 + $0x168] sm:$0xff] 0.0
    %71 = vst [vmem:[#allocation2 + $0x170] sm:$0xff] 0.0
    %72 = vst [vmem:[#allocation2 + $0x178] sm:$0xff] 0.0
    %73 = vst [vmem:[#allocation2 + $0x180] sm:$0xff] 0.0
    %74 = vst [vmem:[#allocation2 + $0x188] sm:$0xff] 0.0
    %75 = vst [vmem:[#allocation2 + $0x190] sm:$0xff] 0.0
    %76 = vst [vmem:[#allocation2 + $0x198] sm:$0xff] 0.0
    %77 = vst [vmem:[#allocation2 + $0x1a0] sm:$0xff] 0.0
    %78 = vst [vmem:[#allocation2 + $0x1a8] sm:$0xff] 0.0
    %79 = vst [vmem:[#allocation2 + $0x1b0] sm:$0xff] 0.0
    %80 = vst [vmem:[#allocation2 + $0x1b8] sm:$0xff] 0.0
    %81 = vst [vmem:[#allocation2 + $0x1c0] sm:$0xff] 0.0
    %82 = vst [vmem:[#allocation2 + $0x1c8] sm:$0xff] 0.0
    %83 = vst [vmem:[#allocation2 + $0x1d0] sm:$0xff] 0.0
    %84 = vst [vmem:[#allocation2 + $0x1d8] sm:$0xff] 0.0
    %85 = vst [vmem:[#allocation2 + $0x1e0] sm:$0xff] 0.0
    %86 = vst [vmem:[#allocation2 + $0x1e8] sm:$0xff] 0.0
    %87 = vst [vmem:[#allocation2 + $0x1f0] sm:$0xff] 0.0
    %88 = vst [vmem:[#allocation2 + $0x1f8] sm:$0xff] 0.0
  $region25: #{_lambda_.5} parent=0 // pred_fallthru
    _
  %v89 = vld [vmem:[#allocation2] sm:$0xff]
  %v90 = vld [vmem:[#allocation2 + $0x8] sm:$0xff]
  %v91 = vld [vmem:[#allocation2 + $0x10] sm:$0xff]
  %v92 = vld [vmem:[#allocation2 + $0x18] sm:$0xff]
  %v93 = vld [vmem:[#allocation2 + $0x20] sm:$0xff]
  %v94 = vld [vmem:[#allocation2 + $0x28] sm:$0xff]
  %v95 = vld [vmem:[#allocation2 + $0x30] sm:$0xff]
  %v96 = vld [vmem:[#allocation2 + $0x38] sm:$0xff]
  %v97 = vld [vmem:[#allocation2 + $0x40] sm:$0xff]
  %v98 = vld [vmem:[#allocation2 + $0x48] sm:$0xff]
  %v99 = vld [vmem:[#allocation2 + $0x50] sm:$0xff]
  %v100 = vld [vmem:[#allocation2 + $0x58] sm:$0xff]
  %v101 = vld [vmem:[#allocation2 + $0x60] sm:$0xff]
  %v102 = vld [vmem:[#allocation2 + $0x68] sm:$0xff]
  %v103 = vld [vmem:[#allocation2 + $0x70] sm:$0xff]
  %v104 = vld [vmem:[#allocation2 + $0x78] sm:$0xff]
  %v105 = vld [vmem:[#allocation2 + $0x80] sm:$0xff]
  %v106 = vld [vmem:[#allocation2 + $0x88] sm:$0xff]
  %v107 = vld [vmem:[#allocation2 + $0x90] sm:$0xff]
  %v108 = vld [vmem:[#allocation2 + $0x98] sm:$0xff]
  %v109 = vld [vmem:[#allocation2 + $0xa0] sm:$0xff]
  %v110 = vld [vmem:[#allocation2 + $0xa8] sm:$0xff]
  %v111 = vld [vmem:[#allocation2 + $0xb0] sm:$0xff]
  %v112 = vld [vmem:[#allocation2 + $0xb8] sm:$0xff]
  %v113 = vld [vmem:[#allocation2 + $0xc0] sm:$0xff]
  %v114 = vld [vmem:[#allocation2 + $0xc8] sm:$0xff]
  %v115 = vld [vmem:[#allocation2 + $0xd0] sm:$0xff]
  %v116 = vld [vmem:[#allocation2 + $0xd8] sm:$0xff]
  %v117 = vld [vmem:[#allocation2 + $0xe0] sm:$0xff]
  %v118 = vld [vmem:[#allocation2 + $0xe8] sm:$0xff]
  %v119 = vld [vmem:[#allocation2 + $0xf0] sm:$0xff]
  %v120 = vld [vmem:[#allocation2 + $0xf8] sm:$0xff]
  %v121 = vld [vmem:[#allocation2 + $0x100] sm:$0xff]
  %v122 = vld [vmem:[#allocation2 + $0x108] sm:$0xff]
  %v123 = vld [vmem:[#allocation2 + $0x110] sm:$0xff]
  %v124 = vld [vmem:[#allocation2 + $0x118] sm:$0xff]
  %v125 = vld [vmem:[#allocation2 + $0x120] sm:$0xff]
  %v126 = vld [vmem:[#allocation2 + $0x128] sm:$0xff]
  %v127 = vld [vmem:[#allocation2 + $0x130] sm:$0xff]
  %v128 = vld [vmem:[#allocation2 + $0x138] sm:$0xff]
  %v129 = vld [vmem:[#allocation2 + $0x140] sm:$0xff]
  %v130 = vld [vmem:[#allocation2 + $0x148] sm:$0xff]
  %v131 = vld [vmem:[#allocation2 + $0x150] sm:$0xff]
  %v132 = vld [vmem:[#allocation2 + $0x158] sm:$0xff]
  %v133 = vld [vmem:[#allocation2 + $0x160] sm:$0xff]
  %v134 = vld [vmem:[#allocation2 + $0x168] sm:$0xff]
  %v135 = vld [vmem:[#allocation2 + $0x170] sm:$0xff]
  %v136 = vld [vmem:[#allocation2 + $0x178] sm:$0xff]
  %v137 = vld [vmem:[#allocation2 + $0x180] sm:$0xff]
  %v138 = vld [vmem:[#allocation2 + $0x188] sm:$0xff]
  %v139 = vld [vmem:[#allocation2 + $0x190] sm:$0xff]
  %v140 = vld [vmem:[#allocation2 + $0x198] sm:$0xff]
  %v141 = vld [vmem:[#allocation2 + $0x1a0] sm:$0xff]
  %v142 = vld [vmem:[#allocation2 + $0x1a8] sm:$0xff]
  %v143 = vld [vmem:[#allocation2 + $0x1b0] sm:$0xff]
  %v144 = vld [vmem:[#allocation2 + $0x1b8] sm:$0xff]
  %v145 = vld [vmem:[#allocation2 + $0x1c0] sm:$0xff]
  %v146 = vld [vmem:[#allocation2 + $0x1c8] sm:$0xff]
  %v147 = vld [vmem:[#allocation2 + $0x1d0] sm:$0xff]
  %v148 = vld [vmem:[#allocation2 + $0x1d8] sm:$0xff]
  %v149 = vld [vmem:[#allocation2 + $0x1e0] sm:$0xff]
  %v150 = vld [vmem:[#allocation2 + $0x1e8] sm:$0xff]
  %v151 = vld [vmem:[#allocation2 + $0x1f0] sm:$0xff]
  %v152 = vld [vmem:[#allocation2 + $0x1f8] sm:$0xff]
  %v153 = vld [vmem:[%s0] sm:$0xf]
  %v154 = vld [vmem:[%s0 + $0x4] sm:$0xf]
  %v155 = vld [vmem:[%s0 + $0x8] sm:$0xf]
  %v156 = vld [vmem:[%s0 + $0xc] sm:$0xf]
  %v157 = vld [vmem:[%s0 + $0x10] sm:$0xf]
  %v158 = vld [vmem:[%s0 + $0x14] sm:$0xf]
  %v159 = vld [vmem:[%s0 + $0x18] sm:$0xf]
  %v160 = vld [vmem:[%s0 + $0x1c] sm:$0xf]
  %v161 = vld [vmem:[%s0 + $0x20] sm:$0xf]
  %v162 = vld [vmem:[%s0 + $0x24] sm:$0xf]
  %v163 = vld [vmem:[%s0 + $0x28] sm:$0xf]
  %v164 = vld [vmem:[%s0 + $0x2c] sm:$0xf]
  %v165 = vld [vmem:[%s0 + $0x30] sm:$0xf]
  %v166 = vld [vmem:[%s0 + $0x34] sm:$0xf]
  %v167 = vld [vmem:[%s0 + $0x38] sm:$0xf]
  %v168 = vld [vmem:[%s0 + $0x3c] sm:$0xf]
  %v169 = vld [vmem:[%s0 + $0x40] sm:$0xf]
  %v170 = vld [vmem:[%s0 + $0x44] sm:$0xf]
  %v171 = vld [vmem:[%s0 + $0x48] sm:$0xf]
  %v172 = vld [vmem:[%s0 + $0x4c] sm:$0xf]
  %v173 = vld [vmem:[%s0 + $0x50] sm:$0xf]
  %v174 = vld [vmem:[%s0 + $0x54] sm:$0xf]
  %v175 = vld [vmem:[%s0 + $0x58] sm:$0xf]
  %v176 = vld [vmem:[%s0 + $0x5c] sm:$0xf]
  %v177 = vld [vmem:[%s0 + $0x60] sm:$0xf]
  %v178 = vld [vmem:[%s0 + $0x64] sm:$0xf]
  %v179 = vld [vmem:[%s0 + $0x68] sm:$0xf]
  %v180 = vld [vmem:[%s0 + $0x6c] sm:$0xf]
  %v181 = vld [vmem:[%s0 + $0x70] sm:$0xf]
  %v182 = vld [vmem:[%s0 + $0x74] sm:$0xf]
  %v183 = vld [vmem:[%s0 + $0x78] sm:$0xf]
  %v184 = vld [vmem:[%s0 + $0x7c] sm:$0xf]
  %v185 = vld [vmem:[%s0 + $0x80] sm:$0xf]
  %v186 = vld [vmem:[%s0 + $0x84] sm:$0xf]
  %v187 = vld [vmem:[%s0 + $0x88] sm:$0xf]
  %v188 = vld [vmem:[%s0 + $0x8c] sm:$0xf]
  %v189 = vld [vmem:[%s0 + $0x90] sm:$0xf]
  %v190 = vld [vmem:[%s0 + $0x94] sm:$0xf]
  %v191 = vld [vmem:[%s0 + $0x98] sm:$0xf]
  %v192 = vld [vmem:[%s0 + $0x9c] sm:$0xf]
  %v193 = vld [vmem:[%s0 + $0xa0] sm:$0xf]
  %v194 = vld [vmem:[%s0 + $0xa4] sm:$0xf]
  %v195 = vld [vmem:[%s0 + $0xa8] sm:$0xf]
  %v196 = vld [vmem:[%s0 + $0xac] sm:$0xf]
  %v197 = vld [vmem:[%s0 + $0xb0] sm:$0xf]
  %v198 = vld [vmem:[%s0 + $0xb4] sm:$0xf]
  %v199 = vld [vmem:[%s0 + $0xb8] sm:$0xf]
  %v200 = vld [vmem:[%s0 + $0xbc] sm:$0xf]
  %v201 = vld [vmem:[%s0 + $0xc0] sm:$0xf]
  %v202 = vld [vmem:[%s0 + $0xc4] sm:$0xf]
  %v203 = vld [vmem:[%s0 + $0xc8] sm:$0xf]
  %v204 = vld [vmem:[%s0 + $0xcc] sm:$0xf]
  %v205 = vld [vmem:[%s0 + $0xd0] sm:$0xf]
  %v206 = vld [vmem:[%s0 + $0xd4] sm:$0xf]
  %v207 = vld [vmem:[%s0 + $0xd8] sm:$0xf]
  %v208 = vld [vmem:[%s0 + $0xdc] sm:$0xf]
  %v209 = vld [vmem:[%s0 + $0xe0] sm:$0xf]
  %v210 = vld [vmem:[%s0 + $0xe4] sm:$0xf]
  %v211 = vld [vmem:[%s0 + $0xe8] sm:$0xf]
  %v212 = vld [vmem:[%s0 + $0xec] sm:$0xf]
  %v213 = vld [vmem:[%s0 + $0xf0] sm:$0xf]
  %v214 = vld [vmem:[%s0 + $0xf4] sm:$0xf]
  %v215 = vld [vmem:[%s0 + $0xf8] sm:$0xf]
  %v216 = vld [vmem:[%s0 + $0xfc] sm:$0xf]
  %v217 = vld [vmem:[%s1] sm:$0xf]
  %v218 = vld [vmem:[%s1 + $0x4] sm:$0xf]
  %v219 = vld [vmem:[%s1 + $0x8] sm:$0xf]
  %v220 = vld [vmem:[%s1 + $0xc] sm:$0xf]
  %v221 = vld [vmem:[%s1 + $0x10] sm:$0xf]
  %v222 = vld [vmem:[%s1 + $0x14] sm:$0xf]
  %v223 = vld [vmem:[%s1 + $0x18] sm:$0xf]
  %v224 = vld [vmem:[%s1 + $0x1c] sm:$0xf]
  %v225 = vld [vmem:[%s1 + $0x20] sm:$0xf]
  %v226 = vld [vmem:[%s1 + $0x24] sm:$0xf]
  %v227 = vld [vmem:[%s1 + $0x28] sm:$0xf]
  %v228 = vld [vmem:[%s1 + $0x2c] sm:$0xf]
  %v229 = vld [vmem:[%s1 + $0x30] sm:$0xf]
  %v230 = vld [vmem:[%s1 + $0x34] sm:$0xf]
  %v231 = vld [vmem:[%s1 + $0x38] sm:$0xf]
  %v232 = vld [vmem:[%s1 + $0x3c] sm:$0xf]
  %v297 = vunpack.c.l.b16 %v153
  %v298 = vunpack.c.l.b16 %v154
  %v299 = vunpack.c.l.b16 %v155
  %v300 = vunpack.c.l.b16 %v156
  %v301 = vunpack.c.l.b16 %v157
  %v302 = vunpack.c.l.b16 %v158
  %v303 = vunpack.c.l.b16 %v159
  %v304 = vunpack.c.l.b16 %v160
  %v305 = vunpack.c.l.b16 %v161
  %v306 = vunpack.c.l.b16 %v162
  %v307 = vunpack.c.l.b16 %v163
  %v308 = vunpack.c.l.b16 %v164
  %v309 = vunpack.c.l.b16 %v165
  %v310 = vunpack.c.l.b16 %v166
  %v311 = vunpack.c.l.b16 %v167
  %v312 = vunpack.c.l.b16 %v168
  %v313 = vunpack.c.l.b16 %v169
  %v314 = vunpack.c.l.b16 %v170
  %v315 = vunpack.c.l.b16 %v171
  %v316 = vunpack.c.l.b16 %v172
  %v317 = vunpack.c.l.b16 %v173
  %v318 = vunpack.c.l.b16 %v174
  %v319 = vunpack.c.l.b16 %v175
  %v320 = vunpack.c.l.b16 %v176
  %v321 = vunpack.c.l.b16 %v177
  %v322 = vunpack.c.l.b16 %v178
  %v323 = vunpack.c.l.b16 %v179
  %v324 = vunpack.c.l.b16 %v180
  %v325 = vunpack.c.l.b16 %v181
  %v326 = vunpack.c.l.b16 %v182
  %v327 = vunpack.c.l.b16 %v183
  %v328 = vunpack.c.l.b16 %v184
  %v329 = vunpack.c.l.b16 %v185
  %v330 = vunpack.c.l.b16 %v186
  %v331 = vunpack.c.l.b16 %v187
  %v332 = vunpack.c.l.b16 %v188
  %v333 = vunpack.c.l.b16 %v189
  %v334 = vunpack.c.l.b16 %v190
  %v335 = vunpack.c.l.b16 %v191
  %v336 = vunpack.c.l.b16 %v192
  %v337 = vunpack.c.l.b16 %v193
  %v338 = vunpack.c.l.b16 %v194
  %v339 = vunpack.c.l.b16 %v195
  %v340 = vunpack.c.l.b16 %v196
  %v341 = vunpack.c.l.b16 %v197
  %v342 = vunpack.c.l.b16 %v198
  %v343 = vunpack.c.l.b16 %v199
  %v344 = vunpack.c.l.b16 %v200
  %v345 = vunpack.c.l.b16 %v201
  %v346 = vunpack.c.l.b16 %v202
  %v347 = vunpack.c.l.b16 %v203
  %v348 = vunpack.c.l.b16 %v204
  %v349 = vunpack.c.l.b16 %v205
  %v350 = vunpack.c.l.b16 %v206
  %v351 = vunpack.c.l.b16 %v207
  %v352 = vunpack.c.l.b16 %v208
  %v353 = vunpack.c.l.b16 %v209
  %v354 = vunpack.c.l.b16 %v210
  %v355 = vunpack.c.l.b16 %v211
  %v356 = vunpack.c.l.b16 %v212
  %v357 = vunpack.c.l.b16 %v213
  %v358 = vunpack.c.l.b16 %v214
  %v359 = vunpack.c.l.b16 %v215
  %v360 = vunpack.c.l.b16 %v216
  %v361 = vpack.c.b16 %v298, %v297
  %v362 = vpack.c.b16 %v300, %v299
  %v363 = vpack.c.b16 %v302, %v301
  %v364 = vpack.c.b16 %v304, %v303
  %v365 = vpack.c.b16 %v306, %v305
  %v366 = vpack.c.b16 %v308, %v307
  %v367 = vpack.c.b16 %v310, %v309
  %v368 = vpack.c.b16 %v312, %v311
  %v369 = vpack.c.b16 %v314, %v313
  %v370 = vpack.c.b16 %v316, %v315
  %v371 = vpack.c.b16 %v318, %v317
  %v372 = vpack.c.b16 %v320, %v319
  %v373 = vpack.c.b16 %v322, %v321
  %v374 = vpack.c.b16 %v324, %v323
  %v375 = vpack.c.b16 %v326, %v325
  %v376 = vpack.c.b16 %v328, %v327
  %v377 = vpack.c.b16 %v330, %v329
  %v378 = vpack.c.b16 %v332, %v331
  %v379 = vpack.c.b16 %v334, %v333
  %v380 = vpack.c.b16 %v336, %v335
  %v381 = vpack.c.b16 %v338, %v337
  %v382 = vpack.c.b16 %v340, %v339
  %v383 = vpack.c.b16 %v342, %v341
  %v384 = vpack.c.b16 %v344, %v343
  %v385 = vpack.c.b16 %v346, %v345
  %v386 = vpack.c.b16 %v348, %v347
  %v387 = vpack.c.b16 %v350, %v349
  %v388 = vpack.c.b16 %v352, %v351
  %v389 = vpack.c.b16 %v354, %v353
  %v390 = vpack.c.b16 %v356, %v355
  %v391 = vpack.c.b16 %v358, %v357
  %v392 = vpack.c.b16 %v360, %v359
  %v441 = vunpack.c.l.b16 %v217
  %v442 = vunpack.c.l.b16 %v218
  %v443 = vunpack.c.l.b16 %v219
  %v444 = vunpack.c.l.b16 %v220
  %v445 = vunpack.c.l.b16 %v221
  %v446 = vunpack.c.l.b16 %v222
  %v447 = vunpack.c.l.b16 %v223
  %v448 = vunpack.c.l.b16 %v224
  %v449 = vunpack.c.l.b16 %v225
  %v450 = vunpack.c.l.b16 %v226
  %v451 = vunpack.c.l.b16 %v227
  %v452 = vunpack.c.l.b16 %v228
  %v453 = vunpack.c.l.b16 %v229
  %v454 = vunpack.c.l.b16 %v230
  %v455 = vunpack.c.l.b16 %v231
  %v456 = vunpack.c.l.b16 %v232
  %v457 = vpack.c.b16 %v442, %v441
  %v458 = vpack.c.b16 %v444, %v443
  %v459 = vpack.c.b16 %v446, %v445
  %v460 = vpack.c.b16 %v448, %v447
  %v461 = vpack.c.b16 %v450, %v449
  %v462 = vpack.c.b16 %v452, %v451
  %v463 = vpack.c.b16 %v454, %v453
  %v464 = vpack.c.b16 %v456, %v455
  %473 = vmatprep.subr.bf16.mxu0 0
  %474 = vmatpush1.bf16.msra.mxu0 %v464
  %475 = vmatprep.subr.bf16.mxu0 0
  %476 = vmatpush1.bf16.msra.mxu0 %v463
  %477 = vmatprep.subr.bf16.mxu0 0
  %478 = vmatpush1.bf16.msra.mxu0 %v462
  %479 = vmatprep.subr.bf16.mxu0 0
  %480 = vmatpush1.bf16.msra.mxu0 %v461
  %481 = vmatprep.subr.bf16.mxu0 0
  %482 = vmatpush1.bf16.msra.mxu0 %v460
  %483 = vmatprep.subr.bf16.mxu0 0
  %484 = vmatpush1.bf16.msra.mxu0 %v459
  %485 = vmatprep.subr.bf16.mxu0 0
  %486 = vmatpush1.bf16.msra.mxu0 %v458
  %487 = vmatprep.subr.bf16.mxu0 0
  %488 = vmatpush1.bf16.msra.mxu0 %v457
  %489 = vmatprep.subr.bf16.mxu0 0
  %490 = vmatpush2.bf16.msra.mxu0 0
  %491 = vmatprep.subr.bf16.mxu0 0
  %492 = vmatpush2.bf16.msra.mxu0 0
  %493 = vmatprep.subr.bf16.mxu0 0
  %494 = vmatpush2.bf16.msra.mxu0 0
  %495 = vmatprep.subr.bf16.mxu0 0
  %496 = vmatpush2.bf16.msra.mxu0 0
  %497 = vmatprep.subr.bf16.mxu0 0
  %498 = vmatpush2.bf16.msra.mxu0 0
  %499 = vmatprep.subr.bf16.mxu0 0
  %500 = vmatpush2.bf16.msra.mxu0 0
  %501 = vmatprep.subr.bf16.mxu0 0
  %502 = vmatpush2.bf16.msra.mxu0 0
  %503 = vmatprep.subr.bf16.mxu0 0
  %504 = vmatpush2.bf16.msra.mxu0 0
  %505 = vmatprep.mubr.bf16.mxu0 0
  %506 = vmatmul.mubr.bf16.gmra.mxu0 %v361
  %v507 = vpop.f32.mrf.mxu0
  %v508 = vadd.f32 0.0, %v507
  %v509 = vpop.f32.mrf.mxu0
  %v510 = vpop.f32.mrf.mxu0
  %v511 = vadd.f32 0.0, %v510
  %v512 = vpop.f32.mrf.mxu0
  %513 = vmatprep.mubr.bf16.mxu0 0
  %514 = vmatmul.mubr.bf16.gmra.mxu0 %v362
  %v515 = vpop.f32.mrf.mxu0
  %v516 = vadd.f32 0.0, %v515
  %v517 = vpop.f32.mrf.mxu0
  %v518 = vpop.f32.mrf.mxu0
  %v519 = vadd.f32 0.0, %v518
  %v520 = vpop.f32.mrf.mxu0
  %521 = vmatprep.mubr.bf16.mxu0 0
  %522 = vmatmul.mubr.bf16.gmra.mxu0 %v363
  %v523 = vpop.f32.mrf.mxu0
  %v524 = vadd.f32 0.0, %v523
  %v525 = vpop.f32.mrf.mxu0
  %v526 = vpop.f32.mrf.mxu0
  %v527 = vadd.f32 0.0, %v526
  %v528 = vpop.f32.mrf.mxu0
  %529 = vmatprep.mubr.bf16.mxu0 0
  %530 = vmatmul.mubr.bf16.gmra.mxu0 %v364
  %v531 = vpop.f32.mrf.mxu0
  %v532 = vadd.f32 0.0, %v531
  %v533 = vpop.f32.mrf.mxu0
  %v534 = vpop.f32.mrf.mxu0
  %v535 = vadd.f32 0.0, %v534
  %v536 = vpop.f32.mrf.mxu0
  %537 = vmatprep.mubr.bf16.mxu0 0
  %538 = vmatmul.mubr.bf16.gmra.mxu0 %v365
  %v539 = vpop.f32.mrf.mxu0
  %v540 = vadd.f32 0.0, %v539
  %v541 = vpop.f32.mrf.mxu0
  %v542 = vpop.f32.mrf.mxu0
  %v543 = vadd.f32 0.0, %v542
  %v544 = vpop.f32.mrf.mxu0
  %545 = vmatprep.mubr.bf16.mxu0 0
  %546 = vmatmul.mubr.bf16.gmra.mxu0 %v366
  %v547 = vpop.f32.mrf.mxu0
  %v548 = vadd.f32 0.0, %v547
  %v549 = vpop.f32.mrf.mxu0
  %v550 = vpop.f32.mrf.mxu0
  %v551 = vadd.f32 0.0, %v550
  %v552 = vpop.f32.mrf.mxu0
  %553 = vmatprep.mubr.bf16.mxu0 0
  %554 = vmatmul.mubr.bf16.gmra.mxu0 %v367
  %v555 = vpop.f32.mrf.mxu0
  %v556 = vadd.f32 0.0, %v555
  %v557 = vpop.f32.mrf.mxu0
  %v558 = vpop.f32.mrf.mxu0
  %v559 = vadd.f32 0.0, %v558
  %v560 = vpop.f32.mrf.mxu0
  %561 = vmatprep.mubr.bf16.mxu0 0
  %562 = vmatmul.mubr.bf16.gmra.mxu0 %v368
  %v563 = vpop.f32.mrf.mxu0
  %v564 = vadd.f32 0.0, %v563
  %v565 = vpop.f32.mrf.mxu0
  %v566 = vpop.f32.mrf.mxu0
  %v567 = vadd.f32 0.0, %v566
  %v568 = vpop.f32.mrf.mxu0
  %569 = vmatprep.mubr.bf16.mxu0 0
  %570 = vmatmul.mubr.bf16.gmra.mxu0 %v369
  %v571 = vpop.f32.mrf.mxu0
  %v572 = vadd.f32 0.0, %v571
  %v573 = vpop.f32.mrf.mxu0
  %v574 = vpop.f32.mrf.mxu0
  %v575 = vadd.f32 0.0, %v574
  %v576 = vpop.f32.mrf.mxu0
  %577 = vmatprep.mubr.bf16.mxu0 0
  %578 = vmatmul.mubr.bf16.gmra.mxu0 %v370
  %v579 = vpop.f32.mrf.mxu0
  %v580 = vadd.f32 0.0, %v579
  %v581 = vpop.f32.mrf.mxu0
  %v582 = vpop.f32.mrf.mxu0
  %v583 = vadd.f32 0.0, %v582
  %v584 = vpop.f32.mrf.mxu0
  %585 = vmatprep.mubr.bf16.mxu0 0
  %586 = vmatmul.mubr.bf16.gmra.mxu0 %v371
  %v587 = vpop.f32.mrf.mxu0
  %v588 = vadd.f32 0.0, %v587
  %v589 = vpop.f32.mrf.mxu0
  %v590 = vpop.f32.mrf.mxu0
  %v591 = vadd.f32 0.0, %v590
  %v592 = vpop.f32.mrf.mxu0
  %593 = vmatprep.mubr.bf16.mxu0 0
  %594 = vmatmul.mubr.bf16.gmra.mxu0 %v372
  %v595 = vpop.f32.mrf.mxu0
  %v596 = vadd.f32 0.0, %v595
  %v597 = vpop.f32.mrf.mxu0
  %v598 = vpop.f32.mrf.mxu0
  %v599 = vadd.f32 0.0, %v598
  %v600 = vpop.f32.mrf.mxu0
  %601 = vmatprep.mubr.bf16.mxu0 0
  %602 = vmatmul.mubr.bf16.gmra.mxu0 %v373
  %v603 = vpop.f32.mrf.mxu0
  %v604 = vadd.f32 0.0, %v603
  %v605 = vpop.f32.mrf.mxu0
  %v606 = vpop.f32.mrf.mxu0
  %v607 = vadd.f32 0.0, %v606
  %v608 = vpop.f32.mrf.mxu0
  %609 = vmatprep.mubr.bf16.mxu0 0
  %610 = vmatmul.mubr.bf16.gmra.mxu0 %v374
  %v611 = vpop.f32.mrf.mxu0
  %v612 = vadd.f32 0.0, %v611
  %v613 = vpop.f32.mrf.mxu0
  %v614 = vpop.f32.mrf.mxu0
  %v615 = vadd.f32 0.0, %v614
  %v616 = vpop.f32.mrf.mxu0
  %617 = vmatprep.mubr.bf16.mxu0 0
  %618 = vmatmul.mubr.bf16.gmra.mxu0 %v375
  %v619 = vpop.f32.mrf.mxu0
  %v620 = vadd.f32 0.0, %v619
  %v621 = vpop.f32.mrf.mxu0
  %v622 = vpop.f32.mrf.mxu0
  %v623 = vadd.f32 0.0, %v622
  %v624 = vpop.f32.mrf.mxu0
  %625 = vmatprep.mubr.bf16.mxu0 0
  %626 = vmatmul.mubr.bf16.gmra.mxu0 %v376
  %v627 = vpop.f32.mrf.mxu0
  %v628 = vadd.f32 0.0, %v627
  %v629 = vpop.f32.mrf.mxu0
  %v630 = vpop.f32.mrf.mxu0
  %v631 = vadd.f32 0.0, %v630
  %v632 = vpop.f32.mrf.mxu0
  %633 = vmatprep.mubr.bf16.mxu0 0
  %634 = vmatmul.mubr.bf16.gmra.mxu0 %v377
  %v635 = vpop.f32.mrf.mxu0
  %v636 = vadd.f32 0.0, %v635
  %v637 = vpop.f32.mrf.mxu0
  %v638 = vpop.f32.mrf.mxu0
  %v639 = vadd.f32 0.0, %v638
  %v640 = vpop.f32.mrf.mxu0
  %641 = vmatprep.mubr.bf16.mxu0 0
  %642 = vmatmul.mubr.bf16.gmra.mxu0 %v378
  %v643 = vpop.f32.mrf.mxu0
  %v644 = vadd.f32 0.0, %v643
  %v645 = vpop.f32.mrf.mxu0
  %v646 = vpop.f32.mrf.mxu0
  %v647 = vadd.f32 0.0, %v646
  %v648 = vpop.f32.mrf.mxu0
  %649 = vmatprep.mubr.bf16.mxu0 0
  %650 = vmatmul.mubr.bf16.gmra.mxu0 %v379
  %v651 = vpop.f32.mrf.mxu0
  %v652 = vadd.f32 0.0, %v651
  %v653 = vpop.f32.mrf.mxu0
  %v654 = vpop.f32.mrf.mxu0
  %v655 = vadd.f32 0.0, %v654
  %v656 = vpop.f32.mrf.mxu0
  %657 = vmatprep.mubr.bf16.mxu0 0
  %658 = vmatmul.mubr.bf16.gmra.mxu0 %v380
  %v659 = vpop.f32.mrf.mxu0
  %v660 = vadd.f32 0.0, %v659
  %v661 = vpop.f32.mrf.mxu0
  %v662 = vpop.f32.mrf.mxu0
  %v663 = vadd.f32 0.0, %v662
  %v664 = vpop.f32.mrf.mxu0
  %665 = vmatprep.mubr.bf16.mxu0 0
  %666 = vmatmul.mubr.bf16.gmra.mxu0 %v381
  %v667 = vpop.f32.mrf.mxu0
  %v668 = vadd.f32 0.0, %v667
  %v669 = vpop.f32.mrf.mxu0
  %v670 = vpop.f32.mrf.mxu0
  %v671 = vadd.f32 0.0, %v670
  %v672 = vpop.f32.mrf.mxu0
  %673 = vmatprep.mubr.bf16.mxu0 0
  %674 = vmatmul.mubr.bf16.gmra.mxu0 %v382
  %v675 = vpop.f32.mrf.mxu0
  %v676 = vadd.f32 0.0, %v675
  %v677 = vpop.f32.mrf.mxu0
  %v678 = vpop.f32.mrf.mxu0
  %v679 = vadd.f32 0.0, %v678
  %v680 = vpop.f32.mrf.mxu0
  %681 = vmatprep.mubr.bf16.mxu0 0
  %682 = vmatmul.mubr.bf16.gmra.mxu0 %v383
  %v683 = vpop.f32.mrf.mxu0
  %v684 = vadd.f32 0.0, %v683
  %v685 = vpop.f32.mrf.mxu0
  %v686 = vpop.f32.mrf.mxu0
  %v687 = vadd.f32 0.0, %v686
  %v688 = vpop.f32.mrf.mxu0
  %689 = vmatprep.mubr.bf16.mxu0 0
  %690 = vmatmul.mubr.bf16.gmra.mxu0 %v384
  %v691 = vpop.f32.mrf.mxu0
  %v692 = vadd.f32 0.0, %v691
  %v693 = vpop.f32.mrf.mxu0
  %v694 = vpop.f32.mrf.mxu0
  %v695 = vadd.f32 0.0, %v694
  %v696 = vpop.f32.mrf.mxu0
  %697 = vmatprep.mubr.bf16.mxu0 0
  %698 = vmatmul.mubr.bf16.gmra.mxu0 %v385
  %v699 = vpop.f32.mrf.mxu0
  %v700 = vadd.f32 0.0, %v699
  %v701 = vpop.f32.mrf.mxu0
  %v702 = vpop.f32.mrf.mxu0
  %v703 = vadd.f32 0.0, %v702
  %v704 = vpop.f32.mrf.mxu0
  %705 = vmatprep.mubr.bf16.mxu0 0
  %706 = vmatmul.mubr.bf16.gmra.mxu0 %v386
  %v707 = vpop.f32.mrf.mxu0
  %v708 = vadd.f32 0.0, %v707
  %v709 = vpop.f32.mrf.mxu0
  %v710 = vpop.f32.mrf.mxu0
  %v711 = vadd.f32 0.0, %v710
  %v712 = vpop.f32.mrf.mxu0
  %713 = vmatprep.mubr.bf16.mxu0 0
  %714 = vmatmul.mubr.bf16.gmra.mxu0 %v387
  %v715 = vpop.f32.mrf.mxu0
  %v716 = vadd.f32 0.0, %v715
  %v717 = vpop.f32.mrf.mxu0
  %v718 = vpop.f32.mrf.mxu0
  %v719 = vadd.f32 0.0, %v718
  %v720 = vpop.f32.mrf.mxu0
  %721 = vmatprep.mubr.bf16.mxu0 0
  %722 = vmatmul.mubr.bf16.gmra.mxu0 %v388
  %v723 = vpop.f32.mrf.mxu0
  %v724 = vadd.f32 0.0, %v723
  %v725 = vpop.f32.mrf.mxu0
  %v726 = vpop.f32.mrf.mxu0
  %v727 = vadd.f32 0.0, %v726
  %v728 = vpop.f32.mrf.mxu0
  %729 = vmatprep.mubr.bf16.mxu0 0
  %730 = vmatmul.mubr.bf16.gmra.mxu0 %v389
  %v731 = vpop.f32.mrf.mxu0
  %v732 = vadd.f32 0.0, %v731
  %v733 = vpop.f32.mrf.mxu0
  %v734 = vpop.f32.mrf.mxu0
  %v735 = vadd.f32 0.0, %v734
  %v736 = vpop.f32.mrf.mxu0
  %737 = vmatprep.mubr.bf16.mxu0 0
  %738 = vmatmul.mubr.bf16.gmra.mxu0 %v390
  %v739 = vpop.f32.mrf.mxu0
  %v740 = vadd.f32 0.0, %v739
  %v741 = vpop.f32.mrf.mxu0
  %v742 = vpop.f32.mrf.mxu0
  %v743 = vadd.f32 0.0, %v742
  %v744 = vpop.f32.mrf.mxu0
  %745 = vmatprep.mubr.bf16.mxu0 0
  %746 = vmatmul.mubr.bf16.gmra.mxu0 %v391
  %v747 = vpop.f32.mrf.mxu0
  %v748 = vadd.f32 0.0, %v747
  %v749 = vpop.f32.mrf.mxu0
  %v750 = vpop.f32.mrf.mxu0
  %v751 = vadd.f32 0.0, %v750
  %v752 = vpop.f32.mrf.mxu0
  %753 = vmatprep.mubr.bf16.mxu0 0
  %754 = vmatmul.mubr.bf16.gmra.mxu0 %v392
  %v755 = vpop.f32.mrf.mxu0
  %v756 = vadd.f32 0.0, %v755
  %v757 = vpop.f32.mrf.mxu0
  %v758 = vpop.f32.mrf.mxu0
  %v759 = vadd.f32 0.0, %v758
  %v760 = vpop.f32.mrf.mxu0
  %761 = vdwg.mxu0
  %v762 = vadd.f32 %v89, %v508
  %v763 = vadd.f32 %v90, %v511
  %v764 = vadd.f32 %v91, %v516
  %v765 = vadd.f32 %v92, %v519
  %v766 = vadd.f32 %v93, %v524
  %v767 = vadd.f32 %v94, %v527
  %v768 = vadd.f32 %v95, %v532
  %v769 = vadd.f32 %v96, %v535
  %v770 = vadd.f32 %v97, %v540
  %v771 = vadd.f32 %v98, %v543
  %v772 = vadd.f32 %v99, %v548
  %v773 = vadd.f32 %v100, %v551
  %v774 = vadd.f32 %v101, %v556
  %v775 = vadd.f32 %v102, %v559
  %v776 = vadd.f32 %v103, %v564
  %v777 = vadd.f32 %v104, %v567
  %v778 = vadd.f32 %v105, %v572
  %v779 = vadd.f32 %v106, %v575
  %v780 = vadd.f32 %v107, %v580
  %v781 = vadd.f32 %v108, %v583
  %v782 = vadd.f32 %v109, %v588
  %v783 = vadd.f32 %v110, %v591
  %v784 = vadd.f32 %v111, %v596
  %v785 = vadd.f32 %v112, %v599
  %v786 = vadd.f32 %v113, %v604
  %v787 = vadd.f32 %v114, %v607
  %v788 = vadd.f32 %v115, %v612
  %v789 = vadd.f32 %v116, %v615
  %v790 = vadd.f32 %v117, %v620
  %v791 = vadd.f32 %v118, %v623
  %v792 = vadd.f32 %v119, %v628
  %v793 = vadd.f32 %v120, %v631
  %v794 = vadd.f32 %v121, %v636
  %v795 = vadd.f32 %v122, %v639
  %v796 = vadd.f32 %v123, %v644
  %v797 = vadd.f32 %v124, %v647
  %v798 = vadd.f32 %v125, %v652
  %v799 = vadd.f32 %v126, %v655
  %v800 = vadd.f32 %v127, %v660
  %v801 = vadd.f32 %v128, %v663
  %v802 = vadd.f32 %v129, %v668
  %v803 = vadd.f32 %v130, %v671
  %v804 = vadd.f32 %v131, %v676
  %v805 = vadd.f32 %v132, %v679
  %v806 = vadd.f32 %v133, %v684
  %v807 = vadd.f32 %v134, %v687
  %v808 = vadd.f32 %v135, %v692
  %v809 = vadd.f32 %v136, %v695
  %v810 = vadd.f32 %v137, %v700
  %v811 = vadd.f32 %v138, %v703
  %v812 = vadd.f32 %v139, %v708
  %v813 = vadd.f32 %v140, %v711
  %v814 = vadd.f32 %v141, %v716
  %v815 = vadd.f32 %v142, %v719
  %v816 = vadd.f32 %v143, %v724
  %v817 = vadd.f32 %v144, %v727
  %v818 = vadd.f32 %v145, %v732
  %v819 = vadd.f32 %v146, %v735
  %v820 = vadd.f32 %v147, %v740
  %v821 = vadd.f32 %v148, %v743
  %v822 = vadd.f32 %v149, %v748
  %v823 = vadd.f32 %v150, %v751
  %v824 = vadd.f32 %v151, %v756
  %v825 = vadd.f32 %v152, %v759
  %826 = vst [vmem:[#allocation2] sm:$0xff] %v762
  %827 = vst [vmem:[#allocation2 + $0x8] sm:$0xff] %v763
  %828 = vst [vmem:[#allocation2 + $0x10] sm:$0xff] %v764
  %829 = vst [vmem:[#allocation2 + $0x18] sm:$0xff] %v765
  %830 = vst [vmem:[#allocation2 + $0x20] sm:$0xff] %v766
  %831 = vst [vmem:[#allocation2 + $0x28] sm:$0xff] %v767
  %832 = vst [vmem:[#allocation2 + $0x30] sm:$0xff] %v768
  %833 = vst [vmem:[#allocation2 + $0x38] sm:$0xff] %v769
  %834 = vst [vmem:[#allocation2 + $0x40] sm:$0xff] %v770
  %835 = vst [vmem:[#allocation2 + $0x48] sm:$0xff] %v771
  %836 = vst [vmem:[#allocation2 + $0x50] sm:$0xff] %v772
  %837 = vst [vmem:[#allocation2 + $0x58] sm:$0xff] %v773
  %838 = vst [vmem:[#allocation2 + $0x60] sm:$0xff] %v774
  %839 = vst [vmem:[#allocation2 + $0x68] sm:$0xff] %v775
  %840 = vst [vmem:[#allocation2 + $0x70] sm:$0xff] %v776
  %841 = vst [vmem:[#allocation2 + $0x78] sm:$0xff] %v777
  %842 = vst [vmem:[#allocation2 + $0x80] sm:$0xff] %v778
  %843 = vst [vmem:[#allocation2 + $0x88] sm:$0xff] %v779
  %844 = vst [vmem:[#allocation2 + $0x90] sm:$0xff] %v780
  %845 = vst [vmem:[#allocation2 + $0x98] sm:$0xff] %v781
  %846 = vst [vmem:[#allocation2 + $0xa0] sm:$0xff] %v782
  %847 = vst [vmem:[#allocation2 + $0xa8] sm:$0xff] %v783
  %848 = vst [vmem:[#allocation2 + $0xb0] sm:$0xff] %v784
  %849 = vst [vmem:[#allocation2 + $0xb8] sm:$0xff] %v785
  %850 = vst [vmem:[#allocation2 + $0xc0] sm:$0xff] %v786
  %851 = vst [vmem:[#allocation2 + $0xc8] sm:$0xff] %v787
  %852 = vst [vmem:[#allocation2 + $0xd0] sm:$0xff] %v788
  %853 = vst [vmem:[#allocation2 + $0xd8] sm:$0xff] %v789
  %854 = vst [vmem:[#allocation2 + $0xe0] sm:$0xff] %v790
  %855 = vst [vmem:[#allocation2 + $0xe8] sm:$0xff] %v791
  %856 = vst [vmem:[#allocation2 + $0xf0] sm:$0xff] %v792
  %857 = vst [vmem:[#allocation2 + $0xf8] sm:$0xff] %v793
  %858 = vst [vmem:[#allocation2 + $0x100] sm:$0xff] %v794
  %859 = vst [vmem:[#allocation2 + $0x108] sm:$0xff] %v795
  %860 = vst [vmem:[#allocation2 + $0x110] sm:$0xff] %v796
  %861 = vst [vmem:[#allocation2 + $0x118] sm:$0xff] %v797
  %862 = vst [vmem:[#allocation2 + $0x120] sm:$0xff] %v798
  %863 = vst [vmem:[#allocation2 + $0x128] sm:$0xff] %v799
  %864 = vst [vmem:[#allocation2 + $0x130] sm:$0xff] %v800
  %865 = vst [vmem:[#allocation2 + $0x138] sm:$0xff] %v801
  %866 = vst [vmem:[#allocation2 + $0x140] sm:$0xff] %v802
  %867 = vst [vmem:[#allocation2 + $0x148] sm:$0xff] %v803
  %868 = vst [vmem:[#allocation2 + $0x150] sm:$0xff] %v804
  %869 = vst [vmem:[#allocation2 + $0x158] sm:$0xff] %v805
  %870 = vst [vmem:[#allocation2 + $0x160] sm:$0xff] %v806
  %871 = vst [vmem:[#allocation2 + $0x168] sm:$0xff] %v807
  %872 = vst [vmem:[#allocation2 + $0x170] sm:$0xff] %v808
  %873 = vst [vmem:[#allocation2 + $0x178] sm:$0xff] %v809
  %874 = vst [vmem:[#allocation2 + $0x180] sm:$0xff] %v810
  %875 = vst [vmem:[#allocation2 + $0x188] sm:$0xff] %v811
  %876 = vst [vmem:[#allocation2 + $0x190] sm:$0xff] %v812
  %877 = vst [vmem:[#allocation2 + $0x198] sm:$0xff] %v813
  %878 = vst [vmem:[#allocation2 + $0x1a0] sm:$0xff] %v814
  %879 = vst [vmem:[#allocation2 + $0x1a8] sm:$0xff] %v815
  %880 = vst [vmem:[#allocation2 + $0x1b0] sm:$0xff] %v816
  %881 = vst [vmem:[#allocation2 + $0x1b8] sm:$0xff] %v817
  %882 = vst [vmem:[#allocation2 + $0x1c0] sm:$0xff] %v818
  %883 = vst [vmem:[#allocation2 + $0x1c8] sm:$0xff] %v819
  %884 = vst [vmem:[#allocation2 + $0x1d0] sm:$0xff] %v820
  %885 = vst [vmem:[#allocation2 + $0x1d8] sm:$0xff] %v821
  %886 = vst [vmem:[#allocation2 + $0x1e0] sm:$0xff] %v822
  %887 = vst [vmem:[#allocation2 + $0x1e8] sm:$0xff] %v823
  %888 = vst [vmem:[#allocation2 + $0x1f0] sm:$0xff] %v824
  %889 = vst [vmem:[#allocation2 + $0x1f8] sm:$0xff] %v825
  // Predicated region
  $region26: #{_lambda_.5} parent=0 // pred_check
    %p890 = pneg %p21
  $region27: #{_lambda_.5} parent=0 // pred_check_branch
    %892 = sbr.rel (%p890) target = $region29
  $region28: #{_lambda_.5} parent=0 // pred_region
    %v893 = vld [vmem:[#allocation2] sm:$0xff]
    %v894 = vld [vmem:[#allocation2 + $0x8] sm:$0xff]
    %v895 = vld [vmem:[#allocation2 + $0x10] sm:$0xff]
    %v896 = vld [vmem:[#allocation2 + $0x18] sm:$0xff]
    %v897 = vld [vmem:[#allocation2 + $0x20] sm:$0xff]
    %v898 = vld [vmem:[#allocation2 + $0x28] sm:$0xff]
    %v899 = vld [vmem:[#allocation2 + $0x30] sm:$0xff]
    %v900 = vld [vmem:[#allocation2 + $0x38] sm:$0xff]
    %v901 = vld [vmem:[#allocation2 + $0x40] sm:$0xff]
    %v902 = vld [vmem:[#allocation2 + $0x48] sm:$0xff]
    %v903 = vld [vmem:[#allocation2 + $0x50] sm:$0xff]
    %v904 = vld [vmem:[#allocation2 + $0x58] sm:$0xff]
    %v905 = vld [vmem:[#allocation2 + $0x60] sm:$0xff]
    %v906 = vld [vmem:[#allocation2 + $0x68] sm:$0xff]
    %v907 = vld [vmem:[#allocation2 + $0x70] sm:$0xff]
    %v908 = vld [vmem:[#allocation2 + $0x78] sm:$0xff]
    %v909 = vld [vmem:[#allocation2 + $0x80] sm:$0xff]
    %v910 = vld [vmem:[#allocation2 + $0x88] sm:$0xff]
    %v911 = vld [vmem:[#allocation2 + $0x90] sm:$0xff]
    %v912 = vld [vmem:[#allocation2 + $0x98] sm:$0xff]
    %v913 = vld [vmem:[#allocation2 + $0xa0] sm:$0xff]
    %v914 = vld [vmem:[#allocation2 + $0xa8] sm:$0xff]
    %v915 = vld [vmem:[#allocation2 + $0xb0] sm:$0xff]
    %v916 = vld [vmem:[#allocation2 + $0xb8] sm:$0xff]
    %v917 = vld [vmem:[#allocation2 + $0xc0] sm:$0xff]
    %v918 = vld [vmem:[#allocation2 + $0xc8] sm:$0xff]
    %v919 = vld [vmem:[#allocation2 + $0xd0] sm:$0xff]
    %v920 = vld [vmem:[#allocation2 + $0xd8] sm:$0xff]
    %v921 = vld [vmem:[#allocation2 + $0xe0] sm:$0xff]
    %v922 = vld [vmem:[#allocation2 + $0xe8] sm:$0xff]
    %v923 = vld [vmem:[#allocation2 + $0xf0] sm:$0xff]
    %v924 = vld [vmem:[#allocation2 + $0xf8] sm:$0xff]
    %v925 = vld [vmem:[#allocation2 + $0x100] sm:$0xff]
    %v926 = vld [vmem:[#allocation2 + $0x108] sm:$0xff]
    %v927 = vld [vmem:[#allocation2 + $0x110] sm:$0xff]
    %v928 = vld [vmem:[#allocation2 + $0x118] sm:$0xff]
    %v929 = vld [vmem:[#allocation2 + $0x120] sm:$0xff]
    %v930 = vld [vmem:[#allocation2 + $0x128] sm:$0xff]
    %v931 = vld [vmem:[#allocation2 + $0x130] sm:$0xff]
    %v932 = vld [vmem:[#allocation2 + $0x138] sm:$0xff]
    %v933 = vld [vmem:[#allocation2 + $0x140] sm:$0xff]
    %v934 = vld [vmem:[#allocation2 + $0x148] sm:$0xff]
    %v935 = vld [vmem:[#allocation2 + $0x150] sm:$0xff]
    %v936 = vld [vmem:[#allocation2 + $0x158] sm:$0xff]
    %v937 = vld [vmem:[#allocation2 + $0x160] sm:$0xff]
    %v938 = vld [vmem:[#allocation2 + $0x168] sm:$0xff]
    %v939 = vld [vmem:[#allocation2 + $0x170] sm:$0xff]
    %v940 = vld [vmem:[#allocation2 + $0x178] sm:$0xff]
    %v941 = vld [vmem:[#allocation2 + $0x180] sm:$0xff]
    %v942 = vld [vmem:[#allocation2 + $0x188] sm:$0xff]
    %v943 = vld [vmem:[#allocation2 + $0x190] sm:$0xff]
    %v944 = vld [vmem:[#allocation2 + $0x198] sm:$0xff]
    %v945 = vld [vmem:[#allocation2 + $0x1a0] sm:$0xff]
    %v946 = vld [vmem:[#allocation2 + $0x1a8] sm:$0xff]
    %v947 = vld [vmem:[#allocation2 + $0x1b0] sm:$0xff]
    %v948 = vld [vmem:[#allocation2 + $0x1b8] sm:$0xff]
    %v949 = vld [vmem:[#allocation2 + $0x1c0] sm:$0xff]
    %v950 = vld [vmem:[#allocation2 + $0x1c8] sm:$0xff]
    %v951 = vld [vmem:[#allocation2 + $0x1d0] sm:$0xff]
    %v952 = vld [vmem:[#allocation2 + $0x1d8] sm:$0xff]
    %v953 = vld [vmem:[#allocation2 + $0x1e0] sm:$0xff]
    %v954 = vld [vmem:[#allocation2 + $0x1e8] sm:$0xff]
    %v955 = vld [vmem:[#allocation2 + $0x1f0] sm:$0xff]
    %v956 = vld [vmem:[#allocation2 + $0x1f8] sm:$0xff]
    %v957 = vld [vmem:[%s2] sm:$0x1]
    %v959 = vlaneseq
    %v960 = vshrl.u32 %v959, 7
    %v961 = vsub.s32 0, %v960
    %v962 = vrot.slane %v957, %v961
    %v964 = vmul.f32 %v893, %v962
    %v965 = vmul.f32 %v894, %v962
    %v966 = vmul.f32 %v895, %v962
    %v967 = vmul.f32 %v896, %v962
    %v968 = vmul.f32 %v897, %v962
    %v969 = vmul.f32 %v898, %v962
    %v970 = vmul.f32 %v899, %v962
    %v971 = vmul.f32 %v900, %v962
    %v972 = vmul.f32 %v901, %v962
    %v973 = vmul.f32 %v902, %v962
    %v974 = vmul.f32 %v903, %v962
    %v975 = vmul.f32 %v904, %v962
    %v976 = vmul.f32 %v905, %v962
    %v977 = vmul.f32 %v906, %v962
    %v978 = vmul.f32 %v907, %v962
    %v979 = vmul.f32 %v908, %v962
    %v980 = vmul.f32 %v909, %v962
    %v981 = vmul.f32 %v910, %v962
    %v982 = vmul.f32 %v911, %v962
    %v983 = vmul.f32 %v912, %v962
    %v984 = vmul.f32 %v913, %v962
    %v985 = vmul.f32 %v914, %v962
    %v986 = vmul.f32 %v915, %v962
    %v987 = vmul.f32 %v916, %v962
    %v988 = vmul.f32 %v917, %v962
    %v989 = vmul.f32 %v918, %v962
    %v990 = vmul.f32 %v919, %v962
    %v991 = vmul.f32 %v920, %v962
    %v992 = vmul.f32 %v921, %v962
    %v993 = vmul.f32 %v922, %v962
    %v994 = vmul.f32 %v923, %v962
    %v995 = vmul.f32 %v924, %v962
    %v996 = vmul.f32 %v925, %v962
    %v997 = vmul.f32 %v926, %v962
    %v998 = vmul.f32 %v927, %v962
    %v999 = vmul.f32 %v928, %v962
    %v1000 = vmul.f32 %v929, %v962
    %v1001 = vmul.f32 %v930, %v962
    %v1002 = vmul.f32 %v931, %v962
    %v1003 = vmul.f32 %v932, %v962
    %v1004 = vmul.f32 %v933, %v962
    %v1005 = vmul.f32 %v934, %v962
    %v1006 = vmul.f32 %v935, %v962
    %v1007 = vmul.f32 %v936, %v962
    %v1008 = vmul.f32 %v937, %v962
    %v1009 = vmul.f32 %v938, %v962
    %v1010 = vmul.f32 %v939, %v962
    %v1011 = vmul.f32 %v940, %v962
    %v1012 = vmul.f32 %v941, %v962
    %v1013 = vmul.f32 %v942, %v962
    %v1014 = vmul.f32 %v943, %v962
    %v1015 = vmul.f32 %v944, %v962
    %v1016 = vmul.f32 %v945, %v962
    %v1017 = vmul.f32 %v946, %v962
    %v1018 = vmul.f32 %v947, %v962
    %v1019 = vmul.f32 %v948, %v962
    %v1020 = vmul.f32 %v949, %v962
    %v1021 = vmul.f32 %v950, %v962
    %v1022 = vmul.f32 %v951, %v962
    %v1023 = vmul.f32 %v952, %v962
    %v1024 = vmul.f32 %v953, %v962
    %v1025 = vmul.f32 %v954, %v962
    %v1026 = vmul.f32 %v955, %v962
    %v1027 = vmul.f32 %v956, %v962
    %v1028 = vld [vmem:[%s3] sm:$0x1]
    %v1030 = vlaneseq
    %v1031 = vshrl.u32 %v1030, 7
    %v1032 = vsub.s32 0, %v1031
    %v1033 = vrot.slane %v1028, %v1032
    %v1035 = vadd.f32 %v964, %v1033
    %v1036 = vadd.f32 %v965, %v1033
    %v1037 = vadd.f32 %v966, %v1033
    %v1038 = vadd.f32 %v967, %v1033
    %v1039 = vadd.f32 %v968, %v1033
    %v1040 = vadd.f32 %v969, %v1033
    %v1041 = vadd.f32 %v970, %v1033
    %v1042 = vadd.f32 %v971, %v1033
    %v1043 = vadd.f32 %v972, %v1033
    %v1044 = vadd.f32 %v973, %v1033
    %v1045 = vadd.f32 %v974, %v1033
    %v1046 = vadd.f32 %v975, %v1033
    %v1047 = vadd.f32 %v976, %v1033
    %v1048 = vadd.f32 %v977, %v1033
    %v1049 = vadd.f32 %v978, %v1033
    %v1050 = vadd.f32 %v979, %v1033
    %v1051 = vadd.f32 %v980, %v1033
    %v1052 = vadd.f32 %v981, %v1033
    %v1053 = vadd.f32 %v982, %v1033
    %v1054 = vadd.f32 %v983, %v1033
    %v1055 = vadd.f32 %v984, %v1033
    %v1056 = vadd.f32 %v985, %v1033
    %v1057 = vadd.f32 %v986, %v1033
    %v1058 = vadd.f32 %v987, %v1033
    %v1059 = vadd.f32 %v988, %v1033
    %v1060 = vadd.f32 %v989, %v1033
    %v1061 = vadd.f32 %v990, %v1033
    %v1062 = vadd.f32 %v991, %v1033
    %v1063 = vadd.f32 %v992, %v1033
    %v1064 = vadd.f32 %v993, %v1033
    %v1065 = vadd.f32 %v994, %v1033
    %v1066 = vadd.f32 %v995, %v1033
    %v1067 = vadd.f32 %v996, %v1033
    %v1068 = vadd.f32 %v997, %v1033
    %v1069 = vadd.f32 %v998, %v1033
    %v1070 = vadd.f32 %v999, %v1033
    %v1071 = vadd.f32 %v1000, %v1033
    %v1072 = vadd.f32 %v1001, %v1033
    %v1073 = vadd.f32 %v1002, %v1033
    %v1074 = vadd.f32 %v1003, %v1033
    %v1075 = vadd.f32 %v1004, %v1033
    %v1076 = vadd.f32 %v1005, %v1033
    %v1077 = vadd.f32 %v1006, %v1033
    %v1078 = vadd.f32 %v1007, %v1033
    %v1079 = vadd.f32 %v1008, %v1033
    %v1080 = vadd.f32 %v1009, %v1033
    %v1081 = vadd.f32 %v1010, %v1033
    %v1082 = vadd.f32 %v1011, %v1033
    %v1083 = vadd.f32 %v1012, %v1033
    %v1084 = vadd.f32 %v1013, %v1033
    %v1085 = vadd.f32 %v1014, %v1033
    %v1086 = vadd.f32 %v1015, %v1033
    %v1087 = vadd.f32 %v1016, %v1033
    %v1088 = vadd.f32 %v1017, %v1033
    %v1089 = vadd.f32 %v1018, %v1033
    %v1090 = vadd.f32 %v1019, %v1033
    %v1091 = vadd.f32 %v1020, %v1033
    %v1092 = vadd.f32 %v1021, %v1033
    %v1093 = vadd.f32 %v1022, %v1033
    %v1094 = vadd.f32 %v1023, %v1033
    %v1095 = vadd.f32 %v1024, %v1033
    %v1096 = vadd.f32 %v1025, %v1033
    %v1097 = vadd.f32 %v1026, %v1033
    %v1098 = vadd.f32 %v1027, %v1033
    %vm1099 = vcmp.ge.f32.partialorder %v1035, 0.0
    %vm1100 = vcmp.ge.f32.partialorder %v1036, 0.0
    %vm1101 = vcmp.ge.f32.partialorder %v1037, 0.0
    %vm1102 = vcmp.ge.f32.partialorder %v1038, 0.0
    %vm1103 = vcmp.ge.f32.partialorder %v1039, 0.0
    %vm1104 = vcmp.ge.f32.partialorder %v1040, 0.0
    %vm1105 = vcmp.ge.f32.partialorder %v1041, 0.0
    %vm1106 = vcmp.ge.f32.partialorder %v1042, 0.0
    %vm1107 = vcmp.ge.f32.partialorder %v1043, 0.0
    %vm1108 = vcmp.ge.f32.partialorder %v1044, 0.0
    %vm1109 = vcmp.ge.f32.partialorder %v1045, 0.0
    %vm1110 = vcmp.ge.f32.partialorder %v1046, 0.0
    %vm1111 = vcmp.ge.f32.partialorder %v1047, 0.0
    %vm1112 = vcmp.ge.f32.partialorder %v1048, 0.0
    %vm1113 = vcmp.ge.f32.partialorder %v1049, 0.0
    %vm1114 = vcmp.ge.f32.partialorder %v1050, 0.0
    %vm1115 = vcmp.ge.f32.partialorder %v1051, 0.0
    %vm1116 = vcmp.ge.f32.partialorder %v1052, 0.0
    %vm1117 = vcmp.ge.f32.partialorder %v1053, 0.0
    %vm1118 = vcmp.ge.f32.partialorder %v1054, 0.0
    %vm1119 = vcmp.ge.f32.partialorder %v1055, 0.0
    %vm1120 = vcmp.ge.f32.partialorder %v1056, 0.0
    %vm1121 = vcmp.ge.f32.partialorder %v1057, 0.0
    %vm1122 = vcmp.ge.f32.partialorder %v1058, 0.0
    %vm1123 = vcmp.ge.f32.partialorder %v1059, 0.0
    %vm1124 = vcmp.ge.f32.partialorder %v1060, 0.0
    %vm1125 = vcmp.ge.f32.partialorder %v1061, 0.0
    %vm1126 = vcmp.ge.f32.partialorder %v1062, 0.0
    %vm1127 = vcmp.ge.f32.partialorder %v1063, 0.0
    %vm1128 = vcmp.ge.f32.partialorder %v1064, 0.0
    %vm1129 = vcmp.ge.f32.partialorder %v1065, 0.0
    %vm1130 = vcmp.ge.f32.partialorder %v1066, 0.0
    %vm1131 = vcmp.ge.f32.partialorder %v1067, 0.0
    %vm1132 = vcmp.ge.f32.partialorder %v1068, 0.0
    %vm1133 = vcmp.ge.f32.partialorder %v1069, 0.0
    %vm1134 = vcmp.ge.f32.partialorder %v1070, 0.0
    %vm1135 = vcmp.ge.f32.partialorder %v1071, 0.0
    %vm1136 = vcmp.ge.f32.partialorder %v1072, 0.0
    %vm1137 = vcmp.ge.f32.partialorder %v1073, 0.0
    %vm1138 = vcmp.ge.f32.partialorder %v1074, 0.0
    %vm1139 = vcmp.ge.f32.partialorder %v1075, 0.0
    %vm1140 = vcmp.ge.f32.partialorder %v1076, 0.0
    %vm1141 = vcmp.ge.f32.partialorder %v1077, 0.0
    %vm1142 = vcmp.ge.f32.partialorder %v1078, 0.0
    %vm1143 = vcmp.ge.f32.partialorder %v1079, 0.0
    %vm1144 = vcmp.ge.f32.partialorder %v1080, 0.0
    %vm1145 = vcmp.ge.f32.partialorder %v1081, 0.0
    %vm1146 = vcmp.ge.f32.partialorder %v1082, 0.0
    %vm1147 = vcmp.ge.f32.partialorder %v1083, 0.0
    %vm1148 = vcmp.ge.f32.partialorder %v1084, 0.0
    %vm1149 = vcmp.ge.f32.partialorder %v1085, 0.0
    %vm1150 = vcmp.ge.f32.partialorder %v1086, 0.0
    %vm1151 = vcmp.ge.f32.partialorder %v1087, 0.0
    %vm1152 = vcmp.ge.f32.partialorder %v1088, 0.0
    %vm1153 = vcmp.ge.f32.partialorder %v1089, 0.0
    %vm1154 = vcmp.ge.f32.partialorder %v1090, 0.0
    %vm1155 = vcmp.ge.f32.partialorder %v1091, 0.0
    %vm1156 = vcmp.ge.f32.partialorder %v1092, 0.0
    %vm1157 = vcmp.ge.f32.partialorder %v1093, 0.0
    %vm1158 = vcmp.ge.f32.partialorder %v1094, 0.0
    %vm1159 = vcmp.ge.f32.partialorder %v1095, 0.0
    %vm1160 = vcmp.ge.f32.partialorder %v1096, 0.0
    %vm1161 = vcmp.ge.f32.partialorder %v1097, 0.0
    %vm1162 = vcmp.ge.f32.partialorder %v1098, 0.0
    %v1163 = vmul.f32 %v1035, 0.2
    %v1164 = vmul.f32 %v1036, 0.2
    %v1165 = vmul.f32 %v1037, 0.2
    %v1166 = vmul.f32 %v1038, 0.2
    %v1167 = vmul.f32 %v1039, 0.2
    %v1168 = vmul.f32 %v1040, 0.2
    %v1169 = vmul.f32 %v1041, 0.2
    %v1170 = vmul.f32 %v1042, 0.2
    %v1171 = vmul.f32 %v1043, 0.2
    %v1172 = vmul.f32 %v1044, 0.2
    %v1173 = vmul.f32 %v1045, 0.2
    %v1174 = vmul.f32 %v1046, 0.2
    %v1175 = vmul.f32 %v1047, 0.2
    %v1176 = vmul.f32 %v1048, 0.2
    %v1177 = vmul.f32 %v1049, 0.2
    %v1178 = vmul.f32 %v1050, 0.2
    %v1179 = vmul.f32 %v1051, 0.2
    %v1180 = vmul.f32 %v1052, 0.2
    %v1181 = vmul.f32 %v1053, 0.2
    %v1182 = vmul.f32 %v1054, 0.2
    %v1183 = vmul.f32 %v1055, 0.2
    %v1184 = vmul.f32 %v1056, 0.2
    %v1185 = vmul.f32 %v1057, 0.2
    %v1186 = vmul.f32 %v1058, 0.2
    %v1187 = vmul.f32 %v1059, 0.2
    %v1188 = vmul.f32 %v1060, 0.2
    %v1189 = vmul.f32 %v1061, 0.2
    %v1190 = vmul.f32 %v1062, 0.2
    %v1191 = vmul.f32 %v1063, 0.2
    %v1192 = vmul.f32 %v1064, 0.2
    %v1193 = vmul.f32 %v1065, 0.2
    %v1194 = vmul.f32 %v1066, 0.2
    %v1195 = vmul.f32 %v1067, 0.2
    %v1196 = vmul.f32 %v1068, 0.2
    %v1197 = vmul.f32 %v1069, 0.2
    %v1198 = vmul.f32 %v1070, 0.2
    %v1199 = vmul.f32 %v1071, 0.2
    %v1200 = vmul.f32 %v1072, 0.2
    %v1201 = vmul.f32 %v1073, 0.2
    %v1202 = vmul.f32 %v1074, 0.2
    %v1203 = vmul.f32 %v1075, 0.2
    %v1204 = vmul.f32 %v1076, 0.2
    %v1205 = vmul.f32 %v1077, 0.2
    %v1206 = vmul.f32 %v1078, 0.2
    %v1207 = vmul.f32 %v1079, 0.2
    %v1208 = vmul.f32 %v1080, 0.2
    %v1209 = vmul.f32 %v1081, 0.2
    %v1210 = vmul.f32 %v1082, 0.2
    %v1211 = vmul.f32 %v1083, 0.2
    %v1212 = vmul.f32 %v1084, 0.2
    %v1213 = vmul.f32 %v1085, 0.2
    %v1214 = vmul.f32 %v1086, 0.2
    %v1215 = vmul.f32 %v1087, 0.2
    %v1216 = vmul.f32 %v1088, 0.2
    %v1217 = vmul.f32 %v1089, 0.2
    %v1218 = vmul.f32 %v1090, 0.2
    %v1219 = vmul.f32 %v1091, 0.2
    %v1220 = vmul.f32 %v1092, 0.2
    %v1221 = vmul.f32 %v1093, 0.2
    %v1222 = vmul.f32 %v1094, 0.2
    %v1223 = vmul.f32 %v1095, 0.2
    %v1224 = vmul.f32 %v1096, 0.2
    %v1225 = vmul.f32 %v1097, 0.2
    %v1226 = vmul.f32 %v1098, 0.2
    %v1227 = vsel %vm1099, %v1035, %v1163
    %v1228 = vsel %vm1100, %v1036, %v1164
    %v1229 = vsel %vm1101, %v1037, %v1165
    %v1230 = vsel %vm1102, %v1038, %v1166
    %v1231 = vsel %vm1103, %v1039, %v1167
    %v1232 = vsel %vm1104, %v1040, %v1168
    %v1233 = vsel %vm1105, %v1041, %v1169
    %v1234 = vsel %vm1106, %v1042, %v1170
    %v1235 = vsel %vm1107, %v1043, %v1171
    %v1236 = vsel %vm1108, %v1044, %v1172
    %v1237 = vsel %vm1109, %v1045, %v1173
    %v1238 = vsel %vm1110, %v1046, %v1174
    %v1239 = vsel %vm1111, %v1047, %v1175
    %v1240 = vsel %vm1112, %v1048, %v1176
    %v1241 = vsel %vm1113, %v1049, %v1177
    %v1242 = vsel %vm1114, %v1050, %v1178
    %v1243 = vsel %vm1115, %v1051, %v1179
    %v1244 = vsel %vm1116, %v1052, %v1180
    %v1245 = vsel %vm1117, %v1053, %v1181
    %v1246 = vsel %vm1118, %v1054, %v1182
    %v1247 = vsel %vm1119, %v1055, %v1183
    %v1248 = vsel %vm1120, %v1056, %v1184
    %v1249 = vsel %vm1121, %v1057, %v1185
    %v1250 = vsel %vm1122, %v1058, %v1186
    %v1251 = vsel %vm1123, %v1059, %v1187
    %v1252 = vsel %vm1124, %v1060, %v1188
    %v1253 = vsel %vm1125, %v1061, %v1189
    %v1254 = vsel %vm1126, %v1062, %v1190
    %v1255 = vsel %vm1127, %v1063, %v1191
    %v1256 = vsel %vm1128, %v1064, %v1192
    %v1257 = vsel %vm1129, %v1065, %v1193
    %v1258 = vsel %vm1130, %v1066, %v1194
    %v1259 = vsel %vm1131, %v1067, %v1195
    %v1260 = vsel %vm1132, %v1068, %v1196
    %v1261 = vsel %vm1133, %v1069, %v1197
    %v1262 = vsel %vm1134, %v1070, %v1198
    %v1263 = vsel %vm1135, %v1071, %v1199
    %v1264 = vsel %vm1136, %v1072, %v1200
    %v1265 = vsel %vm1137, %v1073, %v1201
    %v1266 = vsel %vm1138, %v1074, %v1202
    %v1267 = vsel %vm1139, %v1075, %v1203
    %v1268 = vsel %vm1140, %v1076, %v1204
    %v1269 = vsel %vm1141, %v1077, %v1205
    %v1270 = vsel %vm1142, %v1078, %v1206
    %v1271 = vsel %vm1143, %v1079, %v1207
    %v1272 = vsel %vm1144, %v1080, %v1208
    %v1273 = vsel %vm1145, %v1081, %v1209
    %v1274 = vsel %vm1146, %v1082, %v1210
    %v1275 = vsel %vm1147, %v1083, %v1211
    %v1276 = vsel %vm1148, %v1084, %v1212
    %v1277 = vsel %vm1149, %v1085, %v1213
    %v1278 = vsel %vm1150, %v1086, %v1214
    %v1279 = vsel %vm1151, %v1087, %v1215
    %v1280 = vsel %vm1152, %v1088, %v1216
    %v1281 = vsel %vm1153, %v1089, %v1217
    %v1282 = vsel %vm1154, %v1090, %v1218
    %v1283 = vsel %vm1155, %v1091, %v1219
    %v1284 = vsel %vm1156, %v1092, %v1220
    %v1285 = vsel %vm1157, %v1093, %v1221
    %v1286 = vsel %vm1158, %v1094, %v1222
    %v1287 = vsel %vm1159, %v1095, %v1223
    %v1288 = vsel %vm1160, %v1096, %v1224
    %v1289 = vsel %vm1161, %v1097, %v1225
    %v1290 = vsel %vm1162, %v1098, %v1226
    %v1291 = vld [vmem:[%s4] sm:$0x1]
    %v1293 = vlaneseq
    %v1294 = vshrl.u32 %v1293, 7
    %v1295 = vsub.s32 0, %v1294
    %v1296 = vrot.slane %v1291, %v1295
    %v1298 = vmul.f32 %v1227, %v1296
    %v1299 = vmul.f32 %v1228, %v1296
    %v1300 = vmul.f32 %v1229, %v1296
    %v1301 = vmul.f32 %v1230, %v1296
    %v1302 = vmul.f32 %v1231, %v1296
    %v1303 = vmul.f32 %v1232, %v1296
    %v1304 = vmul.f32 %v1233, %v1296
    %v1305 = vmul.f32 %v1234, %v1296
    %v1306 = vmul.f32 %v1235, %v1296
    %v1307 = vmul.f32 %v1236, %v1296
    %v1308 = vmul.f32 %v1237, %v1296
    %v1309 = vmul.f32 %v1238, %v1296
    %v1310 = vmul.f32 %v1239, %v1296
    %v1311 = vmul.f32 %v1240, %v1296
    %v1312 = vmul.f32 %v1241, %v1296
    %v1313 = vmul.f32 %v1242, %v1296
    %v1314 = vmul.f32 %v1243, %v1296
    %v1315 = vmul.f32 %v1244, %v1296
    %v1316 = vmul.f32 %v1245, %v1296
    %v1317 = vmul.f32 %v1246, %v1296
    %v1318 = vmul.f32 %v1247, %v1296
    %v1319 = vmul.f32 %v1248, %v1296
    %v1320 = vmul.f32 %v1249, %v1296
    %v1321 = vmul.f32 %v1250, %v1296
    %v1322 = vmul.f32 %v1251, %v1296
    %v1323 = vmul.f32 %v1252, %v1296
    %v1324 = vmul.f32 %v1253, %v1296
    %v1325 = vmul.f32 %v1254, %v1296
    %v1326 = vmul.f32 %v1255, %v1296
    %v1327 = vmul.f32 %v1256, %v1296
    %v1328 = vmul.f32 %v1257, %v1296
    %v1329 = vmul.f32 %v1258, %v1296
    %v1330 = vmul.f32 %v1259, %v1296
    %v1331 = vmul.f32 %v1260, %v1296
    %v1332 = vmul.f32 %v1261, %v1296
    %v1333 = vmul.f32 %v1262, %v1296
    %v1334 = vmul.f32 %v1263, %v1296
    %v1335 = vmul.f32 %v1264, %v1296
    %v1336 = vmul.f32 %v1265, %v1296
    %v1337 = vmul.f32 %v1266, %v1296
    %v1338 = vmul.f32 %v1267, %v1296
    %v1339 = vmul.f32 %v1268, %v1296
    %v1340 = vmul.f32 %v1269, %v1296
    %v1341 = vmul.f32 %v1270, %v1296
    %v1342 = vmul.f32 %v1271, %v1296
    %v1343 = vmul.f32 %v1272, %v1296
    %v1344 = vmul.f32 %v1273, %v1296
    %v1345 = vmul.f32 %v1274, %v1296
    %v1346 = vmul.f32 %v1275, %v1296
    %v1347 = vmul.f32 %v1276, %v1296
    %v1348 = vmul.f32 %v1277, %v1296
    %v1349 = vmul.f32 %v1278, %v1296
    %v1350 = vmul.f32 %v1279, %v1296
    %v1351 = vmul.f32 %v1280, %v1296
    %v1352 = vmul.f32 %v1281, %v1296
    %v1353 = vmul.f32 %v1282, %v1296
    %v1354 = vmul.f32 %v1283, %v1296
    %v1355 = vmul.f32 %v1284, %v1296
    %v1356 = vmul.f32 %v1285, %v1296
    %v1357 = vmul.f32 %v1286, %v1296
    %v1358 = vmul.f32 %v1287, %v1296
    %v1359 = vmul.f32 %v1288, %v1296
    %v1360 = vmul.f32 %v1289, %v1296
    %v1361 = vmul.f32 %v1290, %v1296
    %v1362 = vpack.c.bf16 %v1299, %v1298
    %v1363 = vpack.c.bf16 %v1301, %v1300
    %v1364 = vpack.c.bf16 %v1303, %v1302
    %v1365 = vpack.c.bf16 %v1305, %v1304
    %v1366 = vpack.c.bf16 %v1307, %v1306
    %v1367 = vpack.c.bf16 %v1309, %v1308
    %v1368 = vpack.c.bf16 %v1311, %v1310
    %v1369 = vpack.c.bf16 %v1313, %v1312
    %v1370 = vpack.c.bf16 %v1315, %v1314
    %v1371 = vpack.c.bf16 %v1317, %v1316
    %v1372 = vpack.c.bf16 %v1319, %v1318
    %v1373 = vpack.c.bf16 %v1321, %v1320
    %v1374 = vpack.c.bf16 %v1323, %v1322
    %v1375 = vpack.c.bf16 %v1325, %v1324
    %v1376 = vpack.c.bf16 %v1327, %v1326
    %v1377 = vpack.c.bf16 %v1329, %v1328
    %v1378 = vpack.c.bf16 %v1331, %v1330
    %v1379 = vpack.c.bf16 %v1333, %v1332
    %v1380 = vpack.c.bf16 %v1335, %v1334
    %v1381 = vpack.c.bf16 %v1337, %v1336
    %v1382 = vpack.c.bf16 %v1339, %v1338
    %v1383 = vpack.c.bf16 %v1341, %v1340
    %v1384 = vpack.c.bf16 %v1343, %v1342
    %v1385 = vpack.c.bf16 %v1345, %v1344
    %v1386 = vpack.c.bf16 %v1347, %v1346
    %v1387 = vpack.c.bf16 %v1349, %v1348
    %v1388 = vpack.c.bf16 %v1351, %v1350
    %v1389 = vpack.c.bf16 %v1353, %v1352
    %v1390 = vpack.c.bf16 %v1355, %v1354
    %v1391 = vpack.c.bf16 %v1357, %v1356
    %v1392 = vpack.c.bf16 %v1359, %v1358
    %v1393 = vpack.c.bf16 %v1361, %v1360
    %v1426 = vunpack.c.l.b16 %v1362
    %v1427 = vunpack.c.h.b16 %v1362
    %v1428 = vunpack.c.l.b16 %v1363
    %v1429 = vunpack.c.h.b16 %v1363
    %v1430 = vunpack.c.l.b16 %v1364
    %v1431 = vunpack.c.h.b16 %v1364
    %v1432 = vunpack.c.l.b16 %v1365
    %v1433 = vunpack.c.h.b16 %v1365
    %v1434 = vunpack.c.l.b16 %v1366
    %v1435 = vunpack.c.h.b16 %v1366
    %v1436 = vunpack.c.l.b16 %v1367
    %v1437 = vunpack.c.h.b16 %v1367
    %v1438 = vunpack.c.l.b16 %v1368
    %v1439 = vunpack.c.h.b16 %v1368
    %v1440 = vunpack.c.l.b16 %v1369
    %v1441 = vunpack.c.h.b16 %v1369
    %v1442 = vunpack.c.l.b16 %v1370
    %v1443 = vunpack.c.h.b16 %v1370
    %v1444 = vunpack.c.l.b16 %v1371
    %v1445 = vunpack.c.h.b16 %v1371
    %v1446 = vunpack.c.l.b16 %v1372
    %v1447 = vunpack.c.h.b16 %v1372
    %v1448 = vunpack.c.l.b16 %v1373
    %v1449 = vunpack.c.h.b16 %v1373
    %v1450 = vunpack.c.l.b16 %v1374
    %v1451 = vunpack.c.h.b16 %v1374
    %v1452 = vunpack.c.l.b16 %v1375
    %v1453 = vunpack.c.h.b16 %v1375
    %v1454 = vunpack.c.l.b16 %v1376
    %v1455 = vunpack.c.h.b16 %v1376
    %v1456 = vunpack.c.l.b16 %v1377
    %v1457 = vunpack.c.h.b16 %v1377
    %v1458 = vunpack.c.l.b16 %v1378
    %v1459 = vunpack.c.h.b16 %v1378
    %v1460 = vunpack.c.l.b16 %v1379
    %v1461 = vunpack.c.h.b16 %v1379
    %v1462 = vunpack.c.l.b16 %v1380
    %v1463 = vunpack.c.h.b16 %v1380
    %v1464 = vunpack.c.l.b16 %v1381
    %v1465 = vunpack.c.h.b16 %v1381
    %v1466 = vunpack.c.l.b16 %v1382
    %v1467 = vunpack.c.h.b16 %v1382
    %v1468 = vunpack.c.l.b16 %v1383
    %v1469 = vunpack.c.h.b16 %v1383
    %v1470 = vunpack.c.l.b16 %v1384
    %v1471 = vunpack.c.h.b16 %v1384
    %v1472 = vunpack.c.l.b16 %v1385
    %v1473 = vunpack.c.h.b16 %v1385
    %v1474 = vunpack.c.l.b16 %v1386
    %v1475 = vunpack.c.h.b16 %v1386
    %v1476 = vunpack.c.l.b16 %v1387
    %v1477 = vunpack.c.h.b16 %v1387
    %v1478 = vunpack.c.l.b16 %v1388
    %v1479 = vunpack.c.h.b16 %v1388
    %v1480 = vunpack.c.l.b16 %v1389
    %v1481 = vunpack.c.h.b16 %v1389
    %v1482 = vunpack.c.l.b16 %v1390
    %v1483 = vunpack.c.h.b16 %v1390
    %v1484 = vunpack.c.l.b16 %v1391
    %v1485 = vunpack.c.h.b16 %v1391
    %v1486 = vunpack.c.l.b16 %v1392
    %v1487 = vunpack.c.h.b16 %v1392
    %v1488 = vunpack.c.l.b16 %v1393
    %v1489 = vunpack.c.h.b16 %v1393
    %v1490 = vpack.c.b16 %v1426, %v1426
    %v1491 = vpack.c.b16 %v1427, %v1427
    %v1492 = vpack.c.b16 %v1428, %v1428
    %v1493 = vpack.c.b16 %v1429, %v1429
    %v1494 = vpack.c.b16 %v1430, %v1430
    %v1495 = vpack.c.b16 %v1431, %v1431
    %v1496 = vpack.c.b16 %v1432, %v1432
    %v1497 = vpack.c.b16 %v1433, %v1433
    %v1498 = vpack.c.b16 %v1434, %v1434
    %v1499 = vpack.c.b16 %v1435, %v1435
    %v1500 = vpack.c.b16 %v1436, %v1436
    %v1501 = vpack.c.b16 %v1437, %v1437
    %v1502 = vpack.c.b16 %v1438, %v1438
    %v1503 = vpack.c.b16 %v1439, %v1439
    %v1504 = vpack.c.b16 %v1440, %v1440
    %v1505 = vpack.c.b16 %v1441, %v1441
    %v1506 = vpack.c.b16 %v1442, %v1442
    %v1507 = vpack.c.b16 %v1443, %v1443
    %v1508 = vpack.c.b16 %v1444, %v1444
    %v1509 = vpack.c.b16 %v1445, %v1445
    %v1510 = vpack.c.b16 %v1446, %v1446
    %v1511 = vpack.c.b16 %v1447, %v1447
    %v1512 = vpack.c.b16 %v1448, %v1448
    %v1513 = vpack.c.b16 %v1449, %v1449
    %v1514 = vpack.c.b16 %v1450, %v1450
    %v1515 = vpack.c.b16 %v1451, %v1451
    %v1516 = vpack.c.b16 %v1452, %v1452
    %v1517 = vpack.c.b16 %v1453, %v1453
    %v1518 = vpack.c.b16 %v1454, %v1454
    %v1519 = vpack.c.b16 %v1455, %v1455
    %v1520 = vpack.c.b16 %v1456, %v1456
    %v1521 = vpack.c.b16 %v1457, %v1457
    %v1522 = vpack.c.b16 %v1458, %v1458
    %v1523 = vpack.c.b16 %v1459, %v1459
    %v1524 = vpack.c.b16 %v1460, %v1460
    %v1525 = vpack.c.b16 %v1461, %v1461
    %v1526 = vpack.c.b16 %v1462, %v1462
    %v1527 = vpack.c.b16 %v1463, %v1463
    %v1528 = vpack.c.b16 %v1464, %v1464
    %v1529 = vpack.c.b16 %v1465, %v1465
    %v1530 = vpack.c.b16 %v1466, %v1466
    %v1531 = vpack.c.b16 %v1467, %v1467
    %v1532 = vpack.c.b16 %v1468, %v1468
    %v1533 = vpack.c.b16 %v1469, %v1469
    %v1534 = vpack.c.b16 %v1470, %v1470
    %v1535 = vpack.c.b16 %v1471, %v1471
    %v1536 = vpack.c.b16 %v1472, %v1472
    %v1537 = vpack.c.b16 %v1473, %v1473
    %v1538 = vpack.c.b16 %v1474, %v1474
    %v1539 = vpack.c.b16 %v1475, %v1475
    %v1540 = vpack.c.b16 %v1476, %v1476
    %v1541 = vpack.c.b16 %v1477, %v1477
    %v1542 = vpack.c.b16 %v1478, %v1478
    %v1543 = vpack.c.b16 %v1479, %v1479
    %v1544 = vpack.c.b16 %v1480, %v1480
    %v1545 = vpack.c.b16 %v1481, %v1481
    %v1546 = vpack.c.b16 %v1482, %v1482
    %v1547 = vpack.c.b16 %v1483, %v1483
    %v1548 = vpack.c.b16 %v1484, %v1484
    %v1549 = vpack.c.b16 %v1485, %v1485
    %v1550 = vpack.c.b16 %v1486, %v1486
    %v1551 = vpack.c.b16 %v1487, %v1487
    %v1552 = vpack.c.b16 %v1488, %v1488
    %v1553 = vpack.c.b16 %v1489, %v1489
    %1618 = vst [vmem:[%s5] sm:$0xf] %v1490
    %1619 = vst [vmem:[%s5 + $0x4] sm:$0xf] %v1491
    %1620 = vst [vmem:[%s5 + $0x8] sm:$0xf] %v1492
    %1621 = vst [vmem:[%s5 + $0xc] sm:$0xf] %v1493
    %1622 = vst [vmem:[%s5 + $0x10] sm:$0xf] %v1494
    %1623 = vst [vmem:[%s5 + $0x14] sm:$0xf] %v1495
    %1624 = vst [vmem:[%s5 + $0x18] sm:$0xf] %v1496
    %1625 = vst [vmem:[%s5 + $0x1c] sm:$0xf] %v1497
    %1626 = vst [vmem:[%s5 + $0x20] sm:$0xf] %v1498
    %1627 = vst [vmem:[%s5 + $0x24] sm:$0xf] %v1499
    %1628 = vst [vmem:[%s5 + $0x28] sm:$0xf] %v1500
    %1629 = vst [vmem:[%s5 + $0x2c] sm:$0xf] %v1501
    %1630 = vst [vmem:[%s5 + $0x30] sm:$0xf] %v1502
    %1631 = vst [vmem:[%s5 + $0x34] sm:$0xf] %v1503
    %1632 = vst [vmem:[%s5 + $0x38] sm:$0xf] %v1504
    %1633 = vst [vmem:[%s5 + $0x3c] sm:$0xf] %v1505
    %1634 = vst [vmem:[%s5 + $0x40] sm:$0xf] %v1506
    %1635 = vst [vmem:[%s5 + $0x44] sm:$0xf] %v1507
    %1636 = vst [vmem:[%s5 + $0x48] sm:$0xf] %v1508
    %1637 = vst [vmem:[%s5 + $0x4c] sm:$0xf] %v1509
    %1638 = vst [vmem:[%s5 + $0x50] sm:$0xf] %v1510
    %1639 = vst [vmem:[%s5 + $0x54] sm:$0xf] %v1511
    %1640 = vst [vmem:[%s5 + $0x58] sm:$0xf] %v1512
    %1641 = vst [vmem:[%s5 + $0x5c] sm:$0xf] %v1513
    %1642 = vst [vmem:[%s5 + $0x60] sm:$0xf] %v1514
    %1643 = vst [vmem:[%s5 + $0x64] sm:$0xf] %v1515
    %1644 = vst [vmem:[%s5 + $0x68] sm:$0xf] %v1516
    %1645 = vst [vmem:[%s5 + $0x6c] sm:$0xf] %v1517
    %1646 = vst [vmem:[%s5 + $0x70] sm:$0xf] %v1518
    %1647 = vst [vmem:[%s5 + $0x74] sm:$0xf] %v1519
    %1648 = vst [vmem:[%s5 + $0x78] sm:$0xf] %v1520
    %1649 = vst [vmem:[%s5 + $0x7c] sm:$0xf] %v1521
    %1650 = vst [vmem:[%s5 + $0x80] sm:$0xf] %v1522
    %1651 = vst [vmem:[%s5 + $0x84] sm:$0xf] %v1523
    %1652 = vst [vmem:[%s5 + $0x88] sm:$0xf] %v1524
    %1653 = vst [vmem:[%s5 + $0x8c] sm:$0xf] %v1525
    %1654 = vst [vmem:[%s5 + $0x90] sm:$0xf] %v1526
    %1655 = vst [vmem:[%s5 + $0x94] sm:$0xf] %v1527
    %1656 = vst [vmem:[%s5 + $0x98] sm:$0xf] %v1528
    %1657 = vst [vmem:[%s5 + $0x9c] sm:$0xf] %v1529
    %1658 = vst [vmem:[%s5 + $0xa0] sm:$0xf] %v1530
    %1659 = vst [vmem:[%s5 + $0xa4] sm:$0xf] %v1531
    %1660 = vst [vmem:[%s5 + $0xa8] sm:$0xf] %v1532
    %1661 = vst [vmem:[%s5 + $0xac] sm:$0xf] %v1533
    %1662 = vst [vmem:[%s5 + $0xb0] sm:$0xf] %v1534
    %1663 = vst [vmem:[%s5 + $0xb4] sm:$0xf] %v1535
    %1664 = vst [vmem:[%s5 + $0xb8] sm:$0xf] %v1536
    %1665 = vst [vmem:[%s5 + $0xbc] sm:$0xf] %v1537
    %1666 = vst [vmem:[%s5 + $0xc0] sm:$0xf] %v1538
    %1667 = vst [vmem:[%s5 + $0xc4] sm:$0xf] %v1539
    %1668 = vst [vmem:[%s5 + $0xc8] sm:$0xf] %v1540
    %1669 = vst [vmem:[%s5 + $0xcc] sm:$0xf] %v1541
    %1670 = vst [vmem:[%s5 + $0xd0] sm:$0xf] %v1542
    %1671 = vst [vmem:[%s5 + $0xd4] sm:$0xf] %v1543
    %1672 = vst [vmem:[%s5 + $0xd8] sm:$0xf] %v1544
    %1673 = vst [vmem:[%s5 + $0xdc] sm:$0xf] %v1545
    %1674 = vst [vmem:[%s5 + $0xe0] sm:$0xf] %v1546
    %1675 = vst [vmem:[%s5 + $0xe4] sm:$0xf] %v1547
    %1676 = vst [vmem:[%s5 + $0xe8] sm:$0xf] %v1548
    %1677 = vst [vmem:[%s5 + $0xec] sm:$0xf] %v1549
    %1678 = vst [vmem:[%s5 + $0xf0] sm:$0xf] %v1550
    %1679 = vst [vmem:[%s5 + $0xf4] sm:$0xf] %v1551
    %1680 = vst [vmem:[%s5 + $0xf8] sm:$0xf] %v1552
    %1681 = vst [vmem:[%s5 + $0xfc] sm:$0xf] %v1553
  $region29: #{_lambda_.5} parent=0 // pred_fallthru
    _
  // Predicated region
  $region30: #{_lambda_.5} parent=0 // pred_check
    _
  $region31: #{_lambda_.5} parent=0 // pred_check_branch
    %1683 = sbr.rel (0) target = $region33
  $region32: #{_lambda_.5} parent=0 // pred_region
    _
  $region33: #{_lambda_.5} parent=0 // pred_fallthru
    _
  // Predicated region
  $region34: #{_lambda_.5} parent=0 // pred_check
    _
  $region35: #{_lambda_.5} parent=0 // pred_check_branch
    %1685 = sbr.rel (0) target = $region37
  $region36: #{_lambda_.5} parent=0 // pred_region
    _
  $region37: #{_lambda_.5} parent=0 // pred_fallthru
    _

// kernel: _lambda_.8
$region0: #{_lambda_.8}
  #allocation0 [shape = 'u32[]', space=smem, size = 0x4, offset = 0x4, fixed_abs, tag = 'smem constant byte address 0x4 - core index']
  #allocation1 [shape = 'u32[144,128]{1,0:T(1,128)}', space=vmem, size = 0x12000, scoped, tag = 'internal scratch']
  #allocation2 [shape = 'f32[32,128]{1,0:T(8,128)}', space=vmem, size = 0x4000, scoped, tag = 'scratch operand']
  %s0 = inlined_call_operand.vmem [shape: bf16[32,512], index: 0, kind: input, shape index: {}]
  %s1 = inlined_call_operand.vmem [shape: bf16[512,128], index: 1, kind: input, shape index: {}]
  %s2 = inlined_call_operand.vmem [shape: f32[1,128], index: 2, kind: input, shape index: {}]
  %s3 = inlined_call_operand.vmem [shape: f32[1,128], index: 3, kind: input, shape index: {}]
  %s4 = inlined_call_operand.vmem [shape: f32[1,128], index: 4, kind: input, shape index: {}]
  %s5 = inlined_call_operand.vmem [shape: bf16[32,128], index: 5, kind: output, shape index: {}]
  %s6 = sld [smem:[#allocation0]]
  $region38: #{_lambda_.8} parent=0
    _
  %s8 = ssub.s32 1, %s6
  %s9 = scalar_select 0, %s8, %s6
  // Predicated region
  $region2: #{_lambda_.8} parent=0 // pred_check
    _
  $region3: #{_lambda_.8} parent=0 // pred_check_branch
    %11 = sbr.rel (0) target = $region5
  $region4: #{_lambda_.8} parent=0 // pred_region
    _
  $region5: #{_lambda_.8} parent=0 // pred_fallthru
    _
  // Predicated region
  $region6: #{_lambda_.8} parent=0 // pred_check
    _
  $region7: #{_lambda_.8} parent=0 // pred_check_branch
    %13 = sbr.rel (0) target = $region9
  $region8: #{_lambda_.8} parent=0 // pred_region
    _
  $region9: #{_lambda_.8} parent=0 // pred_fallthru
    _
  // Predicated region
  $region10: #{_lambda_.8} parent=0 // pred_check
    _
  $region11: #{_lambda_.8} parent=0 // pred_check_branch
    %15 = sbr.rel (0) target = $region13
  $region12: #{_lambda_.8} parent=0 // pred_region
    _
  $region13: #{_lambda_.8} parent=0 // pred_fallthru
    _
  // Predicated region
  $region14: #{_lambda_.8} parent=0 // pred_check
    _
  $region15: #{_lambda_.8} parent=0 // pred_check_branch
    %17 = sbr.rel (0) target = $region17
  $region16: #{_lambda_.8} parent=0 // pred_region
    _
  $region17: #{_lambda_.8} parent=0 // pred_fallthru
    _
  // Predicated region
  $region18: #{_lambda_.8} parent=0 // pred_check
    _
  $region19: #{_lambda_.8} parent=0 // pred_check_branch
    %19 = sbr.rel (0) target = $region21
  $region20: #{_lambda_.8} parent=0 // pred_region
    _
  $region21: #{_lambda_.8} parent=0 // pred_fallthru
    _
  %p21 = scmp.eq.s32.totalorder 0, 0
  // Predicated region
  $region22: #{_lambda_.8} parent=0 // pred_check
    %p22 = pneg %p21
  $region23: #{_lambda_.8} parent=0 // pred_check_branch
    %24 = sbr.rel (%p22) target = $region25
  $region24: #{_lambda_.8} parent=0 // pred_region
    %25 = vst [vmem:[#allocation2] sm:$0xff] 0.0
    %26 = vst [vmem:[#allocation2 + $0x8] sm:$0xff] 0.0
    %27 = vst [vmem:[#allocation2 + $0x10] sm:$0xff] 0.0
    %28 = vst [vmem:[#allocation2 + $0x18] sm:$0xff] 0.0
  $region25: #{_lambda_.8} parent=0 // pred_fallthru
    _
  %v29 = vld [vmem:[#allocation2] sm:$0xff]
  %v30 = vld [vmem:[#allocation2 + $0x8] sm:$0xff]
  %v31 = vld [vmem:[#allocation2 + $0x10] sm:$0xff]
  %v32 = vld [vmem:[#allocation2 + $0x18] sm:$0xff]
  %v33 = vld [vmem:[%s0] sm:$0xff]
  %v34 = vld [vmem:[%s0 + $0x8] sm:$0xff]
  %v35 = vld [vmem:[%s0 + $0x10] sm:$0xff]
  %v36 = vld [vmem:[%s0 + $0x18] sm:$0xff]
  %v37 = vld [vmem:[%s0 + $0x20] sm:$0xff]
  %v38 = vld [vmem:[%s0 + $0x28] sm:$0xff]
  %v39 = vld [vmem:[%s0 + $0x30] sm:$0xff]
  %v40 = vld [vmem:[%s0 + $0x38] sm:$0xff]
  %v41 = vld [vmem:[%s1] sm:$0xf]
  %v42 = vld [vmem:[%s1 + $0x4] sm:$0xf]
  %v43 = vld [vmem:[%s1 + $0x8] sm:$0xf]
  %v44 = vld [vmem:[%s1 + $0xc] sm:$0xf]
  %v45 = vld [vmem:[%s1 + $0x10] sm:$0xf]
  %v46 = vld [vmem:[%s1 + $0x14] sm:$0xf]
  %v47 = vld [vmem:[%s1 + $0x18] sm:$0xf]
  %v48 = vld [vmem:[%s1 + $0x1c] sm:$0xf]
  %v49 = vld [vmem:[%s1 + $0x20] sm:$0xf]
  %v50 = vld [vmem:[%s1 + $0x24] sm:$0xf]
  %v51 = vld [vmem:[%s1 + $0x28] sm:$0xf]
  %v52 = vld [vmem:[%s1 + $0x2c] sm:$0xf]
  %v53 = vld [vmem:[%s1 + $0x30] sm:$0xf]
  %v54 = vld [vmem:[%s1 + $0x34] sm:$0xf]
  %v55 = vld [vmem:[%s1 + $0x38] sm:$0xf]
  %v56 = vld [vmem:[%s1 + $0x3c] sm:$0xf]
  %v57 = vld [vmem:[%s1 + $0x40] sm:$0xf]
  %v58 = vld [vmem:[%s1 + $0x44] sm:$0xf]
  %v59 = vld [vmem:[%s1 + $0x48] sm:$0xf]
  %v60 = vld [vmem:[%s1 + $0x4c] sm:$0xf]
  %v61 = vld [vmem:[%s1 + $0x50] sm:$0xf]
  %v62 = vld [vmem:[%s1 + $0x54] sm:$0xf]
  %v63 = vld [vmem:[%s1 + $0x58] sm:$0xf]
  %v64 = vld [vmem:[%s1 + $0x5c] sm:$0xf]
  %v65 = vld [vmem:[%s1 + $0x60] sm:$0xf]
  %v66 = vld [vmem:[%s1 + $0x64] sm:$0xf]
  %v67 = vld [vmem:[%s1 + $0x68] sm:$0xf]
  %v68 = vld [vmem:[%s1 + $0x6c] sm:$0xf]
  %v69 = vld [vmem:[%s1 + $0x70] sm:$0xf]
  %v70 = vld [vmem:[%s1 + $0x74] sm:$0xf]
  %v71 = vld [vmem:[%s1 + $0x78] sm:$0xf]
  %v72 = vld [vmem:[%s1 + $0x7c] sm:$0xf]
  %v73 = vld [vmem:[%s1 + $0x80] sm:$0xf]
  %v74 = vld [vmem:[%s1 + $0x84] sm:$0xf]
  %v75 = vld [vmem:[%s1 + $0x88] sm:$0xf]
  %v76 = vld [vmem:[%s1 + $0x8c] sm:$0xf]
  %v77 = vld [vmem:[%s1 + $0x90] sm:$0xf]
  %v78 = vld [vmem:[%s1 + $0x94] sm:$0xf]
  %v79 = vld [vmem:[%s1 + $0x98] sm:$0xf]
  %v80 = vld [vmem:[%s1 + $0x9c] sm:$0xf]
  %v81 = vld [vmem:[%s1 + $0xa0] sm:$0xf]
  %v82 = vld [vmem:[%s1 + $0xa4] sm:$0xf]
  %v83 = vld [vmem:[%s1 + $0xa8] sm:$0xf]
  %v84 = vld [vmem:[%s1 + $0xac] sm:$0xf]
  %v85 = vld [vmem:[%s1 + $0xb0] sm:$0xf]
  %v86 = vld [vmem:[%s1 + $0xb4] sm:$0xf]
  %v87 = vld [vmem:[%s1 + $0xb8] sm:$0xf]
  %v88 = vld [vmem:[%s1 + $0xbc] sm:$0xf]
  %v89 = vld [vmem:[%s1 + $0xc0] sm:$0xf]
  %v90 = vld [vmem:[%s1 + $0xc4] sm:$0xf]
  %v91 = vld [vmem:[%s1 + $0xc8] sm:$0xf]
  %v92 = vld [vmem:[%s1 + $0xcc] sm:$0xf]
  %v93 = vld [vmem:[%s1 + $0xd0] sm:$0xf]
  %v94 = vld [vmem:[%s1 + $0xd4] sm:$0xf]
  %v95 = vld [vmem:[%s1 + $0xd8] sm:$0xf]
  %v96 = vld [vmem:[%s1 + $0xdc] sm:$0xf]
  %v97 = vld [vmem:[%s1 + $0xe0] sm:$0xf]
  %v98 = vld [vmem:[%s1 + $0xe4] sm:$0xf]
  %v99 = vld [vmem:[%s1 + $0xe8] sm:$0xf]
  %v100 = vld [vmem:[%s1 + $0xec] sm:$0xf]
  %v101 = vld [vmem:[%s1 + $0xf0] sm:$0xf]
  %v102 = vld [vmem:[%s1 + $0xf4] sm:$0xf]
  %v103 = vld [vmem:[%s1 + $0xf8] sm:$0xf]
  %v104 = vld [vmem:[%s1 + $0xfc] sm:$0xf]
  %v113 = vunpack.c.l.b16 %v33
  %v114 = vunpack.c.h.b16 %v33
  %v115 = vunpack.c.l.b16 %v34
  %v116 = vunpack.c.h.b16 %v34
  %v117 = vunpack.c.l.b16 %v35
  %v118 = vunpack.c.h.b16 %v35
  %v119 = vunpack.c.l.b16 %v36
  %v120 = vunpack.c.h.b16 %v36
  %v121 = vunpack.c.l.b16 %v37
  %v122 = vunpack.c.h.b16 %v37
  %v123 = vunpack.c.l.b16 %v38
  %v124 = vunpack.c.h.b16 %v38
  %v125 = vunpack.c.l.b16 %v39
  %v126 = vunpack.c.h.b16 %v39
  %v127 = vunpack.c.l.b16 %v40
  %v128 = vunpack.c.h.b16 %v40
  %v129 = vpack.c.b16 %v117, %v113
  %v130 = vpack.c.b16 %v118, %v114
  %v131 = vpack.c.b16 %v119, %v115
  %v132 = vpack.c.b16 %v120, %v116
  %v133 = vpack.c.b16 %v125, %v121
  %v134 = vpack.c.b16 %v126, %v122
  %v135 = vpack.c.b16 %v127, %v123
  %v136 = vpack.c.b16 %v128, %v124
  %v209 = vunpack.c.l.b16 %v41
  %v210 = vunpack.c.l.b16 %v42
  %v211 = vunpack.c.l.b16 %v43
  %v212 = vunpack.c.l.b16 %v44
  %v213 = vunpack.c.l.b16 %v45
  %v214 = vunpack.c.l.b16 %v46
  %v215 = vunpack.c.l.b16 %v47
  %v216 = vunpack.c.l.b16 %v48
  %v217 = vunpack.c.l.b16 %v49
  %v218 = vunpack.c.l.b16 %v50
  %v219 = vunpack.c.l.b16 %v51
  %v220 = vunpack.c.l.b16 %v52
  %v221 = vunpack.c.l.b16 %v53
  %v222 = vunpack.c.l.b16 %v54
  %v223 = vunpack.c.l.b16 %v55
  %v224 = vunpack.c.l.b16 %v56
  %v225 = vunpack.c.l.b16 %v57
  %v226 = vunpack.c.l.b16 %v58
  %v227 = vunpack.c.l.b16 %v59
  %v228 = vunpack.c.l.b16 %v60
  %v229 = vunpack.c.l.b16 %v61
  %v230 = vunpack.c.l.b16 %v62
  %v231 = vunpack.c.l.b16 %v63
  %v232 = vunpack.c.l.b16 %v64
  %v233 = vunpack.c.l.b16 %v65
  %v234 = vunpack.c.l.b16 %v66
  %v235 = vunpack.c.l.b16 %v67
  %v236 = vunpack.c.l.b16 %v68
  %v237 = vunpack.c.l.b16 %v69
  %v238 = vunpack.c.l.b16 %v70
  %v239 = vunpack.c.l.b16 %v71
  %v240 = vunpack.c.l.b16 %v72
  %v241 = vunpack.c.l.b16 %v73
  %v242 = vunpack.c.l.b16 %v74
  %v243 = vunpack.c.l.b16 %v75
  %v244 = vunpack.c.l.b16 %v76
  %v245 = vunpack.c.l.b16 %v77
  %v246 = vunpack.c.l.b16 %v78
  %v247 = vunpack.c.l.b16 %v79
  %v248 = vunpack.c.l.b16 %v80
  %v249 = vunpack.c.l.b16 %v81
  %v250 = vunpack.c.l.b16 %v82
  %v251 = vunpack.c.l.b16 %v83
  %v252 = vunpack.c.l.b16 %v84
  %v253 = vunpack.c.l.b16 %v85
  %v254 = vunpack.c.l.b16 %v86
  %v255 = vunpack.c.l.b16 %v87
  %v256 = vunpack.c.l.b16 %v88
  %v257 = vunpack.c.l.b16 %v89
  %v258 = vunpack.c.l.b16 %v90
  %v259 = vunpack.c.l.b16 %v91
  %v260 = vunpack.c.l.b16 %v92
  %v261 = vunpack.c.l.b16 %v93
  %v262 = vunpack.c.l.b16 %v94
  %v263 = vunpack.c.l.b16 %v95
  %v264 = vunpack.c.l.b16 %v96
  %v265 = vunpack.c.l.b16 %v97
  %v266 = vunpack.c.l.b16 %v98
  %v267 = vunpack.c.l.b16 %v99
  %v268 = vunpack.c.l.b16 %v100
  %v269 = vunpack.c.l.b16 %v101
  %v270 = vunpack.c.l.b16 %v102
  %v271 = vunpack.c.l.b16 %v103
  %v272 = vunpack.c.l.b16 %v104
  %v273 = vpack.c.b16 %v210, %v209
  %v274 = vpack.c.b16 %v212, %v211
  %v275 = vpack.c.b16 %v214, %v213
  %v276 = vpack.c.b16 %v216, %v215
  %v277 = vpack.c.b16 %v218, %v217
  %v278 = vpack.c.b16 %v220, %v219
  %v279 = vpack.c.b16 %v222, %v221
  %v280 = vpack.c.b16 %v224, %v223
  %v281 = vpack.c.b16 %v226, %v225
  %v282 = vpack.c.b16 %v228, %v227
  %v283 = vpack.c.b16 %v230, %v229
  %v284 = vpack.c.b16 %v232, %v231
  %v285 = vpack.c.b16 %v234, %v233
  %v286 = vpack.c.b16 %v236, %v235
  %v287 = vpack.c.b16 %v238, %v237
  %v288 = vpack.c.b16 %v240, %v239
  %v289 = vpack.c.b16 %v242, %v241
  %v290 = vpack.c.b16 %v244, %v243
  %v291 = vpack.c.b16 %v246, %v245
  %v292 = vpack.c.b16 %v248, %v247
  %v293 = vpack.c.b16 %v250, %v249
  %v294 = vpack.c.b16 %v252, %v251
  %v295 = vpack.c.b16 %v254, %v253
  %v296 = vpack.c.b16 %v256, %v255
  %v297 = vpack.c.b16 %v258, %v257
  %v298 = vpack.c.b16 %v260, %v259
  %v299 = vpack.c.b16 %v262, %v261
  %v300 = vpack.c.b16 %v264, %v263
  %v301 = vpack.c.b16 %v266, %v265
  %v302 = vpack.c.b16 %v268, %v267
  %v303 = vpack.c.b16 %v270, %v269
  %v304 = vpack.c.b16 %v272, %v271
  %337 = vmatprep.subr.bf16.mxu0 0
  %338 = vmatpush1.bf16.msra.mxu0 %v280
  %339 = vmatprep.subr.bf16.mxu0 0
  %340 = vmatpush1.bf16.msra.mxu0 %v279
  %341 = vmatprep.subr.bf16.mxu0 0
  %342 = vmatpush1.bf16.msra.mxu0 %v278
  %343 = vmatprep.subr.bf16.mxu0 0
  %344 = vmatpush1.bf16.msra.mxu0 %v277
  %345 = vmatprep.subr.bf16.mxu0 0
  %346 = vmatpush1.bf16.msra.mxu0 %v276
  %347 = vmatprep.subr.bf16.mxu0 0
  %348 = vmatpush1.bf16.msra.mxu0 %v275
  %349 = vmatprep.subr.bf16.mxu0 0
  %350 = vmatpush1.bf16.msra.mxu0 %v274
  %351 = vmatprep.subr.bf16.mxu0 0
  %352 = vmatpush1.bf16.msra.mxu0 %v273
  %353 = vmatprep.subr.bf16.mxu0 0
  %354 = vmatpush2.bf16.msra.mxu0 %v288
  %355 = vmatprep.subr.bf16.mxu0 0
  %356 = vmatpush2.bf16.msra.mxu0 %v287
  %357 = vmatprep.subr.bf16.mxu0 0
  %358 = vmatpush2.bf16.msra.mxu0 %v286
  %359 = vmatprep.subr.bf16.mxu0 0
  %360 = vmatpush2.bf16.msra.mxu0 %v285
  %361 = vmatprep.subr.bf16.mxu0 0
  %362 = vmatpush2.bf16.msra.mxu0 %v284
  %363 = vmatprep.subr.bf16.mxu0 0
  %364 = vmatpush2.bf16.msra.mxu0 %v283
  %365 = vmatprep.subr.bf16.mxu0 0
  %366 = vmatpush2.bf16.msra.mxu0 %v282
  %367 = vmatprep.subr.bf16.mxu0 0
  %368 = vmatpush2.bf16.msra.mxu0 %v281
  %369 = vmatprep.mubr.bf16.mxu0 %v130
  %370 = vmatmul.mubr.bf16.gmra.mxu0 %v129
  %v371 = vpop.f32.mrf.mxu0
  %v372 = vadd.f32 0.0, %v371
  %v373 = vpop.f32.mrf.mxu0
  %v374 = vpop.f32.mrf.mxu0
  %v375 = vadd.f32 0.0, %v374
  %v376 = vpop.f32.mrf.mxu0
  %377 = vmatprep.mubr.bf16.mxu0 %v134
  %378 = vmatmul.mubr.bf16.gmra.mxu0 %v133
  %v379 = vpop.f32.mrf.mxu0
  %v380 = vadd.f32 0.0, %v379
  %v381 = vpop.f32.mrf.mxu0
  %v382 = vpop.f32.mrf.mxu0
  %v383 = vadd.f32 0.0, %v382
  %v384 = vpop.f32.mrf.mxu0
  %385 = vdwg.mxu0
  %386 = vmatprep.subr.bf16.mxu0 0
  %387 = vmatpush1.bf16.msra.mxu0 %v296
  %388 = vmatprep.subr.bf16.mxu0 0
  %389 = vmatpush1.bf16.msra.mxu0 %v295
  %390 = vmatprep.subr.bf16.mxu0 0
  %391 = vmatpush1.bf16.msra.mxu0 %v294
  %392 = vmatprep.subr.bf16.mxu0 0
  %393 = vmatpush1.bf16.msra.mxu0 %v293
  %394 = vmatprep.subr.bf16.mxu0 0
  %395 = vmatpush1.bf16.msra.mxu0 %v292
  %396 = vmatprep.subr.bf16.mxu0 0
  %397 = vmatpush1.bf16.msra.mxu0 %v291
  %398 = vmatprep.subr.bf16.mxu0 0
  %399 = vmatpush1.bf16.msra.mxu0 %v290
  %400 = vmatprep.subr.bf16.mxu0 0
  %401 = vmatpush1.bf16.msra.mxu0 %v289
  %402 = vmatprep.subr.bf16.mxu0 0
  %403 = vmatpush2.bf16.msra.mxu0 %v304
  %404 = vmatprep.subr.bf16.mxu0 0
  %405 = vmatpush2.bf16.msra.mxu0 %v303
  %406 = vmatprep.subr.bf16.mxu0 0
  %407 = vmatpush2.bf16.msra.mxu0 %v302
  %408 = vmatprep.subr.bf16.mxu0 0
  %409 = vmatpush2.bf16.msra.mxu0 %v301
  %410 = vmatprep.subr.bf16.mxu0 0
  %411 = vmatpush2.bf16.msra.mxu0 %v300
  %412 = vmatprep.subr.bf16.mxu0 0
  %413 = vmatpush2.bf16.msra.mxu0 %v299
  %414 = vmatprep.subr.bf16.mxu0 0
  %415 = vmatpush2.bf16.msra.mxu0 %v298
  %416 = vmatprep.subr.bf16.mxu0 0
  %417 = vmatpush2.bf16.msra.mxu0 %v297
  %418 = vmatprep.mubr.bf16.mxu0 %v132
  %419 = vmatmul.mubr.bf16.gmra.mxu0 %v131
  %v420 = vpop.f32.mrf.mxu0
  %v421 = vadd.f32 %v372, %v420
  %v422 = vpop.f32.mrf.mxu0
  %v423 = vpop.f32.mrf.mxu0
  %v424 = vadd.f32 %v375, %v423
  %v425 = vpop.f32.mrf.mxu0
  %426 = vmatprep.mubr.bf16.mxu0 %v136
  %427 = vmatmul.mubr.bf16.gmra.mxu0 %v135
  %v428 = vpop.f32.mrf.mxu0
  %v429 = vadd.f32 %v380, %v428
  %v430 = vpop.f32.mrf.mxu0
  %v431 = vpop.f32.mrf.mxu0
  %v432 = vadd.f32 %v383, %v431
  %v433 = vpop.f32.mrf.mxu0
  %434 = vdwg.mxu0
  %v435 = vadd.f32 %v29, %v421
  %v436 = vadd.f32 %v30, %v424
  %v437 = vadd.f32 %v31, %v429
  %v438 = vadd.f32 %v32, %v432
  %439 = vst [vmem:[#allocation2] sm:$0xff] %v435
  %440 = vst [vmem:[#allocation2 + $0x8] sm:$0xff] %v436
  %441 = vst [vmem:[#allocation2 + $0x10] sm:$0xff] %v437
  %442 = vst [vmem:[#allocation2 + $0x18] sm:$0xff] %v438
  // Predicated region
  $region26: #{_lambda_.8} parent=0 // pred_check
    %p443 = pneg %p21
  $region27: #{_lambda_.8} parent=0 // pred_check_branch
    %445 = sbr.rel (%p443) target = $region29
  $region28: #{_lambda_.8} parent=0 // pred_region
    %v446 = vld [vmem:[#allocation2] sm:$0xff]
    %v447 = vld [vmem:[#allocation2 + $0x8] sm:$0xff]
    %v448 = vld [vmem:[#allocation2 + $0x10] sm:$0xff]
    %v449 = vld [vmem:[#allocation2 + $0x18] sm:$0xff]
    %v450 = vld [vmem:[%s2] sm:$0x1]
    %v452 = vlaneseq
    %v453 = vshrl.u32 %v452, 7
    %v454 = vsub.s32 0, %v453
    %v455 = vrot.slane %v450, %v454
    %v457 = vmul.f32 %v446, %v455
    %v458 = vmul.f32 %v447, %v455
    %v459 = vmul.f32 %v448, %v455
    %v460 = vmul.f32 %v449, %v455
    %v461 = vld [vmem:[%s3] sm:$0x1]
    %v463 = vlaneseq
    %v464 = vshrl.u32 %v463, 7
    %v465 = vsub.s32 0, %v464
    %v466 = vrot.slane %v461, %v465
    %v468 = vadd.f32 %v457, %v466
    %v469 = vadd.f32 %v458, %v466
    %v470 = vadd.f32 %v459, %v466
    %v471 = vadd.f32 %v460, %v466
    %vm472 = vcmp.ge.f32.partialorder %v468, 0.0
    %vm473 = vcmp.ge.f32.partialorder %v469, 0.0
    %vm474 = vcmp.ge.f32.partialorder %v470, 0.0
    %vm475 = vcmp.ge.f32.partialorder %v471, 0.0
    %v476 = vmul.f32 %v468, 0.2
    %v477 = vmul.f32 %v469, 0.2
    %v478 = vmul.f32 %v470, 0.2
    %v479 = vmul.f32 %v471, 0.2
    %v480 = vsel %vm472, %v468, %v476
    %v481 = vsel %vm473, %v469, %v477
    %v482 = vsel %vm474, %v470, %v478
    %v483 = vsel %vm475, %v471, %v479
    %v484 = vld [vmem:[%s4] sm:$0x1]
    %v486 = vlaneseq
    %v487 = vshrl.u32 %v486, 7
    %v488 = vsub.s32 0, %v487
    %v489 = vrot.slane %v484, %v488
    %v491 = vmul.f32 %v480, %v489
    %v492 = vmul.f32 %v481, %v489
    %v493 = vmul.f32 %v482, %v489
    %v494 = vmul.f32 %v483, %v489
    %v495 = vpack.c.bf16 %v492, %v491
    %v496 = vpack.c.bf16 %v494, %v493
    %v499 = vunpack.c.l.b16 %v495
    %v500 = vunpack.c.h.b16 %v495
    %v501 = vunpack.c.l.b16 %v496
    %v502 = vunpack.c.h.b16 %v496
    %v503 = vpack.c.b16 %v499, %v499
    %v504 = vpack.c.b16 %v500, %v500
    %v505 = vpack.c.b16 %v501, %v501
    %v506 = vpack.c.b16 %v502, %v502
    %511 = vst [vmem:[%s5] sm:$0xf] %v503
    %512 = vst [vmem:[%s5 + $0x4] sm:$0xf] %v504
    %513 = vst [vmem:[%s5 + $0x8] sm:$0xf] %v505
    %514 = vst [vmem:[%s5 + $0xc] sm:$0xf] %v506
  $region29: #{_lambda_.8} parent=0 // pred_fallthru
    _
  // Predicated region
  $region30: #{_lambda_.8} parent=0 // pred_check
    _
  $region31: #{_lambda_.8} parent=0 // pred_check_branch
    %516 = sbr.rel (0) target = $region33
  $region32: #{_lambda_.8} parent=0 // pred_region
    _
  $region33: #{_lambda_.8} parent=0 // pred_fallthru
    _
  // Predicated region
  $region34: #{_lambda_.8} parent=0 // pred_check
    _
  $region35: #{_lambda_.8} parent=0 // pred_check_branch
    %518 = sbr.rel (0) target = $region37
  $region36: #{_lambda_.8} parent=0 // pred_region
    _
  $region37: #{_lambda_.8} parent=0 // pred_fallthru
    _

// kernel: _lambda_.7
$region0: #{_lambda_.7}
  #allocation0 [shape = 'u32[]', space=smem, size = 0x4, offset = 0x4, fixed_abs, tag = 'smem constant byte address 0x4 - core index']
  #allocation1 [shape = 'u32[144,128]{1,0:T(1,128)}', space=vmem, size = 0x12000, scoped, tag = 'internal scratch']
  #allocation2 [shape = 'f32[32,128]{1,0:T(8,128)}', space=vmem, size = 0x4000, scoped, tag = 'scratch operand']
  %s0 = inlined_call_operand.vmem [shape: bf16[32,256], index: 0, kind: input, shape index: {}]
  %s1 = inlined_call_operand.vmem [shape: bf16[256,128], index: 1, kind: input, shape index: {}]
  %s2 = inlined_call_operand.vmem [shape: f32[1,128], index: 2, kind: input, shape index: {}]
  %s3 = inlined_call_operand.vmem [shape: f32[1,128], index: 3, kind: input, shape index: {}]
  %s4 = inlined_call_operand.vmem [shape: f32[1,128], index: 4, kind: input, shape index: {}]
  %s5 = inlined_call_operand.vmem [shape: bf16[32,128], index: 5, kind: output, shape index: {}]
  %s6 = sld [smem:[#allocation0]]
  $region38: #{_lambda_.7} parent=0
    _
  %s8 = ssub.s32 1, %s6
  %s9 = scalar_select 0, %s8, %s6
  // Predicated region
  $region2: #{_lambda_.7} parent=0 // pred_check
    _
  $region3: #{_lambda_.7} parent=0 // pred_check_branch
    %11 = sbr.rel (0) target = $region5
  $region4: #{_lambda_.7} parent=0 // pred_region
    _
  $region5: #{_lambda_.7} parent=0 // pred_fallthru
    _
  // Predicated region
  $region6: #{_lambda_.7} parent=0 // pred_check
    _
  $region7: #{_lambda_.7} parent=0 // pred_check_branch
    %13 = sbr.rel (0) target = $region9
  $region8: #{_lambda_.7} parent=0 // pred_region
    _
  $region9: #{_lambda_.7} parent=0 // pred_fallthru
    _
  // Predicated region
  $region10: #{_lambda_.7} parent=0 // pred_check
    _
  $region11: #{_lambda_.7} parent=0 // pred_check_branch
    %15 = sbr.rel (0) target = $region13
  $region12: #{_lambda_.7} parent=0 // pred_region
    _
  $region13: #{_lambda_.7} parent=0 // pred_fallthru
    _
  // Predicated region
  $region14: #{_lambda_.7} parent=0 // pred_check
    _
  $region15: #{_lambda_.7} parent=0 // pred_check_branch
    %17 = sbr.rel (0) target = $region17
  $region16: #{_lambda_.7} parent=0 // pred_region
    _
  $region17: #{_lambda_.7} parent=0 // pred_fallthru
    _
  // Predicated region
  $region18: #{_lambda_.7} parent=0 // pred_check
    _
  $region19: #{_lambda_.7} parent=0 // pred_check_branch
    %19 = sbr.rel (0) target = $region21
  $region20: #{_lambda_.7} parent=0 // pred_region
    _
  $region21: #{_lambda_.7} parent=0 // pred_fallthru
    _
  %p21 = scmp.eq.s32.totalorder 0, 0
  // Predicated region
  $region22: #{_lambda_.7} parent=0 // pred_check
    %p22 = pneg %p21
  $region23: #{_lambda_.7} parent=0 // pred_check_branch
    %24 = sbr.rel (%p22) target = $region25
  $region24: #{_lambda_.7} parent=0 // pred_region
    %25 = vst [vmem:[#allocation2] sm:$0xff] 0.0
    %26 = vst [vmem:[#allocation2 + $0x8] sm:$0xff] 0.0
    %27 = vst [vmem:[#allocation2 + $0x10] sm:$0xff] 0.0
    %28 = vst [vmem:[#allocation2 + $0x18] sm:$0xff] 0.0
  $region25: #{_lambda_.7} parent=0 // pred_fallthru
    _
  %v29 = vld [vmem:[#allocation2] sm:$0xff]
  %v30 = vld [vmem:[#allocation2 + $0x8] sm:$0xff]
  %v31 = vld [vmem:[#allocation2 + $0x10] sm:$0xff]
  %v32 = vld [vmem:[#allocation2 + $0x18] sm:$0xff]
  %v33 = vld [vmem:[%s0] sm:$0xff]
  %v34 = vld [vmem:[%s0 + $0x8] sm:$0xff]
  %v35 = vld [vmem:[%s0 + $0x10] sm:$0xff]
  %v36 = vld [vmem:[%s0 + $0x18] sm:$0xff]
  %v37 = vld [vmem:[%s1] sm:$0xf]
  %v38 = vld [vmem:[%s1 + $0x4] sm:$0xf]
  %v39 = vld [vmem:[%s1 + $0x8] sm:$0xf]
  %v40 = vld [vmem:[%s1 + $0xc] sm:$0xf]
  %v41 = vld [vmem:[%s1 + $0x10] sm:$0xf]
  %v42 = vld [vmem:[%s1 + $0x14] sm:$0xf]
  %v43 = vld [vmem:[%s1 + $0x18] sm:$0xf]
  %v44 = vld [vmem:[%s1 + $0x1c] sm:$0xf]
  %v45 = vld [vmem:[%s1 + $0x20] sm:$0xf]
  %v46 = vld [vmem:[%s1 + $0x24] sm:$0xf]
  %v47 = vld [vmem:[%s1 + $0x28] sm:$0xf]
  %v48 = vld [vmem:[%s1 + $0x2c] sm:$0xf]
  %v49 = vld [vmem:[%s1 + $0x30] sm:$0xf]
  %v50 = vld [vmem:[%s1 + $0x34] sm:$0xf]
  %v51 = vld [vmem:[%s1 + $0x38] sm:$0xf]
  %v52 = vld [vmem:[%s1 + $0x3c] sm:$0xf]
  %v53 = vld [vmem:[%s1 + $0x40] sm:$0xf]
  %v54 = vld [vmem:[%s1 + $0x44] sm:$0xf]
  %v55 = vld [vmem:[%s1 + $0x48] sm:$0xf]
  %v56 = vld [vmem:[%s1 + $0x4c] sm:$0xf]
  %v57 = vld [vmem:[%s1 + $0x50] sm:$0xf]
  %v58 = vld [vmem:[%s1 + $0x54] sm:$0xf]
  %v59 = vld [vmem:[%s1 + $0x58] sm:$0xf]
  %v60 = vld [vmem:[%s1 + $0x5c] sm:$0xf]
  %v61 = vld [vmem:[%s1 + $0x60] sm:$0xf]
  %v62 = vld [vmem:[%s1 + $0x64] sm:$0xf]
  %v63 = vld [vmem:[%s1 + $0x68] sm:$0xf]
  %v64 = vld [vmem:[%s1 + $0x6c] sm:$0xf]
  %v65 = vld [vmem:[%s1 + $0x70] sm:$0xf]
  %v66 = vld [vmem:[%s1 + $0x74] sm:$0xf]
  %v67 = vld [vmem:[%s1 + $0x78] sm:$0xf]
  %v68 = vld [vmem:[%s1 + $0x7c] sm:$0xf]
  %v73 = vunpack.c.l.b16 %v33
  %v74 = vunpack.c.h.b16 %v33
  %v75 = vunpack.c.l.b16 %v34
  %v76 = vunpack.c.h.b16 %v34
  %v77 = vunpack.c.l.b16 %v35
  %v78 = vunpack.c.h.b16 %v35
  %v79 = vunpack.c.l.b16 %v36
  %v80 = vunpack.c.h.b16 %v36
  %v81 = vpack.c.b16 %v75, %v73
  %v82 = vpack.c.b16 %v76, %v74
  %v83 = vpack.c.b16 %v79, %v77
  %v84 = vpack.c.b16 %v80, %v78
  %v121 = vunpack.c.l.b16 %v37
  %v122 = vunpack.c.l.b16 %v38
  %v123 = vunpack.c.l.b16 %v39
  %v124 = vunpack.c.l.b16 %v40
  %v125 = vunpack.c.l.b16 %v41
  %v126 = vunpack.c.l.b16 %v42
  %v127 = vunpack.c.l.b16 %v43
  %v128 = vunpack.c.l.b16 %v44
  %v129 = vunpack.c.l.b16 %v45
  %v130 = vunpack.c.l.b16 %v46
  %v131 = vunpack.c.l.b16 %v47
  %v132 = vunpack.c.l.b16 %v48
  %v133 = vunpack.c.l.b16 %v49
  %v134 = vunpack.c.l.b16 %v50
  %v135 = vunpack.c.l.b16 %v51
  %v136 = vunpack.c.l.b16 %v52
  %v137 = vunpack.c.l.b16 %v53
  %v138 = vunpack.c.l.b16 %v54
  %v139 = vunpack.c.l.b16 %v55
  %v140 = vunpack.c.l.b16 %v56
  %v141 = vunpack.c.l.b16 %v57
  %v142 = vunpack.c.l.b16 %v58
  %v143 = vunpack.c.l.b16 %v59
  %v144 = vunpack.c.l.b16 %v60
  %v145 = vunpack.c.l.b16 %v61
  %v146 = vunpack.c.l.b16 %v62
  %v147 = vunpack.c.l.b16 %v63
  %v148 = vunpack.c.l.b16 %v64
  %v149 = vunpack.c.l.b16 %v65
  %v150 = vunpack.c.l.b16 %v66
  %v151 = vunpack.c.l.b16 %v67
  %v152 = vunpack.c.l.b16 %v68
  %v153 = vpack.c.b16 %v122, %v121
  %v154 = vpack.c.b16 %v124, %v123
  %v155 = vpack.c.b16 %v126, %v125
  %v156 = vpack.c.b16 %v128, %v127
  %v157 = vpack.c.b16 %v130, %v129
  %v158 = vpack.c.b16 %v132, %v131
  %v159 = vpack.c.b16 %v134, %v133
  %v160 = vpack.c.b16 %v136, %v135
  %v161 = vpack.c.b16 %v138, %v137
  %v162 = vpack.c.b16 %v140, %v139
  %v163 = vpack.c.b16 %v142, %v141
  %v164 = vpack.c.b16 %v144, %v143
  %v165 = vpack.c.b16 %v146, %v145
  %v166 = vpack.c.b16 %v148, %v147
  %v167 = vpack.c.b16 %v150, %v149
  %v168 = vpack.c.b16 %v152, %v151
  %185 = vmatprep.subr.bf16.mxu0 0
  %186 = vmatpush1.bf16.msra.mxu0 %v160
  %187 = vmatprep.subr.bf16.mxu0 0
  %188 = vmatpush1.bf16.msra.mxu0 %v159
  %189 = vmatprep.subr.bf16.mxu0 0
  %190 = vmatpush1.bf16.msra.mxu0 %v158
  %191 = vmatprep.subr.bf16.mxu0 0
  %192 = vmatpush1.bf16.msra.mxu0 %v157
  %193 = vmatprep.subr.bf16.mxu0 0
  %194 = vmatpush1.bf16.msra.mxu0 %v156
  %195 = vmatprep.subr.bf16.mxu0 0
  %196 = vmatpush1.bf16.msra.mxu0 %v155
  %197 = vmatprep.subr.bf16.mxu0 0
  %198 = vmatpush1.bf16.msra.mxu0 %v154
  %199 = vmatprep.subr.bf16.mxu0 0
  %200 = vmatpush1.bf16.msra.mxu0 %v153
  %201 = vmatprep.subr.bf16.mxu0 0
  %202 = vmatpush2.bf16.msra.mxu0 %v168
  %203 = vmatprep.subr.bf16.mxu0 0
  %204 = vmatpush2.bf16.msra.mxu0 %v167
  %205 = vmatprep.subr.bf16.mxu0 0
  %206 = vmatpush2.bf16.msra.mxu0 %v166
  %207 = vmatprep.subr.bf16.mxu0 0
  %208 = vmatpush2.bf16.msra.mxu0 %v165
  %209 = vmatprep.subr.bf16.mxu0 0
  %210 = vmatpush2.bf16.msra.mxu0 %v164
  %211 = vmatprep.subr.bf16.mxu0 0
  %212 = vmatpush2.bf16.msra.mxu0 %v163
  %213 = vmatprep.subr.bf16.mxu0 0
  %214 = vmatpush2.bf16.msra.mxu0 %v162
  %215 = vmatprep.subr.bf16.mxu0 0
  %216 = vmatpush2.bf16.msra.mxu0 %v161
  %217 = vmatprep.mubr.bf16.mxu0 %v82
  %218 = vmatmul.mubr.bf16.gmra.mxu0 %v81
  %v219 = vpop.f32.mrf.mxu0
  %v220 = vadd.f32 0.0, %v219
  %v221 = vpop.f32.mrf.mxu0
  %v222 = vpop.f32.mrf.mxu0
  %v223 = vadd.f32 0.0, %v222
  %v224 = vpop.f32.mrf.mxu0
  %225 = vmatprep.mubr.bf16.mxu0 %v84
  %226 = vmatmul.mubr.bf16.gmra.mxu0 %v83
  %v227 = vpop.f32.mrf.mxu0
  %v228 = vadd.f32 0.0, %v227
  %v229 = vpop.f32.mrf.mxu0
  %v230 = vpop.f32.mrf.mxu0
  %v231 = vadd.f32 0.0, %v230
  %v232 = vpop.f32.mrf.mxu0
  %233 = vdwg.mxu0
  %v234 = vadd.f32 %v29, %v220
  %v235 = vadd.f32 %v30, %v223
  %v236 = vadd.f32 %v31, %v228
  %v237 = vadd.f32 %v32, %v231
  %238 = vst [vmem:[#allocation2] sm:$0xff] %v234
  %239 = vst [vmem:[#allocation2 + $0x8] sm:$0xff] %v235
  %240 = vst [vmem:[#allocation2 + $0x10] sm:$0xff] %v236
  %241 = vst [vmem:[#allocation2 + $0x18] sm:$0xff] %v237
  // Predicated region
  $region26: #{_lambda_.7} parent=0 // pred_check
    %p242 = pneg %p21
  $region27: #{_lambda_.7} parent=0 // pred_check_branch
    %244 = sbr.rel (%p242) target = $region29
  $region28: #{_lambda_.7} parent=0 // pred_region
    %v245 = vld [vmem:[#allocation2] sm:$0xff]
    %v246 = vld [vmem:[#allocation2 + $0x8] sm:$0xff]
    %v247 = vld [vmem:[#allocation2 + $0x10] sm:$0xff]
    %v248 = vld [vmem:[#allocation2 + $0x18] sm:$0xff]
    %v249 = vld [vmem:[%s2] sm:$0x1]
    %v251 = vlaneseq
    %v252 = vshrl.u32 %v251, 7
    %v253 = vsub.s32 0, %v252
    %v254 = vrot.slane %v249, %v253
    %v256 = vmul.f32 %v245, %v254
    %v257 = vmul.f32 %v246, %v254
    %v258 = vmul.f32 %v247, %v254
    %v259 = vmul.f32 %v248, %v254
    %v260 = vld [vmem:[%s3] sm:$0x1]
    %v262 = vlaneseq
    %v263 = vshrl.u32 %v262, 7
    %v264 = vsub.s32 0, %v263
    %v265 = vrot.slane %v260, %v264
    %v267 = vadd.f32 %v256, %v265
    %v268 = vadd.f32 %v257, %v265
    %v269 = vadd.f32 %v258, %v265
    %v270 = vadd.f32 %v259, %v265
    %vm271 = vcmp.ge.f32.partialorder %v267, 0.0
    %vm272 = vcmp.ge.f32.partialorder %v268, 0.0
    %vm273 = vcmp.ge.f32.partialorder %v269, 0.0
    %vm274 = vcmp.ge.f32.partialorder %v270, 0.0
    %v275 = vmul.f32 %v267, 0.2
    %v276 = vmul.f32 %v268, 0.2
    %v277 = vmul.f32 %v269, 0.2
    %v278 = vmul.f32 %v270, 0.2
    %v279 = vsel %vm271, %v267, %v275
    %v280 = vsel %vm272, %v268, %v276
    %v281 = vsel %vm273, %v269, %v277
    %v282 = vsel %vm274, %v270, %v278
    %v283 = vld [vmem:[%s4] sm:$0x1]
    %v285 = vlaneseq
    %v286 = vshrl.u32 %v285, 7
    %v287 = vsub.s32 0, %v286
    %v288 = vrot.slane %v283, %v287
    %v290 = vmul.f32 %v279, %v288
    %v291 = vmul.f32 %v280, %v288
    %v292 = vmul.f32 %v281, %v288
    %v293 = vmul.f32 %v282, %v288
    %v294 = vpack.c.bf16 %v291, %v290
    %v295 = vpack.c.bf16 %v293, %v292
    %v298 = vunpack.c.l.b16 %v294
    %v299 = vunpack.c.h.b16 %v294
    %v300 = vunpack.c.l.b16 %v295
    %v301 = vunpack.c.h.b16 %v295
    %v302 = vpack.c.b16 %v298, %v298
    %v303 = vpack.c.b16 %v299, %v299
    %v304 = vpack.c.b16 %v300, %v300
    %v305 = vpack.c.b16 %v301, %v301
    %310 = vst [vmem:[%s5] sm:$0xf] %v302
    %311 = vst [vmem:[%s5 + $0x4] sm:$0xf] %v303
    %312 = vst [vmem:[%s5 + $0x8] sm:$0xf] %v304
    %313 = vst [vmem:[%s5 + $0xc] sm:$0xf] %v305
  $region29: #{_lambda_.7} parent=0 // pred_fallthru
    _
  // Predicated region
  $region30: #{_lambda_.7} parent=0 // pred_check
    _
  $region31: #{_lambda_.7} parent=0 // pred_check_branch
    %315 = sbr.rel (0) target = $region33
  $region32: #{_lambda_.7} parent=0 // pred_region
    _
  $region33: #{_lambda_.7} parent=0 // pred_fallthru
    _
  // Predicated region
  $region34: #{_lambda_.7} parent=0 // pred_check
    _
  $region35: #{_lambda_.7} parent=0 // pred_check_branch
    %317 = sbr.rel (0) target = $region37
  $region36: #{_lambda_.7} parent=0 // pred_region
    _
  $region37: #{_lambda_.7} parent=0 // pred_fallthru
    _

// kernel: _lambda_.9
$region0: #{_lambda_.9}
  #allocation0 [shape = 'u32[]', space=smem, size = 0x4, offset = 0x4, fixed_abs, tag = 'smem constant byte address 0x4 - core index']
  #allocation1 [shape = 'u32[144,128]{1,0:T(1,128)}', space=vmem, size = 0x12000, scoped, tag = 'internal scratch']
  #allocation2 [shape = 'f32[16,128]{1,0:T(8,128)}', space=vmem, size = 0x2000, scoped, tag = 'scratch operand']
  %s0 = inlined_call_operand.vmem [shape: bf16[16,1024], index: 0, kind: input, shape index: {}]
  %s1 = inlined_call_operand.vmem [shape: bf16[1024,128], index: 1, kind: input, shape index: {}]
  %s2 = inlined_call_operand.vmem [shape: f32[1,128], index: 2, kind: input, shape index: {}, may-alias: {2,4}]
  %s3 = inlined_call_operand.vmem [shape: f32[1,128], index: 3, kind: input, shape index: {}]
  %s4 = inlined_call_operand.vmem [shape: f32[1,128], index: 4, kind: input, shape index: {}, may-alias: {2,4}]
  %s5 = inlined_call_operand.vmem [shape: f32[16,128], index: 5, kind: output, shape index: {}]
  %s6 = sld [smem:[#allocation0]]
  $region84: #{_lambda_.9} parent=0
    _
  %s8 = ssub.s32 1, %s6
  %s9 = scalar_select 0, %s8, %s6
  $region1: #{_lambda_.9} parent=0
    #allocation3 [shape = 'u8[32768]{0}', space=vmem, size = 0x8000, scoped, tag = 'input window, operand 0']
    loop: start=0, step=1, limit=4
    $region2: #{_lambda_.9} parent=1 // loop_pre_header
      _
    $region3: #{_lambda_.9} parent=1 // loop_header
      %s11 = sphi 0, %s15
      %p12 = scmp.ge.s32.totalorder %s11, 4
      %s18 = sphi 0, %s37
      %s19 = sphi 0, %s33
      %s20 = sphi 0, %s29
      %s21 = sphi 0, %s18
      %s22 = sphi 0, %s19
      %s23 = sphi 0, %s20
      %s24 = sphi 0, %s21
      %s25 = sphi 0, %s22
      %s26 = sphi 0, %s23
      %s42 = sphi 0, %s44
      %s45 = sphi 0, %s42
      %s46 = sphi 0, %s45
      %s62 = sphi 0, %s46
      %s70 = sphi 0, %s72
      %s73 = sphi 0, %s70
      %s74 = sphi 0, %s73
      %s90 = sphi 0, %s74
      %s96 = sphi 0, %s98
      %s99 = sphi 0, %s96
      %s100 = sphi 0, %s99
      %s116 = sphi 0, %s100
      %s122 = sphi 0, %s124
      %s125 = sphi 0, %s122
      %s126 = sphi 0, %s125
      %s142 = sphi 0, %s126
      %s148 = sphi 0, %s150
      %s151 = sphi 0, %s148
      %s152 = sphi 0, %s151
      %s168 = sphi 0, %s152
      %s176 = sphi 0, %s178
      %s179 = sphi 0, %s176
      %s180 = sphi 0, %s179
      %s196 = sphi 0, %s180
    $region4: #{_lambda_.9} parent=1 // loop_header_branch
      %14 = sbr.rel (%p12) target = $region8
    $region5: #{_lambda_.9} parent=1 // loop_body
      %s16 = ssub.s32 %s11, 1
      %s17 = ssub.s32 %s11, 2
      %s27 = sadd.s32 1, %s20
      %p28 = scmp.ge.s32.totalorder %s27, 2
      %s29 = scalar_select %p28, 0, %s27
      %s30 = sadd.s32 1, %s19
      %s31 = scalar_select %p28, %s30, %s19
      %p32 = scmp.ge.s32.totalorder %s31, 1
      %s33 = scalar_select %p32, 0, %s31
      %s34 = sadd.s32 1, %s18
      %s35 = scalar_select %p32, %s34, %s18
      %p36 = scmp.ge.s32.totalorder %s35, 1
      %s37 = scalar_select %p36, 0, %s35
      %s38 = ssub.s32 %s18, %s37
      %s39 = ssub.s32 %s20, %s29
      %s40 = sor.u32 %s38, %s39
      %p41 = scmp.eq.s32.totalorder %s40, 0
      %s43 = sadd.s32 %s42, 1
      %s44 = scalar_select %p41, %s42, %s43
      %p47 = pneg %p41
      %p48 = scmp.eq.s32.totalorder %s11, 1
      %p49 = por %p47, %p48
      %p50 = scmp.ne.s32.totalorder %s42, %s45
      %p51 = scmp.eq.s32.totalorder %s11, 0
      %p52 = por %p50, %p51
      %p53 = scmp.ne.s32.totalorder %s42, %s45
      %p54 = scmp.eq.s32.totalorder %s16, 1
      %p55 = por %p53, %p54
      %p56 = scmp.ne.s32.totalorder %s45, %s46
      %p57 = scmp.eq.s32.totalorder %s16, 0
      %p58 = por %p56, %p57
      %p59 = scmp.ne.s32.totalorder %s45, %s46
      %p60 = scmp.eq.s32.totalorder %s17, 1
      %p61 = por %p59, %p60
      %p63 = scmp.ne.s32.totalorder %s46, %s62
      %p64 = scmp.eq.s32.totalorder %s17, 0
      %p65 = por %p63, %p64
      %s66 = ssub.s32 %s20, %s29
      %s67 = ssub.s32 %s19, %s33
      %s68 = sor.u32 %s66, %s67
      %p69 = scmp.eq.s32.totalorder %s68, 0
      %s71 = sadd.s32 %s70, 1
      %s72 = scalar_select %p69, %s70, %s71
      %p75 = pneg %p69
      %p76 = scmp.eq.s32.totalorder %s11, 1
      %p77 = por %p75, %p76
      %p78 = scmp.ne.s32.totalorder %s70, %s73
      %p79 = scmp.eq.s32.totalorder %s11, 0
      %p80 = por %p78, %p79
      %p81 = scmp.ne.s32.totalorder %s70, %s73
      %p82 = scmp.eq.s32.totalorder %s16, 1
      %p83 = por %p81, %p82
      %p84 = scmp.ne.s32.totalorder %s73, %s74
      %p85 = scmp.eq.s32.totalorder %s16, 0
      %p86 = por %p84, %p85
      %p87 = scmp.ne.s32.totalorder %s73, %s74
      %p88 = scmp.eq.s32.totalorder %s17, 1
      %p89 = por %p87, %p88
      %p91 = scmp.ne.s32.totalorder %s74, %s90
      %p92 = scmp.eq.s32.totalorder %s17, 0
      %p93 = por %p91, %p92
      %s94 = ssub.s32 %s19, %s33
      %p95 = scmp.eq.s32.totalorder %s94, 0
      %s97 = sadd.s32 %s96, 1
      %s98 = scalar_select %p95, %s96, %s97
      %p101 = pneg %p95
      %p102 = scmp.eq.s32.totalorder %s11, 1
      %p103 = por %p101, %p102
      %p104 = scmp.ne.s32.totalorder %s96, %s99
      %p105 = scmp.eq.s32.totalorder %s11, 0
      %p106 = por %p104, %p105
      %p107 = scmp.ne.s32.totalorder %s96, %s99
      %p108 = scmp.eq.s32.totalorder %s16, 1
      %p109 = por %p107, %p108
      %p110 = scmp.ne.s32.totalorder %s99, %s100
      %p111 = scmp.eq.s32.totalorder %s16, 0
      %p112 = por %p110, %p111
      %p113 = scmp.ne.s32.totalorder %s99, %s100
      %p114 = scmp.eq.s32.totalorder %s17, 1
      %p115 = por %p113, %p114
      %p117 = scmp.ne.s32.totalorder %s100, %s116
      %p118 = scmp.eq.s32.totalorder %s17, 0
      %p119 = por %p117, %p118
      %s120 = ssub.s32 %s19, %s33
      %p121 = scmp.eq.s32.totalorder %s120, 0
      %s123 = sadd.s32 %s122, 1
      %s124 = scalar_select %p121, %s122, %s123
      %p127 = pneg %p121
      %p128 = scmp.eq.s32.totalorder %s11, 1
      %p129 = por %p127, %p128
      %p130 = scmp.ne.s32.totalorder %s122, %s125
      %p131 = scmp.eq.s32.totalorder %s11, 0
      %p132 = por %p130, %p131
      %p133 = scmp.ne.s32.totalorder %s122, %s125
      %p134 = scmp.eq.s32.totalorder %s16, 1
      %p135 = por %p133, %p134
      %p136 = scmp.ne.s32.totalorder %s125, %s126
      %p137 = scmp.eq.s32.totalorder %s16, 0
      %p138 = por %p136, %p137
      %p139 = scmp.ne.s32.totalorder %s125, %s126
      %p140 = scmp.eq.s32.totalorder %s17, 1
      %p141 = por %p139, %p140
      %p143 = scmp.ne.s32.totalorder %s126, %s142
      %p144 = scmp.eq.s32.totalorder %s17, 0
      %p145 = por %p143, %p144
      %s146 = ssub.s32 %s19, %s33
      %p147 = scmp.eq.s32.totalorder %s146, 0
      %s149 = sadd.s32 %s148, 1
      %s150 = scalar_select %p147, %s148, %s149
      %p153 = pneg %p147
      %p154 = scmp.eq.s32.totalorder %s11, 1
      %p155 = por %p153, %p154
      %p156 = scmp.ne.s32.totalorder %s148, %s151
      %p157 = scmp.eq.s32.totalorder %s11, 0
      %p158 = por %p156, %p157
      %p159 = scmp.ne.s32.totalorder %s148, %s151
      %p160 = scmp.eq.s32.totalorder %s16, 1
      %p161 = por %p159, %p160
      %p162 = scmp.ne.s32.totalorder %s151, %s152
      %p163 = scmp.eq.s32.totalorder %s16, 0
      %p164 = por %p162, %p163
      %p165 = scmp.ne.s32.totalorder %s151, %s152
      %p166 = scmp.eq.s32.totalorder %s17, 1
      %p167 = por %p165, %p166
      %p169 = scmp.ne.s32.totalorder %s152, %s168
      %p170 = scmp.eq.s32.totalorder %s17, 0
      %p171 = por %p169, %p170
      %s172 = ssub.s32 %s18, %s37
      %s173 = ssub.s32 %s19, %s33
      %s174 = sor.u32 %s172, %s173
      %p175 = scmp.eq.s32.totalorder %s174, 0
      %s177 = sadd.s32 %s176, 1
      %s178 = scalar_select %p175, %s176, %s177
      %p181 = pneg %p175
      %p182 = scmp.eq.s32.totalorder %s11, 1
      %p183 = por %p181, %p182
      %p184 = scmp.ne.s32.totalorder %s176, %s179
      %p185 = scmp.eq.s32.totalorder %s11, 0
      %p186 = por %p184, %p185
      %p187 = scmp.ne.s32.totalorder %s176, %s179
      %p188 = scmp.eq.s32.totalorder %s16, 1
      %p189 = por %p187, %p188
      %p190 = scmp.ne.s32.totalorder %s179, %s180
      %p191 = scmp.eq.s32.totalorder %s16, 0
      %p192 = por %p190, %p191
      %p193 = scmp.ne.s32.totalorder %s179, %s180
      %p194 = scmp.eq.s32.totalorder %s17, 1
      %p195 = por %p193, %p194
      %p197 = scmp.ne.s32.totalorder %s180, %s196
      %p198 = scmp.eq.s32.totalorder %s17, 0
      %p199 = por %p197, %p198
      %p200 = scmp.le.s32.totalorder 1, %s11
      %p201 = scmp.lt.s32.totalorder %s11, 3
      %p202 = pnand %p200, %p201
      %p203 = pneg %p202
      // Predicated region
      $region9: #{_lambda_.9} parent=5 // pred_check
        _
      $region10: #{_lambda_.9} parent=5 // pred_check_branch
        %205 = sbr.rel (%p202) target = $region12
      $region11: #{_lambda_.9} parent=5 // pred_region
        %s206 = ssub.s32 %s11, 1
        // Predicated region
        $region13: #{_lambda_.9} parent=11 // pred_check
          %p207 = pneg %p112
        $region14: #{_lambda_.9} parent=11 // pred_check_branch
          %209 = sbr.rel (%p207) target = $region16
        $region15: #{_lambda_.9} parent=11 // pred_region
          %p210 = scmp.lt.s32.totalorder %s22, 0
          %s211 = scalar_select %p210, %s22, 0
          %s212 = scalar_lea.vmem %s2, %s211
        $region16: #{_lambda_.9} parent=11 // pred_fallthru
          _
        // Predicated region
        $region17: #{_lambda_.9} parent=11 // pred_check
          %p213 = pneg %p138
        $region18: #{_lambda_.9} parent=11 // pred_check_branch
          %215 = sbr.rel (%p213) target = $region20
        $region19: #{_lambda_.9} parent=11 // pred_region
          %p216 = scmp.lt.s32.totalorder %s22, 0
          %s217 = scalar_select %p216, %s22, 0
          %s218 = scalar_lea.vmem %s3, %s217
        $region20: #{_lambda_.9} parent=11 // pred_fallthru
          _
        // Predicated region
        $region21: #{_lambda_.9} parent=11 // pred_check
          %p219 = pneg %p164
        $region22: #{_lambda_.9} parent=11 // pred_check_branch
          %221 = sbr.rel (%p219) target = $region24
        $region23: #{_lambda_.9} parent=11 // pred_region
          %p222 = scmp.lt.s32.totalorder %s22, 0
          %s223 = scalar_select %p222, %s22, 0
          %s224 = scalar_lea.vmem %s4, %s223
        $region24: #{_lambda_.9} parent=11 // pred_fallthru
          _
      $region12: #{_lambda_.9} parent=5 // pred_fallthru
        _
      %p225 = scmp.lt.s32.totalorder %s11, 2
      // Predicated region
      $region25: #{_lambda_.9} parent=5 // pred_check
        %p226 = pneg %p225
      $region26: #{_lambda_.9} parent=5 // pred_check_branch
        %228 = sbr.rel (%p226) target = $region28
      $region27: #{_lambda_.9} parent=5 // pred_region
        // Predicated region
        $region29: #{_lambda_.9} parent=27 // pred_check
          %p229 = pneg %p52
        $region30: #{_lambda_.9} parent=27 // pred_check_branch
          %231 = sbr.rel (%p229) target = $region32
        $region31: #{_lambda_.9} parent=27 // pred_region
          %s232 = sand.u32 %s42, 1
          %s233 = sand.u32 %s42, 1
          %s234 = smul.addr %s233, 32
          %s235 = scalar_lea.vmem [#allocation3], %s234
          %s236 = smul.u32 2, %s18
          %s237 = smul.u32 4, %s20
          %s238 = smul.addr %s236, 8
          %s239 = sadd.s32 %s237, %s238
          %s240 = smul.addr %s239, 4
          %s241 = scalar_lea.vmem %s0, %s240
          // Predicated region
          $region33: #{_lambda_.9} parent=31 // pred_check
            _
          $region34: #{_lambda_.9} parent=31 // pred_check_branch
            %243 = sbr.rel (0) target = $region36
          $region35: #{_lambda_.9} parent=31 // pred_region
            // Predicated region
            $region37: #{_lambda_.9} parent=35 // pred_check
              _
            $region38: #{_lambda_.9} parent=35 // pred_check_branch
              %245 = sbr.rel (0) target = $region40
            $region39: #{_lambda_.9} parent=35 // pred_region
              loop: start=0, step=1, limit=1
              $region41: #{_lambda_.9} parent=39 // loop_pre_header
                _
              $region42: #{_lambda_.9} parent=39 // loop_header
                %s247 = sphi 0, %s251
                %p248 = scmp.ge.s32.totalorder %s247, 1
                %s252 = sphi %s241, %s241
                %s253 = sphi %s235, %s235
              $region43: #{_lambda_.9} parent=39 // loop_header_branch
                %250 = sbr.rel (%p248) target = $region47
              $region44: #{_lambda_.9} parent=39 // loop_body
                %v254 = vld [vmem:[%s252] sm:$0xff]
                %255 = vst [vmem:[%s253] sm:$0xff] %v254
                %v256 = vld [vmem:[%s252 + $0x8] sm:$0xff]
                %257 = vst [vmem:[%s253 + $0x8] sm:$0xff] %v256
                %v258 = vld [vmem:[%s252 + $0x20] sm:$0xff]
                %259 = vst [vmem:[%s253 + $0x10] sm:$0xff] %v258
                %v260 = vld [vmem:[%s252 + $0x28] sm:$0xff]
                %261 = vst [vmem:[%s253 + $0x18] sm:$0xff] %v260
              $region45: #{_lambda_.9} parent=39 // loop_footer
                %s251 = sadd.s32 1, %s247
              $region46: #{_lambda_.9} parent=39 // loop_footer_branch
                %246 = sbr.rel target = $region42
              $region47: #{_lambda_.9} parent=39 // loop_exit
                _
            $region40: #{_lambda_.9} parent=35 // pred_fallthru
              _
            // Predicated region
            $region48: #{_lambda_.9} parent=35 // pred_check
              _
            $region49: #{_lambda_.9} parent=35 // pred_check_branch
              %263 = sbr.rel target = $region51
            $region50: #{_lambda_.9} parent=35 // pred_region
              _
            $region51: #{_lambda_.9} parent=35 // pred_fallthru
              _
          $region36: #{_lambda_.9} parent=31 // pred_fallthru
            _
          %264 = vnop
        $region32: #{_lambda_.9} parent=27 // pred_fallthru
          _
        // Predicated region
        $region52: #{_lambda_.9} parent=27 // pred_check
          %p265 = pneg %p80
        $region53: #{_lambda_.9} parent=27 // pred_check_branch
          %267 = sbr.rel (%p265) target = $region55
        $region54: #{_lambda_.9} parent=27 // pred_region
          %s268 = smul.u32 64, %s20
          %p269 = scmp.lt.s32.totalorder %s268, 127
          %s270 = scalar_select %p269, %s268, 127
          %p271 = scmp.lt.s32.totalorder %s19, 0
          %s272 = scalar_select %p271, %s19, 0
          %s273 = sadd.s32 %s272, %s270
          %s274 = smul.addr %s273, 4
          %s275 = scalar_lea.vmem %s1, %s274
          %s276 = smul.u32 64, %s20
        $region55: #{_lambda_.9} parent=27 // pred_fallthru
          _
      $region28: #{_lambda_.9} parent=5 // pred_fallthru
        _
      %p277 = scmp.le.s32.totalorder 1, %s11
      %p278 = scmp.lt.s32.totalorder %s11, 3
      %p279 = pnand %p277, %p278
      %p280 = pneg %p279
      // Predicated region
      $region56: #{_lambda_.9} parent=5 // pred_check
        _
      $region57: #{_lambda_.9} parent=5 // pred_check_branch
        %282 = sbr.rel (%p279) target = $region59
      $region58: #{_lambda_.9} parent=5 // pred_region
        %s283 = ssub.s32 %s11, 1
        %s284 = sand.u32 %s45, 1
        %s285 = sand.u32 %s45, 1
        %s286 = smul.addr %s285, 32
        %s287 = scalar_lea.vmem [#allocation3], %s286
        // Predicated region
        $region60: #{_lambda_.9} parent=58 // pred_check
          %p288 = pneg %p58
        $region61: #{_lambda_.9} parent=58 // pred_check_branch
          %290 = sbr.rel (%p288) target = $region63
        $region62: #{_lambda_.9} parent=58 // pred_region
          _
        $region63: #{_lambda_.9} parent=58 // pred_fallthru
          _
        %s291 = sand.u32 %s45, 1
        %s292 = sand.u32 %s45, 1
        %s293 = smul.addr %s292, 32
        %s294 = scalar_lea.vmem [#allocation3], %s293
        %p295 = pneg %p58
        %p296 = pneg %p55
        %s297 = smul.u32 64, %s23
        %p298 = scmp.lt.s32.totalorder %s297, 127
        %s299 = scalar_select %p298, %s297, 127
        %p300 = scmp.lt.s32.totalorder %s22, 0
        %s301 = scalar_select %p300, %s22, 0
        %s302 = sadd.s32 %s301, %s299
        %s303 = smul.addr %s302, 4
        %s304 = scalar_lea.vmem %s1, %s303
        %p305 = pneg %p86
        %p306 = pneg %p83
        %p307 = scmp.lt.s32.totalorder %s22, 0
        %s308 = scalar_select %p307, %s22, 0
        %s309 = scalar_lea.vmem %s2, %s308
        %p310 = pneg %p112
        %p311 = pneg %p109
        %p312 = scmp.lt.s32.totalorder %s22, 0
        %s313 = scalar_select %p312, %s22, 0
        %s314 = scalar_lea.vmem %s3, %s313
        %p315 = pneg %p138
        %p316 = pneg %p135
        %p317 = scmp.lt.s32.totalorder %s22, 0
        %s318 = scalar_select %p317, %s22, 0
        %s319 = scalar_lea.vmem %s4, %s318
        %p320 = pneg %p164
        %p321 = pneg %p161
        %p322 = pneg %p192
        %p323 = pneg %p189
        %s324 = smul.u32 2, %s21
        %p325 = scmp.lt.s32.totalorder %s324, 1
        %s326 = scalar_select %p325, %s324, 1
        %p327 = scmp.lt.s32.totalorder %s22, 0
        %s328 = scalar_select %p327, %s22, 0
        %s329 = sadd.s32 %s328, %s326
        %s330 = smul.addr %s329, 8
        %s331 = scalar_lea.vmem %s5, %s330
        %s332 = smul.u32 2, %s21
        %s333 = smul.u32 4, %s23
        %s334 = smul.u32 64, %s23
        %p335 = scmp.lt.s32.totalorder %s334, 127
        %s336 = scalar_select %p335, %s334, 127
        %p337 = scmp.lt.s32.totalorder %s22, 0
        %s338 = scalar_select %p337, %s22, 0
        %s339 = sadd.s32 %s338, %s336
        %s340 = smul.addr %s339, 4
        %s341 = scalar_lea.vmem %s1, %s340
        %s342 = smul.u32 64, %s23
        %p343 = scmp.lt.s32.totalorder %s22, 0
        %s344 = scalar_select %p343, %s22, 0
        %s345 = scalar_lea.vmem %s2, %s344
        %p346 = scmp.lt.s32.totalorder %s22, 0
        %s347 = scalar_select %p346, %s22, 0
        %s348 = scalar_lea.vmem %s3, %s347
        %p349 = scmp.lt.s32.totalorder %s22, 0
        %s350 = scalar_select %p349, %s22, 0
        %s351 = scalar_lea.vmem %s4, %s350
        %s352 = smul.u32 2, %s21
        %p353 = scmp.lt.s32.totalorder %s352, 1
        %s354 = scalar_select %p353, %s352, 1
        %p355 = scmp.lt.s32.totalorder %s22, 0
        %s356 = scalar_select %p355, %s22, 0
        %s357 = sadd.s32 %s356, %s354
        %s358 = smul.addr %s357, 8
        %s359 = scalar_lea.vmem %s5, %s358
        %s360 = smul.u32 2, %s21
        %p362 = scmp.eq.s32.totalorder %s23, 0
        // Predicated region
        $region64: #{_lambda_.9} parent=58 // pred_check
          %p363 = pneg %p362
        $region65: #{_lambda_.9} parent=58 // pred_check_branch
          %365 = sbr.rel (%p363) target = $region67
        $region66: #{_lambda_.9} parent=58 // pred_region
          %366 = vst [vmem:[#allocation2] sm:$0xff] 0.0
          %367 = vst [vmem:[#allocation2 + $0x8] sm:$0xff] 0.0
        $region67: #{_lambda_.9} parent=58 // pred_fallthru
          _
        %v368 = vld [vmem:[#allocation2] sm:$0xff]
        %v369 = vld [vmem:[#allocation2 + $0x8] sm:$0xff]
        %v370 = vld [vmem:[%s287] sm:$0xff]
        %v371 = vld [vmem:[%s287 + $0x8] sm:$0xff]
        %v372 = vld [vmem:[%s287 + $0x10] sm:$0xff]
        %v373 = vld [vmem:[%s287 + $0x18] sm:$0xff]
        %v374 = vld [vmem:[%s341] sm:$0xf]
        %v375 = vld [vmem:[%s341 + $0x4] sm:$0xf]
        %v376 = vld [vmem:[%s341 + $0x8] sm:$0xf]
        %v377 = vld [vmem:[%s341 + $0xc] sm:$0xf]
        %v378 = vld [vmem:[%s341 + $0x10] sm:$0xf]
        %v379 = vld [vmem:[%s341 + $0x14] sm:$0xf]
        %v380 = vld [vmem:[%s341 + $0x18] sm:$0xf]
        %v381 = vld [vmem:[%s341 + $0x1c] sm:$0xf]
        %v382 = vld [vmem:[%s341 + $0x20] sm:$0xf]
        %v383 = vld [vmem:[%s341 + $0x24] sm:$0xf]
        %v384 = vld [vmem:[%s341 + $0x28] sm:$0xf]
        %v385 = vld [vmem:[%s341 + $0x2c] sm:$0xf]
        %v386 = vld [vmem:[%s341 + $0x30] sm:$0xf]
        %v387 = vld [vmem:[%s341 + $0x34] sm:$0xf]
        %v388 = vld [vmem:[%s341 + $0x38] sm:$0xf]
        %v389 = vld [vmem:[%s341 + $0x3c] sm:$0xf]
        %v390 = vld [vmem:[%s341 + $0x40] sm:$0xf]
        %v391 = vld [vmem:[%s341 + $0x44] sm:$0xf]
        %v392 = vld [vmem:[%s341 + $0x48] sm:$0xf]
        %v393 = vld [vmem:[%s341 + $0x4c] sm:$0xf]
        %v394 = vld [vmem:[%s341 + $0x50] sm:$0xf]
        %v395 = vld [vmem:[%s341 + $0x54] sm:$0xf]
        %v396 = vld [vmem:[%s341 + $0x58] sm:$0xf]
        %v397 = vld [vmem:[%s341 + $0x5c] sm:$0xf]
        %v398 = vld [vmem:[%s341 + $0x60] sm:$0xf]
        %v399 = vld [vmem:[%s341 + $0x64] sm:$0xf]
        %v400 = vld [vmem:[%s341 + $0x68] sm:$0xf]
        %v401 = vld [vmem:[%s341 + $0x6c] sm:$0xf]
        %v402 = vld [vmem:[%s341 + $0x70] sm:$0xf]
        %v403 = vld [vmem:[%s341 + $0x74] sm:$0xf]
        %v404 = vld [vmem:[%s341 + $0x78] sm:$0xf]
        %v405 = vld [vmem:[%s341 + $0x7c] sm:$0xf]
        %v406 = vld [vmem:[%s341 + $0x80] sm:$0xf]
        %v407 = vld [vmem:[%s341 + $0x84] sm:$0xf]
        %v408 = vld [vmem:[%s341 + $0x88] sm:$0xf]
        %v409 = vld [vmem:[%s341 + $0x8c] sm:$0xf]
        %v410 = vld [vmem:[%s341 + $0x90] sm:$0xf]
        %v411 = vld [vmem:[%s341 + $0x94] sm:$0xf]
        %v412 = vld [vmem:[%s341 + $0x98] sm:$0xf]
        %v413 = vld [vmem:[%s341 + $0x9c] sm:$0xf]
        %v414 = vld [vmem:[%s341 + $0xa0] sm:$0xf]
        %v415 = vld [vmem:[%s341 + $0xa4] sm:$0xf]
        %v416 = vld [vmem:[%s341 + $0xa8] sm:$0xf]
        %v417 = vld [vmem:[%s341 + $0xac] sm:$0xf]
        %v418 = vld [vmem:[%s341 + $0xb0] sm:$0xf]
        %v419 = vld [vmem:[%s341 + $0xb4] sm:$0xf]
        %v420 = vld [vmem:[%s341 + $0xb8] sm:$0xf]
        %v421 = vld [vmem:[%s341 + $0xbc] sm:$0xf]
        %v422 = vld [vmem:[%s341 + $0xc0] sm:$0xf]
        %v423 = vld [vmem:[%s341 + $0xc4] sm:$0xf]
        %v424 = vld [vmem:[%s341 + $0xc8] sm:$0xf]
        %v425 = vld [vmem:[%s341 + $0xcc] sm:$0xf]
        %v426 = vld [vmem:[%s341 + $0xd0] sm:$0xf]
        %v427 = vld [vmem:[%s341 + $0xd4] sm:$0xf]
        %v428 = vld [vmem:[%s341 + $0xd8] sm:$0xf]
        %v429 = vld [vmem:[%s341 + $0xdc] sm:$0xf]
        %v430 = vld [vmem:[%s341 + $0xe0] sm:$0xf]
        %v431 = vld [vmem:[%s341 + $0xe4] sm:$0xf]
        %v432 = vld [vmem:[%s341 + $0xe8] sm:$0xf]
        %v433 = vld [vmem:[%s341 + $0xec] sm:$0xf]
        %v434 = vld [vmem:[%s341 + $0xf0] sm:$0xf]
        %v435 = vld [vmem:[%s341 + $0xf4] sm:$0xf]
        %v436 = vld [vmem:[%s341 + $0xf8] sm:$0xf]
        %v437 = vld [vmem:[%s341 + $0xfc] sm:$0xf]
        %v442 = vunpack.c.l.b16 %v370
        %v443 = vunpack.c.h.b16 %v370
        %v444 = vunpack.c.l.b16 %v371
        %v445 = vunpack.c.h.b16 %v371
        %v446 = vunpack.c.l.b16 %v372
        %v447 = vunpack.c.h.b16 %v372
        %v448 = vunpack.c.l.b16 %v373
        %v449 = vunpack.c.h.b16 %v373
        %v450 = vpack.c.b16 %v446, %v442
        %v451 = vpack.c.b16 %v447, %v443
        %v452 = vpack.c.b16 %v448, %v444
        %v453 = vpack.c.b16 %v449, %v445
        %v522 = vunpack.c.l.b16 %v374
        %v523 = vunpack.c.l.b16 %v375
        %v524 = vunpack.c.l.b16 %v376
        %v525 = vunpack.c.l.b16 %v377
        %v526 = vunpack.c.l.b16 %v378
        %v527 = vunpack.c.l.b16 %v379
        %v528 = vunpack.c.l.b16 %v380
        %v529 = vunpack.c.l.b16 %v381
        %v530 = vunpack.c.l.b16 %v382
        %v531 = vunpack.c.l.b16 %v383
        %v532 = vunpack.c.l.b16 %v384
        %v533 = vunpack.c.l.b16 %v385
        %v534 = vunpack.c.l.b16 %v386
        %v535 = vunpack.c.l.b16 %v387
        %v536 = vunpack.c.l.b16 %v388
        %v537 = vunpack.c.l.b16 %v389
        %v538 = vunpack.c.l.b16 %v390
        %v539 = vunpack.c.l.b16 %v391
        %v540 = vunpack.c.l.b16 %v392
        %v541 = vunpack.c.l.b16 %v393
        %v542 = vunpack.c.l.b16 %v394
        %v543 = vunpack.c.l.b16 %v395
        %v544 = vunpack.c.l.b16 %v396
        %v545 = vunpack.c.l.b16 %v397
        %v546 = vunpack.c.l.b16 %v398
        %v547 = vunpack.c.l.b16 %v399
        %v548 = vunpack.c.l.b16 %v400
        %v549 = vunpack.c.l.b16 %v401
        %v550 = vunpack.c.l.b16 %v402
        %v551 = vunpack.c.l.b16 %v403
        %v552 = vunpack.c.l.b16 %v404
        %v553 = vunpack.c.l.b16 %v405
        %v554 = vunpack.c.l.b16 %v406
        %v555 = vunpack.c.l.b16 %v407
        %v556 = vunpack.c.l.b16 %v408
        %v557 = vunpack.c.l.b16 %v409
        %v558 = vunpack.c.l.b16 %v410
        %v559 = vunpack.c.l.b16 %v411
        %v560 = vunpack.c.l.b16 %v412
        %v561 = vunpack.c.l.b16 %v413
        %v562 = vunpack.c.l.b16 %v414
        %v563 = vunpack.c.l.b16 %v415
        %v564 = vunpack.c.l.b16 %v416
        %v565 = vunpack.c.l.b16 %v417
        %v566 = vunpack.c.l.b16 %v418
        %v567 = vunpack.c.l.b16 %v419
        %v568 = vunpack.c.l.b16 %v420
        %v569 = vunpack.c.l.b16 %v421
        %v570 = vunpack.c.l.b16 %v422
        %v571 = vunpack.c.l.b16 %v423
        %v572 = vunpack.c.l.b16 %v424
        %v573 = vunpack.c.l.b16 %v425
        %v574 = vunpack.c.l.b16 %v426
        %v575 = vunpack.c.l.b16 %v427
        %v576 = vunpack.c.l.b16 %v428
        %v577 = vunpack.c.l.b16 %v429
        %v578 = vunpack.c.l.b16 %v430
        %v579 = vunpack.c.l.b16 %v431
        %v580 = vunpack.c.l.b16 %v432
        %v581 = vunpack.c.l.b16 %v433
        %v582 = vunpack.c.l.b16 %v434
        %v583 = vunpack.c.l.b16 %v435
        %v584 = vunpack.c.l.b16 %v436
        %v585 = vunpack.c.l.b16 %v437
        %v586 = vpack.c.b16 %v523, %v522
        %v587 = vpack.c.b16 %v525, %v524
        %v588 = vpack.c.b16 %v527, %v526
        %v589 = vpack.c.b16 %v529, %v528
        %v590 = vpack.c.b16 %v531, %v530
        %v591 = vpack.c.b16 %v533, %v532
        %v592 = vpack.c.b16 %v535, %v534
        %v593 = vpack.c.b16 %v537, %v536
        %v594 = vpack.c.b16 %v539, %v538
        %v595 = vpack.c.b16 %v541, %v540
        %v596 = vpack.c.b16 %v543, %v542
        %v597 = vpack.c.b16 %v545, %v544
        %v598 = vpack.c.b16 %v547, %v546
        %v599 = vpack.c.b16 %v549, %v548
        %v600 = vpack.c.b16 %v551, %v550
        %v601 = vpack.c.b16 %v553, %v552
        %v602 = vpack.c.b16 %v555, %v554
        %v603 = vpack.c.b16 %v557, %v556
        %v604 = vpack.c.b16 %v559, %v558
        %v605 = vpack.c.b16 %v561, %v560
        %v606 = vpack.c.b16 %v563, %v562
        %v607 = vpack.c.b16 %v565, %v564
        %v608 = vpack.c.b16 %v567, %v566
        %v609 = vpack.c.b16 %v569, %v568
        %v610 = vpack.c.b16 %v571, %v570
        %v611 = vpack.c.b16 %v573, %v572
        %v612 = vpack.c.b16 %v575, %v574
        %v613 = vpack.c.b16 %v577, %v576
        %v614 = vpack.c.b16 %v579, %v578
        %v615 = vpack.c.b16 %v581, %v580
        %v616 = vpack.c.b16 %v583, %v582
        %v617 = vpack.c.b16 %v585, %v584
        %650 = vmatprep.subr.bf16.mxu0 0
        %651 = vmatpush1.bf16.msra.mxu0 %v593
        %652 = vmatprep.subr.bf16.mxu0 0
        %653 = vmatpush1.bf16.msra.mxu0 %v592
        %654 = vmatprep.subr.bf16.mxu0 0
        %655 = vmatpush1.bf16.msra.mxu0 %v591
        %656 = vmatprep.subr.bf16.mxu0 0
        %657 = vmatpush1.bf16.msra.mxu0 %v590
        %658 = vmatprep.subr.bf16.mxu0 0
        %659 = vmatpush1.bf16.msra.mxu0 %v589
        %660 = vmatprep.subr.bf16.mxu0 0
        %661 = vmatpush1.bf16.msra.mxu0 %v588
        %662 = vmatprep.subr.bf16.mxu0 0
        %663 = vmatpush1.bf16.msra.mxu0 %v587
        %664 = vmatprep.subr.bf16.mxu0 0
        %665 = vmatpush1.bf16.msra.mxu0 %v586
        %666 = vmatprep.subr.bf16.mxu0 0
        %667 = vmatpush2.bf16.msra.mxu0 %v601
        %668 = vmatprep.subr.bf16.mxu0 0
        %669 = vmatpush2.bf16.msra.mxu0 %v600
        %670 = vmatprep.subr.bf16.mxu0 0
        %671 = vmatpush2.bf16.msra.mxu0 %v599
        %672 = vmatprep.subr.bf16.mxu0 0
        %673 = vmatpush2.bf16.msra.mxu0 %v598
        %674 = vmatprep.subr.bf16.mxu0 0
        %675 = vmatpush2.bf16.msra.mxu0 %v597
        %676 = vmatprep.subr.bf16.mxu0 0
        %677 = vmatpush2.bf16.msra.mxu0 %v596
        %678 = vmatprep.subr.bf16.mxu0 0
        %679 = vmatpush2.bf16.msra.mxu0 %v595
        %680 = vmatprep.subr.bf16.mxu0 0
        %681 = vmatpush2.bf16.msra.mxu0 %v594
        %682 = vmatprep.mubr.bf16.mxu0 %v451
        %683 = vmatmul.mubr.bf16.gmra.mxu0 %v450
        %v684 = vpop.f32.mrf.mxu0
        %v685 = vadd.f32 0.0, %v684
        %v686 = vpop.f32.mrf.mxu0
        %v687 = vpop.f32.mrf.mxu0
        %v688 = vadd.f32 0.0, %v687
        %v689 = vpop.f32.mrf.mxu0
        %690 = vdwg.mxu0
        %691 = vmatprep.subr.bf16.mxu0 0
        %692 = vmatpush1.bf16.msra.mxu0 %v609
        %693 = vmatprep.subr.bf16.mxu0 0
        %694 = vmatpush1.bf16.msra.mxu0 %v608
        %695 = vmatprep.subr.bf16.mxu0 0
        %696 = vmatpush1.bf16.msra.mxu0 %v607
        %697 = vmatprep.subr.bf16.mxu0 0
        %698 = vmatpush1.bf16.msra.mxu0 %v606
        %699 = vmatprep.subr.bf16.mxu0 0
        %700 = vmatpush1.bf16.msra.mxu0 %v605
        %701 = vmatprep.subr.bf16.mxu0 0
        %702 = vmatpush1.bf16.msra.mxu0 %v604
        %703 = vmatprep.subr.bf16.mxu0 0
        %704 = vmatpush1.bf16.msra.mxu0 %v603
        %705 = vmatprep.subr.bf16.mxu0 0
        %706 = vmatpush1.bf16.msra.mxu0 %v602
        %707 = vmatprep.subr.bf16.mxu0 0
        %708 = vmatpush2.bf16.msra.mxu0 %v617
        %709 = vmatprep.subr.bf16.mxu0 0
        %710 = vmatpush2.bf16.msra.mxu0 %v616
        %711 = vmatprep.subr.bf16.mxu0 0
        %712 = vmatpush2.bf16.msra.mxu0 %v615
        %713 = vmatprep.subr.bf16.mxu0 0
        %714 = vmatpush2.bf16.msra.mxu0 %v614
        %715 = vmatprep.subr.bf16.mxu0 0
        %716 = vmatpush2.bf16.msra.mxu0 %v613
        %717 = vmatprep.subr.bf16.mxu0 0
        %718 = vmatpush2.bf16.msra.mxu0 %v612
        %719 = vmatprep.subr.bf16.mxu0 0
        %720 = vmatpush2.bf16.msra.mxu0 %v611
        %721 = vmatprep.subr.bf16.mxu0 0
        %722 = vmatpush2.bf16.msra.mxu0 %v610
        %723 = vmatprep.mubr.bf16.mxu0 %v453
        %724 = vmatmul.mubr.bf16.gmra.mxu0 %v452
        %v725 = vpop.f32.mrf.mxu0
        %v726 = vadd.f32 %v685, %v725
        %v727 = vpop.f32.mrf.mxu0
        %v728 = vpop.f32.mrf.mxu0
        %v729 = vadd.f32 %v688, %v728
        %v730 = vpop.f32.mrf.mxu0
        %731 = vdwg.mxu0
        %v732 = vadd.f32 %v368, %v726
        %v733 = vadd.f32 %v369, %v729
        %734 = vst [vmem:[#allocation2] sm:$0xff] %v732
        %735 = vst [vmem:[#allocation2 + $0x8] sm:$0xff] %v733
        %p736 = scmp.eq.s32.totalorder %s23, 1
        // Predicated region
        $region68: #{_lambda_.9} parent=58 // pred_check
          %p737 = pneg %p736
        $region69: #{_lambda_.9} parent=58 // pred_check_branch
          %739 = sbr.rel (%p737) target = $region71
        $region70: #{_lambda_.9} parent=58 // pred_region
          %v740 = vld [vmem:[#allocation2] sm:$0xff]
          %v741 = vld [vmem:[#allocation2 + $0x8] sm:$0xff]
          %v742 = vld [vmem:[%s345] sm:$0x1]
          %v744 = vlaneseq
          %v745 = vshrl.u32 %v744, 7
          %v746 = vsub.s32 0, %v745
          %v747 = vrot.slane %v742, %v746
          %v749 = vmul.f32 %v740, %v747
          %v750 = vmul.f32 %v741, %v747
          %v751 = vld [vmem:[%s348] sm:$0x1]
          %v753 = vlaneseq
          %v754 = vshrl.u32 %v753, 7
          %v755 = vsub.s32 0, %v754
          %v756 = vrot.slane %v751, %v755
          %v758 = vadd.f32 %v749, %v756
          %v759 = vadd.f32 %v750, %v756
          %v760 = vld [vmem:[%s351] sm:$0x1]
          %v762 = vlaneseq
          %v763 = vshrl.u32 %v762, 7
          %v764 = vsub.s32 0, %v763
          %v765 = vrot.slane %v760, %v764
          %v767 = vmul.f32 %v758, %v765
          %v768 = vmul.f32 %v759, %v765
          %769 = vst [vmem:[%s359] sm:$0xff] %v767
          %770 = vst [vmem:[%s359 + $0x8] sm:$0xff] %v768
        $region71: #{_lambda_.9} parent=58 // pred_fallthru
          _
        %s771 = smul.u32 2, %s21
        %p772 = scmp.lt.s32.totalorder %s771, 1
        %s773 = scalar_select %p772, %s771, 1
        %p774 = scmp.lt.s32.totalorder %s22, 0
        %s775 = scalar_select %p774, %s22, 0
        %s776 = sadd.s32 %s775, %s773
        %s777 = smul.addr %s776, 8
        %s778 = scalar_lea.vmem %s5, %s777
        // Predicated region
        $region72: #{_lambda_.9} parent=58 // pred_check
          %p779 = pneg %p189
        $region73: #{_lambda_.9} parent=58 // pred_check_branch
          %781 = sbr.rel (%p779) target = $region75
        $region74: #{_lambda_.9} parent=58 // pred_region
          %s782 = smul.u32 2, %s21
        $region75: #{_lambda_.9} parent=58 // pred_fallthru
          _
        // Predicated region
        $region76: #{_lambda_.9} parent=58 // pred_check
          %p783 = pneg %p189
        $region77: #{_lambda_.9} parent=58 // pred_check_branch
          %785 = sbr.rel (%p783) target = $region79
        $region78: #{_lambda_.9} parent=58 // pred_region
          %s786 = smul.u32 2, %s21
          %p787 = scmp.lt.s32.totalorder %s786, 1
          %s788 = scalar_select %p787, %s786, 1
          %p789 = scmp.lt.s32.totalorder %s22, 0
          %s790 = scalar_select %p789, %s22, 0
          %s791 = sadd.s32 %s790, %s788
          %s792 = smul.addr %s791, 8
          %s793 = scalar_lea.vmem %s5, %s792
        $region79: #{_lambda_.9} parent=58 // pred_fallthru
          _
      $region59: #{_lambda_.9} parent=5 // pred_fallthru
        _
      %p794 = scmp.le.s32.totalorder 2, %s11
      // Predicated region
      $region80: #{_lambda_.9} parent=5 // pred_check
        %p795 = pneg %p794
      $region81: #{_lambda_.9} parent=5 // pred_check_branch
        %797 = sbr.rel (%p795) target = $region83
      $region82: #{_lambda_.9} parent=5 // pred_region
        %s798 = ssub.s32 %s11, 2
      $region83: #{_lambda_.9} parent=5 // pred_fallthru
        _
    $region6: #{_lambda_.9} parent=1 // loop_footer
      %s15 = sadd.s32 1, %s11
    $region7: #{_lambda_.9} parent=1 // loop_footer_branch
      %10 = sbr.rel target = $region3
    $region8: #{_lambda_.9} parent=1 // loop_exit
      _

</llo_original>
